<compile_context>
chip_gen: v6e
topology: v6e:2x2x1
jax: 0.10.0
libtpu: 0.0.40
codegen_flags: <defaults>
</compile_context>

<pallas_src>
import functools

import jax
import jax.numpy as jnp
from jax import lax
from jax.experimental import pallas as pl
from jax.experimental.pallas import tpu as pltpu

EPS = 1e-5  # PyTorch BatchNorm1d default


def residual_lstm_kernel(
    S, B, H,            # static (bound via functools.partial)
    x_ref,               # (S*B, Cin)
    w_ih_all_ref,        # (Cin, 8H)  [fwd i,f,g,o | rev i,f,g,o]
    w_hh_f_ref,          # (H, 4H)
    w_hh_r_ref,          # (H, 4H)
    b_f_ref,             # (1, 4H)    b_ih + b_hh, forward dir
    b_r_ref,             # (1, 4H)    reverse dir
    bn_gamma_ref,        # (1, Cout)  main-branch BatchNorm1d
    bn_beta_ref,         # (1, Cout)
    w_sc_ref,            # (Cin, Cout) shortcut Conv1d(k=1) weight, transposed
    sc_gamma_ref,        # (1, Cout)  shortcut BatchNorm1d
    sc_beta_ref,         # (1, Cout)
    out_ref,             # (S*B, Cout)
    h_n_ref,             # (2, B, H)
    c_n_ref,             # (2, B, H)
    h_all,               # VMEM scratch (S*B, Cout): lstm outputs, both dirs
):
  H4 = 4 * H
  x_flat = x_ref[...]                                      # (S*B, Cin)

  # ---- Shortcut branch first (keeps MXU busy outside the recurrence) ----
  res = jnp.dot(x_flat, w_sc_ref[...], preferred_element_type=jnp.float32)
  mu_r = jnp.mean(res, axis=0, keepdims=True)
  m2_r = jnp.mean(res * res, axis=0, keepdims=True)
  var_r = m2_r - mu_r * mu_r
  res = (res - mu_r) * lax.rsqrt(var_r + EPS) * sc_gamma_ref[...] + sc_beta_ref[...]

  # ---- Hoisted input projection, both directions, all timesteps ----
  xproj = jnp.dot(x_flat, w_ih_all_ref[...],
                  preferred_element_type=jnp.float32)      # (S*B, 8H)

  w_hh_f = w_hh_f_ref[...]
  w_hh_r = w_hh_r_ref[...]
  b_f = b_f_ref[...]
  b_r = b_r_ref[...]

  h_f = jnp.zeros((B, H), jnp.float32)
  c_f = jnp.zeros((B, H), jnp.float32)
  h_b = jnp.zeros((B, H), jnp.float32)
  c_b = jnp.zeros((B, H), jnp.float32)

  def cell(pre, c):
    # PyTorch gate order along the 4H axis: i, f, g, o.
    i_g = jax.nn.sigmoid(pre[:, 0:H])
    f_g = jax.nn.sigmoid(pre[:, H:2 * H])
    g_g = jnp.tanh(pre[:, 2 * H:3 * H])
    o_g = jax.nn.sigmoid(pre[:, 3 * H:4 * H])
    c_new = f_g * c + i_g * g_g
    h_new = o_g * jnp.tanh(c_new)
    return h_new, c_new

  # ---- Fully-unrolled, interleaved bidirectional recurrence ----
  for t in range(S):
    tb = S - 1 - t
    pre_f = (xproj[t * B:(t + 1) * B, 0:H4]
             + jnp.dot(h_f, w_hh_f, preferred_element_type=jnp.float32)
             + b_f)
    pre_b = (xproj[tb * B:(tb + 1) * B, H4:2 * H4]
             + jnp.dot(h_b, w_hh_r, preferred_element_type=jnp.float32)
             + b_r)
    h_f, c_f = cell(pre_f, c_f)
    h_b, c_b = cell(pre_b, c_b)
    h_all[t * B:(t + 1) * B, 0:H] = h_f          # forward output at time t
    h_all[tb * B:(tb + 1) * B, H:2 * H] = h_b    # reverse output at time tb

  h_n_ref[0] = h_f
  h_n_ref[1] = h_b
  c_n_ref[0] = c_f
  c_n_ref[1] = c_b

  # ---- Main-branch BatchNorm1d (training mode, biased batch statistics) ----
  temp1 = h_all[...]                                        # (S*B, Cout)
  mu = jnp.mean(temp1, axis=0, keepdims=True)
  m2 = jnp.mean(temp1 * temp1, axis=0, keepdims=True)
  var = m2 - mu * mu
  main = (temp1 - mu) * lax.rsqrt(var + EPS) * bn_gamma_ref[...] + bn_beta_ref[...]

  out_ref[...] = jnp.tanh(main + res)


def residual_lstm(x, p):
  S, B, Cin = x.shape
  H = p["w_hh_f"].shape[0]
  Cout = 2 * H
  x_flat = x.reshape(S * B, Cin)                 # wrapper-side reshape (free)

  vmem = pl.BlockSpec(memory_space=pltpu.MemorySpace.VMEM)
  kernel = functools.partial(residual_lstm_kernel, S, B, H)

  out_flat, h_n, c_n = pl.pallas_call(
      kernel,
      out_shape=(
          jax.ShapeDtypeStruct((S * B, Cout), jnp.float32),
          jax.ShapeDtypeStruct((2, B, H), jnp.float32),
          jax.ShapeDtypeStruct((2, B, H), jnp.float32),
      ),
      in_specs=[vmem] * 11,
      out_specs=(vmem, vmem, vmem),
      scratch_shapes=[
          pltpu.VMEM((S * B, Cout), jnp.float32),
      ],
  )(x_flat, p["w_ih_all"], p["w_hh_f"], p["w_hh_r"], p["b_f"], p["b_r"],
    p["bn_gamma"], p["bn_beta"], p["w_sc"], p["sc_gamma"], p["sc_beta"])

  return out_flat.reshape(S, B, Cout), h_n, c_n


def init_params(key, Cin, Cout):
  """Deterministic synthetic parameters with PyTorch module shapes, converted
  to the fused/transposed layout the kernel consumes."""
  H = Cout // 2
  ks = jax.random.split(key, 12)

  def rnd(k, shape, scale=0.1):
    return scale * jax.random.normal(k, shape, jnp.float32)

  # nn.LSTM(Cin, H, 1, bidirectional=True) parameter shapes (gate order i,f,g,o).
  w_ih_f = rnd(ks[0], (4 * H, Cin)); w_hh_f = rnd(ks[1], (4 * H, H))
  b_ih_f = rnd(ks[2], (4 * H,));     b_hh_f = rnd(ks[3], (4 * H,))
  w_ih_r = rnd(ks[4], (4 * H, Cin)); w_hh_r = rnd(ks[5], (4 * H, H))
  b_ih_r = rnd(ks[6], (4 * H,));     b_hh_r = rnd(ks[7], (4 * H,))
  # nn.Conv1d(Cin, Cout, kernel_size=1, bias=False): weight (Cout, Cin, 1).
  w_conv = rnd(ks[8], (Cout, Cin))
  # BatchNorm1d affine params.
  bn_gamma = 1.0 + rnd(ks[9], (Cout,));  bn_beta = rnd(ks[10], (Cout,))
  sc_gamma = 1.0 + rnd(ks[11], (Cout,)); sc_beta = jnp.zeros((Cout,), jnp.float32)

  # Fused layouts: W_ih -> (Cin, 4H), W_hh -> (H, 4H), bias -> (1, 4H).
  w_ih_all = jnp.concatenate(
      [jnp.transpose(w_ih_f), jnp.transpose(w_ih_r)], axis=1)   # (Cin, 8H)

  return dict(
      w_ih_all=w_ih_all,
      w_hh_f=jnp.transpose(w_hh_f), w_hh_r=jnp.transpose(w_hh_r),
      b_f=(b_ih_f + b_hh_f).reshape(1, 4 * H),
      b_r=(b_ih_r + b_hh_r).reshape(1, 4 * H),
      bn_gamma=bn_gamma.reshape(1, Cout), bn_beta=bn_beta.reshape(1, Cout),
      w_sc=jnp.transpose(w_conv),
      sc_gamma=sc_gamma.reshape(1, Cout), sc_beta=sc_beta.reshape(1, Cout),
  )


def reference(x, p):
  """Pure-JAX reference mirroring the PyTorch forward."""
  S, B, Cin = x.shape
  H = p["w_hh_f"].shape[0]
  H4 = 4 * H
  w_ih_f = p["w_ih_all"][:, :H4]
  w_ih_r = p["w_ih_all"][:, H4:]

  def run(w_ih, w_hh, b, xs):
    h = jnp.zeros((B, H), jnp.float32)
    c = jnp.zeros((B, H), jnp.float32)
    outs = []
    for t in range(S):
      pre = xs[t] @ w_ih + h @ w_hh + b                    # (B, 4H)
      i = jax.nn.sigmoid(pre[:, :H]); f = jax.nn.sigmoid(pre[:, H:2 * H])
      g = jnp.tanh(pre[:, 2 * H:3 * H]); o = jax.nn.sigmoid(pre[:, 3 * H:])
      c = f * c + i * g
      h = o * jnp.tanh(c)
      outs.append(h)
    return jnp.stack(outs), h, c

  hf, h_f, c_f = run(w_ih_f, p["w_hh_f"], p["b_f"], x)
  hb_rev, h_b, c_b = run(w_ih_r, p["w_hh_r"], p["b_r"], x[::-1])
  hb = hb_rev[::-1]

  def bn(y, g, b2):
    mu = y.mean(0, keepdims=True)
    var = ((y - mu) ** 2).mean(0, keepdims=True)
    return (y - mu) * lax.rsqrt(var + EPS) * g + b2

  temp1 = jnp.concatenate([hf, hb], -1).reshape(S * B, 2 * H)
  main = bn(temp1, p["bn_gamma"], p["bn_beta"])
  res = bn(x.reshape(S * B, Cin) @ p["w_sc"], p["sc_gamma"], p["sc_beta"])
  out = jnp.tanh(main + res).reshape(S, B, 2 * H)
  return out, jnp.stack([h_f, h_b]), jnp.stack([c_f, c_b])


if __name__ == "__main__":
  S, B, Cin, Cout = 8, 8, 32, 64   # seq=8, batch=8, in_channels=32, out_channels=64
  key = jax.random.PRNGKey(0)
  kx, kp = jax.random.split(key)
  x = jax.random.normal(kx, (S, B, Cin), jnp.float32)
  params = init_params(kp, Cin, Cout)

  out, h_n, c_n = jax.block_until_ready(residual_lstm(x, params))

  ref_out, ref_h, ref_c = reference(x, params)
  assert out.shape == (S, B, Cout) and h_n.shape == (2, B, Cout // 2)
  assert jnp.allclose(out, ref_out, atol=1e-3, rtol=1e-3)
  assert jnp.allclose(h_n, ref_h, atol=1e-3, rtol=1e-3)
  assert jnp.allclose(c_n, ref_c, atol=1e-3, rtol=1e-3)
  print("KERNEL_OK")
</pallas_src>

<mosaic_0001>
module attributes {stable_mosaic.version = 11 : i64} {
  func.func @residual_lstm_kernel(%arg0: memref<64x32xf32, #tpu.memory_space<vmem>>, %arg1: memref<32x256xf32, #tpu.memory_space<vmem>>, %arg2: memref<32x128xf32, #tpu.memory_space<vmem>>, %arg3: memref<32x128xf32, #tpu.memory_space<vmem>>, %arg4: memref<1x128xf32, #tpu.memory_space<vmem>>, %arg5: memref<1x128xf32, #tpu.memory_space<vmem>>, %arg6: memref<1x64xf32, #tpu.memory_space<vmem>>, %arg7: memref<1x64xf32, #tpu.memory_space<vmem>>, %arg8: memref<32x64xf32, #tpu.memory_space<vmem>>, %arg9: memref<1x64xf32, #tpu.memory_space<vmem>>, %arg10: memref<1x64xf32, #tpu.memory_space<vmem>>, %arg11: memref<64x64xf32, #tpu.memory_space<vmem>>, %arg12: memref<2x8x32xf32, #tpu.memory_space<vmem>>, %arg13: memref<2x8x32xf32, #tpu.memory_space<vmem>>, %arg14: memref<64x64xf32, #tpu.memory_space<vmem>>) attributes {dimension_semantics = [], scalar_prefetch = 0 : i64, scratch_operands = 1 : i64, tpu.core_type = #tpu.core_type<tc>} {
    %c0 = arith.constant 0 : index
    %c0_0 = arith.constant 0 : index
    %0 = vector.load %arg0[%c0, %c0_0] : memref<64x32xf32, #tpu.memory_space<vmem>>, vector<64x32xf32>
    %c0_1 = arith.constant 0 : index
    %c0_2 = arith.constant 0 : index
    %1 = vector.load %arg8[%c0_1, %c0_2] : memref<32x64xf32, #tpu.memory_space<vmem>>, vector<32x64xf32>
    %cst = arith.constant dense<0.000000e+00> : vector<64x64xf32>
    %2 = tpu.matmul %0, %1, %cst {dimension_numbers = #tpu.dot_dimension_numbers<[1], [0], [0], [1], [0, 0, 1, 1], [], []>} : vector<64x32xf32>, vector<32x64xf32>, vector<64x64xf32> -> vector<64x64xf32>
    %cst_3 = arith.constant dense<0.000000e+00> : vector<64xf32>
    %3 = vector.multi_reduction <add>, %2, %cst_3 [0] : vector<64x64xf32> to vector<64xf32>
    %4 = vector.shape_cast %3 : vector<64xf32> to vector<1x64xf32>
    %cst_4 = arith.constant 6.400000e+01 : f32
    %5 = vector.broadcast %cst_4 : f32 to vector<1x64xf32>
    %6 = arith.divf %4, %5 : vector<1x64xf32>
    %7 = arith.mulf %2, %2 : vector<64x64xf32>
    %cst_5 = arith.constant dense<0.000000e+00> : vector<64xf32>
    %8 = vector.multi_reduction <add>, %7, %cst_5 [0] : vector<64x64xf32> to vector<64xf32>
    %9 = vector.shape_cast %8 : vector<64xf32> to vector<1x64xf32>
    %cst_6 = arith.constant 6.400000e+01 : f32
    %10 = vector.broadcast %cst_6 : f32 to vector<1x64xf32>
    %11 = arith.divf %9, %10 : vector<1x64xf32>
    %12 = arith.mulf %6, %6 : vector<1x64xf32>
    %13 = arith.subf %11, %12 : vector<1x64xf32>
    %14 = vector.broadcast %6 : vector<1x64xf32> to vector<64x64xf32>
    %15 = arith.subf %2, %14 : vector<64x64xf32>
    %cst_7 = arith.constant 9.99999974E-6 : f32
    %16 = vector.broadcast %cst_7 : f32 to vector<1x64xf32>
    %17 = arith.addf %13, %16 : vector<1x64xf32>
    %18 = math.rsqrt %17 : vector<1x64xf32>
    %19 = vector.broadcast %18 : vector<1x64xf32> to vector<64x64xf32>
    %20 = arith.mulf %15, %19 : vector<64x64xf32>
    %c0_8 = arith.constant 0 : index
    %c0_9 = arith.constant 0 : index
    %21 = vector.load %arg9[%c0_8, %c0_9] : memref<1x64xf32, #tpu.memory_space<vmem>>, vector<1x64xf32>
    %22 = vector.broadcast %21 : vector<1x64xf32> to vector<64x64xf32>
    %23 = arith.mulf %20, %22 : vector<64x64xf32>
    %c0_10 = arith.constant 0 : index
    %c0_11 = arith.constant 0 : index
    %24 = vector.load %arg10[%c0_10, %c0_11] : memref<1x64xf32, #tpu.memory_space<vmem>>, vector<1x64xf32>
    %25 = vector.broadcast %24 : vector<1x64xf32> to vector<64x64xf32>
    %26 = arith.addf %23, %25 : vector<64x64xf32>
    %c0_12 = arith.constant 0 : index
    %c0_13 = arith.constant 0 : index
    %27 = vector.load %arg1[%c0_12, %c0_13] : memref<32x256xf32, #tpu.memory_space<vmem>>, vector<32x256xf32>
    %cst_14 = arith.constant dense<0.000000e+00> : vector<64x256xf32>
    %28 = tpu.matmul %0, %27, %cst_14 {dimension_numbers = #tpu.dot_dimension_numbers<[1], [0], [0], [1], [0, 0, 1, 1], [], []>} : vector<64x32xf32>, vector<32x256xf32>, vector<64x256xf32> -> vector<64x256xf32>
    %c0_15 = arith.constant 0 : index
    %c0_16 = arith.constant 0 : index
    %29 = vector.load %arg2[%c0_15, %c0_16] : memref<32x128xf32, #tpu.memory_space<vmem>>, vector<32x128xf32>
    %c0_17 = arith.constant 0 : index
    %c0_18 = arith.constant 0 : index
    %30 = vector.load %arg3[%c0_17, %c0_18] : memref<32x128xf32, #tpu.memory_space<vmem>>, vector<32x128xf32>
    %c0_19 = arith.constant 0 : index
    %c0_20 = arith.constant 0 : index
    %31 = vector.load %arg4[%c0_19, %c0_20] : memref<1x128xf32, #tpu.memory_space<vmem>>, vector<1x128xf32>
    %c0_21 = arith.constant 0 : index
    %c0_22 = arith.constant 0 : index
    %32 = vector.load %arg5[%c0_21, %c0_22] : memref<1x128xf32, #tpu.memory_space<vmem>>, vector<1x128xf32>
    %cst_23 = arith.constant 0.000000e+00 : f32
    %33 = vector.broadcast %cst_23 : f32 to vector<8x32xf32>
    %cst_24 = arith.constant 0.000000e+00 : f32
    %34 = vector.broadcast %cst_24 : f32 to vector<8x32xf32>
    %cst_25 = arith.constant 0.000000e+00 : f32
    %35 = vector.broadcast %cst_25 : f32 to vector<8x32xf32>
    %cst_26 = arith.constant 0.000000e+00 : f32
    %36 = vector.broadcast %cst_26 : f32 to vector<8x32xf32>
    %37 = vector.extract_strided_slice %28 {offsets = [0, 0], sizes = [8, 128], strides = [1, 1]} : vector<64x256xf32> to vector<8x128xf32>
    %cst_27 = arith.constant dense<0.000000e+00> : vector<8x128xf32>
    %38 = tpu.matmul %33, %29, %cst_27 {dimension_numbers = #tpu.dot_dimension_numbers<[1], [0], [0], [1], [0, 0, 1, 1], [], []>} : vector<8x32xf32>, vector<32x128xf32>, vector<8x128xf32> -> vector<8x128xf32>
    %39 = arith.addf %37, %38 : vector<8x128xf32>
    %40 = vector.broadcast %31 : vector<1x128xf32> to vector<8x128xf32>
    %41 = arith.addf %39, %40 : vector<8x128xf32>
    %42 = vector.extract_strided_slice %28 {offsets = [56, 128], sizes = [8, 128], strides = [1, 1]} : vector<64x256xf32> to vector<8x128xf32>
    %cst_28 = arith.constant dense<0.000000e+00> : vector<8x128xf32>
    %43 = tpu.matmul %35, %30, %cst_28 {dimension_numbers = #tpu.dot_dimension_numbers<[1], [0], [0], [1], [0, 0, 1, 1], [], []>} : vector<8x32xf32>, vector<32x128xf32>, vector<8x128xf32> -> vector<8x128xf32>
    %44 = arith.addf %42, %43 : vector<8x128xf32>
    %45 = vector.broadcast %32 : vector<1x128xf32> to vector<8x128xf32>
    %46 = arith.addf %44, %45 : vector<8x128xf32>
    %47 = vector.extract_strided_slice %41 {offsets = [0, 0], sizes = [8, 32], strides = [1, 1]} : vector<8x128xf32> to vector<8x32xf32>
    %48 = arith.negf %47 : vector<8x32xf32>
    %49 = math.exp %48 : vector<8x32xf32>
    %cst_29 = arith.constant 1.000000e+00 : f32
    %50 = vector.broadcast %cst_29 : f32 to vector<8x32xf32>
    %51 = arith.addf %50, %49 : vector<8x32xf32>
    %52 = arith.divf %50, %51 : vector<8x32xf32>
    %53 = vector.extract_strided_slice %41 {offsets = [0, 32], sizes = [8, 32], strides = [1, 1]} : vector<8x128xf32> to vector<8x32xf32>
    %54 = arith.negf %53 : vector<8x32xf32>
    %55 = math.exp %54 : vector<8x32xf32>
    %cst_30 = arith.constant 1.000000e+00 : f32
    %56 = vector.broadcast %cst_30 : f32 to vector<8x32xf32>
    %57 = arith.addf %56, %55 : vector<8x32xf32>
    %58 = arith.divf %56, %57 : vector<8x32xf32>
    %59 = vector.extract_strided_slice %41 {offsets = [0, 64], sizes = [8, 32], strides = [1, 1]} : vector<8x128xf32> to vector<8x32xf32>
    %60 = math.tanh %59 : vector<8x32xf32>
    %61 = vector.extract_strided_slice %41 {offsets = [0, 96], sizes = [8, 32], strides = [1, 1]} : vector<8x128xf32> to vector<8x32xf32>
    %62 = arith.negf %61 : vector<8x32xf32>
    %63 = math.exp %62 : vector<8x32xf32>
    %cst_31 = arith.constant 1.000000e+00 : f32
    %64 = vector.broadcast %cst_31 : f32 to vector<8x32xf32>
    %65 = arith.addf %64, %63 : vector<8x32xf32>
    %66 = arith.divf %64, %65 : vector<8x32xf32>
    %67 = arith.mulf %58, %34 : vector<8x32xf32>
    %68 = arith.mulf %52, %60 : vector<8x32xf32>
    %69 = arith.addf %67, %68 : vector<8x32xf32>
    %70 = math.tanh %69 : vector<8x32xf32>
    %71 = arith.mulf %66, %70 : vector<8x32xf32>
    %72 = vector.extract_strided_slice %46 {offsets = [0, 0], sizes = [8, 32], strides = [1, 1]} : vector<8x128xf32> to vector<8x32xf32>
    %73 = arith.negf %72 : vector<8x32xf32>
    %74 = math.exp %73 : vector<8x32xf32>
    %cst_32 = arith.constant 1.000000e+00 : f32
    %75 = vector.broadcast %cst_32 : f32 to vector<8x32xf32>
    %76 = arith.addf %75, %74 : vector<8x32xf32>
    %77 = arith.divf %75, %76 : vector<8x32xf32>
    %78 = vector.extract_strided_slice %46 {offsets = [0, 32], sizes = [8, 32], strides = [1, 1]} : vector<8x128xf32> to vector<8x32xf32>
    %79 = arith.negf %78 : vector<8x32xf32>
    %80 = math.exp %79 : vector<8x32xf32>
    %cst_33 = arith.constant 1.000000e+00 : f32
    %81 = vector.broadcast %cst_33 : f32 to vector<8x32xf32>
    %82 = arith.addf %81, %80 : vector<8x32xf32>
    %83 = arith.divf %81, %82 : vector<8x32xf32>
    %84 = vector.extract_strided_slice %46 {offsets = [0, 64], sizes = [8, 32], strides = [1, 1]} : vector<8x128xf32> to vector<8x32xf32>
    %85 = math.tanh %84 : vector<8x32xf32>
    %86 = vector.extract_strided_slice %46 {offsets = [0, 96], sizes = [8, 32], strides = [1, 1]} : vector<8x128xf32> to vector<8x32xf32>
    %87 = arith.negf %86 : vector<8x32xf32>
    %88 = math.exp %87 : vector<8x32xf32>
    %cst_34 = arith.constant 1.000000e+00 : f32
    %89 = vector.broadcast %cst_34 : f32 to vector<8x32xf32>
    %90 = arith.addf %89, %88 : vector<8x32xf32>
    %91 = arith.divf %89, %90 : vector<8x32xf32>
    %92 = arith.mulf %83, %36 : vector<8x32xf32>
    %93 = arith.mulf %77, %85 : vector<8x32xf32>
    %94 = arith.addf %92, %93 : vector<8x32xf32>
    %95 = math.tanh %94 : vector<8x32xf32>
    %96 = arith.mulf %91, %95 : vector<8x32xf32>
    %c0_35 = arith.constant 0 : index
    %c0_36 = arith.constant 0 : index
    %97 = vector.load %arg14[%c0_35, %c0_36] : memref<64x64xf32, #tpu.memory_space<vmem>>, vector<8x32xf32>
    tpu.vector_store %arg14[%c0_35, %c0_36], %71 {strides = array<i32>} : memref<64x64xf32, #tpu.memory_space<vmem>>, vector<8x32xf32>,
    %c56 = arith.constant 56 : index
    %c32 = arith.constant 32 : index
    %98 = vector.load %arg14[%c56, %c32] : memref<64x64xf32, #tpu.memory_space<vmem>>, vector<8x32xf32>
    tpu.vector_store %arg14[%c56, %c32], %96 {strides = array<i32>} : memref<64x64xf32, #tpu.memory_space<vmem>>, vector<8x32xf32>,
    %99 = vector.extract_strided_slice %28 {offsets = [8, 0], sizes = [8, 128], strides = [1, 1]} : vector<64x256xf32> to vector<8x128xf32>
    %cst_37 = arith.constant dense<0.000000e+00> : vector<8x128xf32>
    %100 = tpu.matmul %71, %29, %cst_37 {dimension_numbers = #tpu.dot_dimension_numbers<[1], [0], [0], [1], [0, 0, 1, 1], [], []>} : vector<8x32xf32>, vector<32x128xf32>, vector<8x128xf32> -> vector<8x128xf32>
    %101 = arith.addf %99, %100 : vector<8x128xf32>
    %102 = vector.broadcast %31 : vector<1x128xf32> to vector<8x128xf32>
    %103 = arith.addf %101, %102 : vector<8x128xf32>
    %104 = vector.extract_strided_slice %28 {offsets = [48, 128], sizes = [8, 128], strides = [1, 1]} : vector<64x256xf32> to vector<8x128xf32>
    %cst_38 = arith.constant dense<0.000000e+00> : vector<8x128xf32>
    %105 = tpu.matmul %96, %30, %cst_38 {dimension_numbers = #tpu.dot_dimension_numbers<[1], [0], [0], [1], [0, 0, 1, 1], [], []>} : vector<8x32xf32>, vector<32x128xf32>, vector<8x128xf32> -> vector<8x128xf32>
    %106 = arith.addf %104, %105 : vector<8x128xf32>
    %107 = vector.broadcast %32 : vector<1x128xf32> to vector<8x128xf32>
    %108 = arith.addf %106, %107 : vector<8x128xf32>
    %109 = vector.extract_strided_slice %103 {offsets = [0, 0], sizes = [8, 32], strides = [1, 1]} : vector<8x128xf32> to vector<8x32xf32>
    %110 = arith.negf %109 : vector<8x32xf32>
    %111 = math.exp %110 : vector<8x32xf32>
    %cst_39 = arith.constant 1.000000e+00 : f32
    %112 = vector.broadcast %cst_39 : f32 to vector<8x32xf32>
    %113 = arith.addf %112, %111 : vector<8x32xf32>
    %114 = arith.divf %112, %113 : vector<8x32xf32>
    %115 = vector.extract_strided_slice %103 {offsets = [0, 32], sizes = [8, 32], strides = [1, 1]} : vector<8x128xf32> to vector<8x32xf32>
    %116 = arith.negf %115 : vector<8x32xf32>
    %117 = math.exp %116 : vector<8x32xf32>
    %cst_40 = arith.constant 1.000000e+00 : f32
    %118 = vector.broadcast %cst_40 : f32 to vector<8x32xf32>
    %119 = arith.addf %118, %117 : vector<8x32xf32>
    %120 = arith.divf %118, %119 : vector<8x32xf32>
    %121 = vector.extract_strided_slice %103 {offsets = [0, 64], sizes = [8, 32], strides = [1, 1]} : vector<8x128xf32> to vector<8x32xf32>
    %122 = math.tanh %121 : vector<8x32xf32>
    %123 = vector.extract_strided_slice %103 {offsets = [0, 96], sizes = [8, 32], strides = [1, 1]} : vector<8x128xf32> to vector<8x32xf32>
    %124 = arith.negf %123 : vector<8x32xf32>
    %125 = math.exp %124 : vector<8x32xf32>
    %cst_41 = arith.constant 1.000000e+00 : f32
    %126 = vector.broadcast %cst_41 : f32 to vector<8x32xf32>
    %127 = arith.addf %126, %125 : vector<8x32xf32>
    %128 = arith.divf %126, %127 : vector<8x32xf32>
    %129 = arith.mulf %120, %69 : vector<8x32xf32>
    %130 = arith.mulf %114, %122 : vector<8x32xf32>
    %131 = arith.addf %129, %130 : vector<8x32xf32>
    %132 = math.tanh %131 : vector<8x32xf32>
    %133 = arith.mulf %128, %132 : vector<8x32xf32>
    %134 = vector.extract_strided_slice %108 {offsets = [0, 0], sizes = [8, 32], strides = [1, 1]} : vector<8x128xf32> to vector<8x32xf32>
    %135 = arith.negf %134 : vector<8x32xf32>
    %136 = math.exp %135 : vector<8x32xf32>
    %cst_42 = arith.constant 1.000000e+00 : f32
    %137 = vector.broadcast %cst_42 : f32 to vector<8x32xf32>
    %138 = arith.addf %137, %136 : vector<8x32xf32>
    %139 = arith.divf %137, %138 : vector<8x32xf32>
    %140 = vector.extract_strided_slice %108 {offsets = [0, 32], sizes = [8, 32], strides = [1, 1]} : vector<8x128xf32> to vector<8x32xf32>
    %141 = arith.negf %140 : vector<8x32xf32>
    %142 = math.exp %141 : vector<8x32xf32>
    %cst_43 = arith.constant 1.000000e+00 : f32
    %143 = vector.broadcast %cst_43 : f32 to vector<8x32xf32>
    %144 = arith.addf %143, %142 : vector<8x32xf32>
    %145 = arith.divf %143, %144 : vector<8x32xf32>
    %146 = vector.extract_strided_slice %108 {offsets = [0, 64], sizes = [8, 32], strides = [1, 1]} : vector<8x128xf32> to vector<8x32xf32>
    %147 = math.tanh %146 : vector<8x32xf32>
    %148 = vector.extract_strided_slice %108 {offsets = [0, 96], sizes = [8, 32], strides = [1, 1]} : vector<8x128xf32> to vector<8x32xf32>
    %149 = arith.negf %148 : vector<8x32xf32>
    %150 = math.exp %149 : vector<8x32xf32>
    %cst_44 = arith.constant 1.000000e+00 : f32
    %151 = vector.broadcast %cst_44 : f32 to vector<8x32xf32>
    %152 = arith.addf %151, %150 : vector<8x32xf32>
    %153 = arith.divf %151, %152 : vector<8x32xf32>
    %154 = arith.mulf %145, %94 : vector<8x32xf32>
    %155 = arith.mulf %139, %147 : vector<8x32xf32>
    %156 = arith.addf %154, %155 : vector<8x32xf32>
    %157 = math.tanh %156 : vector<8x32xf32>
    %158 = arith.mulf %153, %157 : vector<8x32xf32>
    %c8 = arith.constant 8 : index
    %c0_45 = arith.constant 0 : index
    %159 = vector.load %arg14[%c8, %c0_45] : memref<64x64xf32, #tpu.memory_space<vmem>>, vector<8x32xf32>
    tpu.vector_store %arg14[%c8, %c0_45], %133 {strides = array<i32>} : memref<64x64xf32, #tpu.memory_space<vmem>>, vector<8x32xf32>,
    %c48 = arith.constant 48 : index
    %c32_46 = arith.constant 32 : index
    %160 = vector.load %arg14[%c48, %c32_46] : memref<64x64xf32, #tpu.memory_space<vmem>>, vector<8x32xf32>
    tpu.vector_store %arg14[%c48, %c32_46], %158 {strides = array<i32>} : memref<64x64xf32, #tpu.memory_space<vmem>>, vector<8x32xf32>,
    %161 = vector.extract_strided_slice %28 {offsets = [16, 0], sizes = [8, 128], strides = [1, 1]} : vector<64x256xf32> to vector<8x128xf32>
    %cst_47 = arith.constant dense<0.000000e+00> : vector<8x128xf32>
    %162 = tpu.matmul %133, %29, %cst_47 {dimension_numbers = #tpu.dot_dimension_numbers<[1], [0], [0], [1], [0, 0, 1, 1], [], []>} : vector<8x32xf32>, vector<32x128xf32>, vector<8x128xf32> -> vector<8x128xf32>
    %163 = arith.addf %161, %162 : vector<8x128xf32>
    %164 = vector.broadcast %31 : vector<1x128xf32> to vector<8x128xf32>
    %165 = arith.addf %163, %164 : vector<8x128xf32>
    %166 = vector.extract_strided_slice %28 {offsets = [40, 128], sizes = [8, 128], strides = [1, 1]} : vector<64x256xf32> to vector<8x128xf32>
    %cst_48 = arith.constant dense<0.000000e+00> : vector<8x128xf32>
    %167 = tpu.matmul %158, %30, %cst_48 {dimension_numbers = #tpu.dot_dimension_numbers<[1], [0], [0], [1], [0, 0, 1, 1], [], []>} : vector<8x32xf32>, vector<32x128xf32>, vector<8x128xf32> -> vector<8x128xf32>
    %168 = arith.addf %166, %167 : vector<8x128xf32>
    %169 = vector.broadcast %32 : vector<1x128xf32> to vector<8x128xf32>
    %170 = arith.addf %168, %169 : vector<8x128xf32>
    %171 = vector.extract_strided_slice %165 {offsets = [0, 0], sizes = [8, 32], strides = [1, 1]} : vector<8x128xf32> to vector<8x32xf32>
    %172 = arith.negf %171 : vector<8x32xf32>
    %173 = math.exp %172 : vector<8x32xf32>
    %cst_49 = arith.constant 1.000000e+00 : f32
    %174 = vector.broadcast %cst_49 : f32 to vector<8x32xf32>
    %175 = arith.addf %174, %173 : vector<8x32xf32>
    %176 = arith.divf %174, %175 : vector<8x32xf32>
    %177 = vector.extract_strided_slice %165 {offsets = [0, 32], sizes = [8, 32], strides = [1, 1]} : vector<8x128xf32> to vector<8x32xf32>
    %178 = arith.negf %177 : vector<8x32xf32>
    %179 = math.exp %178 : vector<8x32xf32>
    %cst_50 = arith.constant 1.000000e+00 : f32
    %180 = vector.broadcast %cst_50 : f32 to vector<8x32xf32>
    %181 = arith.addf %180, %179 : vector<8x32xf32>
    %182 = arith.divf %180, %181 : vector<8x32xf32>
    %183 = vector.extract_strided_slice %165 {offsets = [0, 64], sizes = [8, 32], strides = [1, 1]} : vector<8x128xf32> to vector<8x32xf32>
    %184 = math.tanh %183 : vector<8x32xf32>
    %185 = vector.extract_strided_slice %165 {offsets = [0, 96], sizes = [8, 32], strides = [1, 1]} : vector<8x128xf32> to vector<8x32xf32>
    %186 = arith.negf %185 : vector<8x32xf32>
    %187 = math.exp %186 : vector<8x32xf32>
    %cst_51 = arith.constant 1.000000e+00 : f32
    %188 = vector.broadcast %cst_51 : f32 to vector<8x32xf32>
    %189 = arith.addf %188, %187 : vector<8x32xf32>
    %190 = arith.divf %188, %189 : vector<8x32xf32>
    %191 = arith.mulf %182, %131 : vector<8x32xf32>
    %192 = arith.mulf %176, %184 : vector<8x32xf32>
    %193 = arith.addf %191, %192 : vector<8x32xf32>
    %194 = math.tanh %193 : vector<8x32xf32>
    %195 = arith.mulf %190, %194 : vector<8x32xf32>
    %196 = vector.extract_strided_slice %170 {offsets = [0, 0], sizes = [8, 32], strides = [1, 1]} : vector<8x128xf32> to vector<8x32xf32>
    %197 = arith.negf %196 : vector<8x32xf32>
    %198 = math.exp %197 : vector<8x32xf32>
    %cst_52 = arith.constant 1.000000e+00 : f32
    %199 = vector.broadcast %cst_52 : f32 to vector<8x32xf32>
    %200 = arith.addf %199, %198 : vector<8x32xf32>
    %201 = arith.divf %199, %200 : vector<8x32xf32>
    %202 = vector.extract_strided_slice %170 {offsets = [0, 32], sizes = [8, 32], strides = [1, 1]} : vector<8x128xf32> to vector<8x32xf32>
    %203 = arith.negf %202 : vector<8x32xf32>
    %204 = math.exp %203 : vector<8x32xf32>
    %cst_53 = arith.constant 1.000000e+00 : f32
    %205 = vector.broadcast %cst_53 : f32 to vector<8x32xf32>
    %206 = arith.addf %205, %204 : vector<8x32xf32>
    %207 = arith.divf %205, %206 : vector<8x32xf32>
    %208 = vector.extract_strided_slice %170 {offsets = [0, 64], sizes = [8, 32], strides = [1, 1]} : vector<8x128xf32> to vector<8x32xf32>
    %209 = math.tanh %208 : vector<8x32xf32>
    %210 = vector.extract_strided_slice %170 {offsets = [0, 96], sizes = [8, 32], strides = [1, 1]} : vector<8x128xf32> to vector<8x32xf32>
    %211 = arith.negf %210 : vector<8x32xf32>
    %212 = math.exp %211 : vector<8x32xf32>
    %cst_54 = arith.constant 1.000000e+00 : f32
    %213 = vector.broadcast %cst_54 : f32 to vector<8x32xf32>
    %214 = arith.addf %213, %212 : vector<8x32xf32>
    %215 = arith.divf %213, %214 : vector<8x32xf32>
    %216 = arith.mulf %207, %156 : vector<8x32xf32>
    %217 = arith.mulf %201, %209 : vector<8x32xf32>
    %218 = arith.addf %216, %217 : vector<8x32xf32>
    %219 = math.tanh %218 : vector<8x32xf32>
    %220 = arith.mulf %215, %219 : vector<8x32xf32>
    %c16 = arith.constant 16 : index
    %c0_55 = arith.constant 0 : index
    %221 = vector.load %arg14[%c16, %c0_55] : memref<64x64xf32, #tpu.memory_space<vmem>>, vector<8x32xf32>
    tpu.vector_store %arg14[%c16, %c0_55], %195 {strides = array<i32>} : memref<64x64xf32, #tpu.memory_space<vmem>>, vector<8x32xf32>,
    %c40 = arith.constant 40 : index
    %c32_56 = arith.constant 32 : index
    %222 = vector.load %arg14[%c40, %c32_56] : memref<64x64xf32, #tpu.memory_space<vmem>>, vector<8x32xf32>
    tpu.vector_store %arg14[%c40, %c32_56], %220 {strides = array<i32>} : memref<64x64xf32, #tpu.memory_space<vmem>>, vector<8x32xf32>,
    %223 = vector.extract_strided_slice %28 {offsets = [24, 0], sizes = [8, 128], strides = [1, 1]} : vector<64x256xf32> to vector<8x128xf32>
    %cst_57 = arith.constant dense<0.000000e+00> : vector<8x128xf32>
    %224 = tpu.matmul %195, %29, %cst_57 {dimension_numbers = #tpu.dot_dimension_numbers<[1], [0], [0], [1], [0, 0, 1, 1], [], []>} : vector<8x32xf32>, vector<32x128xf32>, vector<8x128xf32> -> vector<8x128xf32>
    %225 = arith.addf %223, %224 : vector<8x128xf32>
    %226 = vector.broadcast %31 : vector<1x128xf32> to vector<8x128xf32>
    %227 = arith.addf %225, %226 : vector<8x128xf32>
    %228 = vector.extract_strided_slice %28 {offsets = [32, 128], sizes = [8, 128], strides = [1, 1]} : vector<64x256xf32> to vector<8x128xf32>
    %cst_58 = arith.constant dense<0.000000e+00> : vector<8x128xf32>
    %229 = tpu.matmul %220, %30, %cst_58 {dimension_numbers = #tpu.dot_dimension_numbers<[1], [0], [0], [1], [0, 0, 1, 1], [], []>} : vector<8x32xf32>, vector<32x128xf32>, vector<8x128xf32> -> vector<8x128xf32>
    %230 = arith.addf %228, %229 : vector<8x128xf32>
    %231 = vector.broadcast %32 : vector<1x128xf32> to vector<8x128xf32>
    %232 = arith.addf %230, %231 : vector<8x128xf32>
    %233 = vector.extract_strided_slice %227 {offsets = [0, 0], sizes = [8, 32], strides = [1, 1]} : vector<8x128xf32> to vector<8x32xf32>
    %234 = arith.negf %233 : vector<8x32xf32>
    %235 = math.exp %234 : vector<8x32xf32>
    %cst_59 = arith.constant 1.000000e+00 : f32
    %236 = vector.broadcast %cst_59 : f32 to vector<8x32xf32>
    %237 = arith.addf %236, %235 : vector<8x32xf32>
    %238 = arith.divf %236, %237 : vector<8x32xf32>
    %239 = vector.extract_strided_slice %227 {offsets = [0, 32], sizes = [8, 32], strides = [1, 1]} : vector<8x128xf32> to vector<8x32xf32>
    %240 = arith.negf %239 : vector<8x32xf32>
    %241 = math.exp %240 : vector<8x32xf32>
    %cst_60 = arith.constant 1.000000e+00 : f32
    %242 = vector.broadcast %cst_60 : f32 to vector<8x32xf32>
    %243 = arith.addf %242, %241 : vector<8x32xf32>
    %244 = arith.divf %242, %243 : vector<8x32xf32>
    %245 = vector.extract_strided_slice %227 {offsets = [0, 64], sizes = [8, 32], strides = [1, 1]} : vector<8x128xf32> to vector<8x32xf32>
    %246 = math.tanh %245 : vector<8x32xf32>
    %247 = vector.extract_strided_slice %227 {offsets = [0, 96], sizes = [8, 32], strides = [1, 1]} : vector<8x128xf32> to vector<8x32xf32>
    %248 = arith.negf %247 : vector<8x32xf32>
    %249 = math.exp %248 : vector<8x32xf32>
    %cst_61 = arith.constant 1.000000e+00 : f32
    %250 = vector.broadcast %cst_61 : f32 to vector<8x32xf32>
    %251 = arith.addf %250, %249 : vector<8x32xf32>
    %252 = arith.divf %250, %251 : vector<8x32xf32>
    %253 = arith.mulf %244, %193 : vector<8x32xf32>
    %254 = arith.mulf %238, %246 : vector<8x32xf32>
    %255 = arith.addf %253, %254 : vector<8x32xf32>
    %256 = math.tanh %255 : vector<8x32xf32>
    %257 = arith.mulf %252, %256 : vector<8x32xf32>
    %258 = vector.extract_strided_slice %232 {offsets = [0, 0], sizes = [8, 32], strides = [1, 1]} : vector<8x128xf32> to vector<8x32xf32>
    %259 = arith.negf %258 : vector<8x32xf32>
    %260 = math.exp %259 : vector<8x32xf32>
    %cst_62 = arith.constant 1.000000e+00 : f32
    %261 = vector.broadcast %cst_62 : f32 to vector<8x32xf32>
    %262 = arith.addf %261, %260 : vector<8x32xf32>
    %263 = arith.divf %261, %262 : vector<8x32xf32>
    %264 = vector.extract_strided_slice %232 {offsets = [0, 32], sizes = [8, 32], strides = [1, 1]} : vector<8x128xf32> to vector<8x32xf32>
    %265 = arith.negf %264 : vector<8x32xf32>
    %266 = math.exp %265 : vector<8x32xf32>
    %cst_63 = arith.constant 1.000000e+00 : f32
    %267 = vector.broadcast %cst_63 : f32 to vector<8x32xf32>
    %268 = arith.addf %267, %266 : vector<8x32xf32>
    %269 = arith.divf %267, %268 : vector<8x32xf32>
    %270 = vector.extract_strided_slice %232 {offsets = [0, 64], sizes = [8, 32], strides = [1, 1]} : vector<8x128xf32> to vector<8x32xf32>
    %271 = math.tanh %270 : vector<8x32xf32>
    %272 = vector.extract_strided_slice %232 {offsets = [0, 96], sizes = [8, 32], strides = [1, 1]} : vector<8x128xf32> to vector<8x32xf32>
    %273 = arith.negf %272 : vector<8x32xf32>
    %274 = math.exp %273 : vector<8x32xf32>
    %cst_64 = arith.constant 1.000000e+00 : f32
    %275 = vector.broadcast %cst_64 : f32 to vector<8x32xf32>
    %276 = arith.addf %275, %274 : vector<8x32xf32>
    %277 = arith.divf %275, %276 : vector<8x32xf32>
    %278 = arith.mulf %269, %218 : vector<8x32xf32>
    %279 = arith.mulf %263, %271 : vector<8x32xf32>
    %280 = arith.addf %278, %279 : vector<8x32xf32>
    %281 = math.tanh %280 : vector<8x32xf32>
    %282 = arith.mulf %277, %281 : vector<8x32xf32>
    %c24 = arith.constant 24 : index
    %c0_65 = arith.constant 0 : index
    %283 = vector.load %arg14[%c24, %c0_65] : memref<64x64xf32, #tpu.memory_space<vmem>>, vector<8x32xf32>
    tpu.vector_store %arg14[%c24, %c0_65], %257 {strides = array<i32>} : memref<64x64xf32, #tpu.memory_space<vmem>>, vector<8x32xf32>,
    %c32_66 = arith.constant 32 : index
    %c32_67 = arith.constant 32 : index
    %284 = vector.load %arg14[%c32_66, %c32_67] : memref<64x64xf32, #tpu.memory_space<vmem>>, vector<8x32xf32>
    tpu.vector_store %arg14[%c32_66, %c32_67], %282 {strides = array<i32>} : memref<64x64xf32, #tpu.memory_space<vmem>>, vector<8x32xf32>,
    %285 = vector.extract_strided_slice %28 {offsets = [32, 0], sizes = [8, 128], strides = [1, 1]} : vector<64x256xf32> to vector<8x128xf32>
    %cst_68 = arith.constant dense<0.000000e+00> : vector<8x128xf32>
    %286 = tpu.matmul %257, %29, %cst_68 {dimension_numbers = #tpu.dot_dimension_numbers<[1], [0], [0], [1], [0, 0, 1, 1], [], []>} : vector<8x32xf32>, vector<32x128xf32>, vector<8x128xf32> -> vector<8x128xf32>
    %287 = arith.addf %285, %286 : vector<8x128xf32>
    %288 = vector.broadcast %31 : vector<1x128xf32> to vector<8x128xf32>
    %289 = arith.addf %287, %288 : vector<8x128xf32>
    %290 = vector.extract_strided_slice %28 {offsets = [24, 128], sizes = [8, 128], strides = [1, 1]} : vector<64x256xf32> to vector<8x128xf32>
    %cst_69 = arith.constant dense<0.000000e+00> : vector<8x128xf32>
    %291 = tpu.matmul %282, %30, %cst_69 {dimension_numbers = #tpu.dot_dimension_numbers<[1], [0], [0], [1], [0, 0, 1, 1], [], []>} : vector<8x32xf32>, vector<32x128xf32>, vector<8x128xf32> -> vector<8x128xf32>
    %292 = arith.addf %290, %291 : vector<8x128xf32>
    %293 = vector.broadcast %32 : vector<1x128xf32> to vector<8x128xf32>
    %294 = arith.addf %292, %293 : vector<8x128xf32>
    %295 = vector.extract_strided_slice %289 {offsets = [0, 0], sizes = [8, 32], strides = [1, 1]} : vector<8x128xf32> to vector<8x32xf32>
    %296 = arith.negf %295 : vector<8x32xf32>
    %297 = math.exp %296 : vector<8x32xf32>
    %cst_70 = arith.constant 1.000000e+00 : f32
    %298 = vector.broadcast %cst_70 : f32 to vector<8x32xf32>
    %299 = arith.addf %298, %297 : vector<8x32xf32>
    %300 = arith.divf %298, %299 : vector<8x32xf32>
    %301 = vector.extract_strided_slice %289 {offsets = [0, 32], sizes = [8, 32], strides = [1, 1]} : vector<8x128xf32> to vector<8x32xf32>
    %302 = arith.negf %301 : vector<8x32xf32>
    %303 = math.exp %302 : vector<8x32xf32>
    %cst_71 = arith.constant 1.000000e+00 : f32
    %304 = vector.broadcast %cst_71 : f32 to vector<8x32xf32>
    %305 = arith.addf %304, %303 : vector<8x32xf32>
    %306 = arith.divf %304, %305 : vector<8x32xf32>
    %307 = vector.extract_strided_slice %289 {offsets = [0, 64], sizes = [8, 32], strides = [1, 1]} : vector<8x128xf32> to vector<8x32xf32>
    %308 = math.tanh %307 : vector<8x32xf32>
    %309 = vector.extract_strided_slice %289 {offsets = [0, 96], sizes = [8, 32], strides = [1, 1]} : vector<8x128xf32> to vector<8x32xf32>
    %310 = arith.negf %309 : vector<8x32xf32>
    %311 = math.exp %310 : vector<8x32xf32>
    %cst_72 = arith.constant 1.000000e+00 : f32
    %312 = vector.broadcast %cst_72 : f32 to vector<8x32xf32>
    %313 = arith.addf %312, %311 : vector<8x32xf32>
    %314 = arith.divf %312, %313 : vector<8x32xf32>
    %315 = arith.mulf %306, %255 : vector<8x32xf32>
    %316 = arith.mulf %300, %308 : vector<8x32xf32>
    %317 = arith.addf %315, %316 : vector<8x32xf32>
    %318 = math.tanh %317 : vector<8x32xf32>
    %319 = arith.mulf %314, %318 : vector<8x32xf32>
    %320 = vector.extract_strided_slice %294 {offsets = [0, 0], sizes = [8, 32], strides = [1, 1]} : vector<8x128xf32> to vector<8x32xf32>
    %321 = arith.negf %320 : vector<8x32xf32>
    %322 = math.exp %321 : vector<8x32xf32>
    %cst_73 = arith.constant 1.000000e+00 : f32
    %323 = vector.broadcast %cst_73 : f32 to vector<8x32xf32>
    %324 = arith.addf %323, %322 : vector<8x32xf32>
    %325 = arith.divf %323, %324 : vector<8x32xf32>
    %326 = vector.extract_strided_slice %294 {offsets = [0, 32], sizes = [8, 32], strides = [1, 1]} : vector<8x128xf32> to vector<8x32xf32>
    %327 = arith.negf %326 : vector<8x32xf32>
    %328 = math.exp %327 : vector<8x32xf32>
    %cst_74 = arith.constant 1.000000e+00 : f32
    %329 = vector.broadcast %cst_74 : f32 to vector<8x32xf32>
    %330 = arith.addf %329, %328 : vector<8x32xf32>
    %331 = arith.divf %329, %330 : vector<8x32xf32>
    %332 = vector.extract_strided_slice %294 {offsets = [0, 64], sizes = [8, 32], strides = [1, 1]} : vector<8x128xf32> to vector<8x32xf32>
    %333 = math.tanh %332 : vector<8x32xf32>
    %334 = vector.extract_strided_slice %294 {offsets = [0, 96], sizes = [8, 32], strides = [1, 1]} : vector<8x128xf32> to vector<8x32xf32>
    %335 = arith.negf %334 : vector<8x32xf32>
    %336 = math.exp %335 : vector<8x32xf32>
    %cst_75 = arith.constant 1.000000e+00 : f32
    %337 = vector.broadcast %cst_75 : f32 to vector<8x32xf32>
    %338 = arith.addf %337, %336 : vector<8x32xf32>
    %339 = arith.divf %337, %338 : vector<8x32xf32>
    %340 = arith.mulf %331, %280 : vector<8x32xf32>
    %341 = arith.mulf %325, %333 : vector<8x32xf32>
    %342 = arith.addf %340, %341 : vector<8x32xf32>
    %343 = math.tanh %342 : vector<8x32xf32>
    %344 = arith.mulf %339, %343 : vector<8x32xf32>
    %c32_76 = arith.constant 32 : index
    %c0_77 = arith.constant 0 : index
    %345 = vector.load %arg14[%c32_76, %c0_77] : memref<64x64xf32, #tpu.memory_space<vmem>>, vector<8x32xf32>
    tpu.vector_store %arg14[%c32_76, %c0_77], %319 {strides = array<i32>} : memref<64x64xf32, #tpu.memory_space<vmem>>, vector<8x32xf32>,
    %c24_78 = arith.constant 24 : index
    %c32_79 = arith.constant 32 : index
    %346 = vector.load %arg14[%c24_78, %c32_79] : memref<64x64xf32, #tpu.memory_space<vmem>>, vector<8x32xf32>
    tpu.vector_store %arg14[%c24_78, %c32_79], %344 {strides = array<i32>} : memref<64x64xf32, #tpu.memory_space<vmem>>, vector<8x32xf32>,
    %347 = vector.extract_strided_slice %28 {offsets = [40, 0], sizes = [8, 128], strides = [1, 1]} : vector<64x256xf32> to vector<8x128xf32>
    %cst_80 = arith.constant dense<0.000000e+00> : vector<8x128xf32>
    %348 = tpu.matmul %319, %29, %cst_80 {dimension_numbers = #tpu.dot_dimension_numbers<[1], [0], [0], [1], [0, 0, 1, 1], [], []>} : vector<8x32xf32>, vector<32x128xf32>, vector<8x128xf32> -> vector<8x128xf32>
    %349 = arith.addf %347, %348 : vector<8x128xf32>
    %350 = vector.broadcast %31 : vector<1x128xf32> to vector<8x128xf32>
    %351 = arith.addf %349, %350 : vector<8x128xf32>
    %352 = vector.extract_strided_slice %28 {offsets = [16, 128], sizes = [8, 128], strides = [1, 1]} : vector<64x256xf32> to vector<8x128xf32>
    %cst_81 = arith.constant dense<0.000000e+00> : vector<8x128xf32>
    %353 = tpu.matmul %344, %30, %cst_81 {dimension_numbers = #tpu.dot_dimension_numbers<[1], [0], [0], [1], [0, 0, 1, 1], [], []>} : vector<8x32xf32>, vector<32x128xf32>, vector<8x128xf32> -> vector<8x128xf32>
    %354 = arith.addf %352, %353 : vector<8x128xf32>
    %355 = vector.broadcast %32 : vector<1x128xf32> to vector<8x128xf32>
    %356 = arith.addf %354, %355 : vector<8x128xf32>
    %357 = vector.extract_strided_slice %351 {offsets = [0, 0], sizes = [8, 32], strides = [1, 1]} : vector<8x128xf32> to vector<8x32xf32>
    %358 = arith.negf %357 : vector<8x32xf32>
    %359 = math.exp %358 : vector<8x32xf32>
    %cst_82 = arith.constant 1.000000e+00 : f32
    %360 = vector.broadcast %cst_82 : f32 to vector<8x32xf32>
    %361 = arith.addf %360, %359 : vector<8x32xf32>
    %362 = arith.divf %360, %361 : vector<8x32xf32>
    %363 = vector.extract_strided_slice %351 {offsets = [0, 32], sizes = [8, 32], strides = [1, 1]} : vector<8x128xf32> to vector<8x32xf32>
    %364 = arith.negf %363 : vector<8x32xf32>
    %365 = math.exp %364 : vector<8x32xf32>
    %cst_83 = arith.constant 1.000000e+00 : f32
    %366 = vector.broadcast %cst_83 : f32 to vector<8x32xf32>
    %367 = arith.addf %366, %365 : vector<8x32xf32>
    %368 = arith.divf %366, %367 : vector<8x32xf32>
    %369 = vector.extract_strided_slice %351 {offsets = [0, 64], sizes = [8, 32], strides = [1, 1]} : vector<8x128xf32> to vector<8x32xf32>
    %370 = math.tanh %369 : vector<8x32xf32>
    %371 = vector.extract_strided_slice %351 {offsets = [0, 96], sizes = [8, 32], strides = [1, 1]} : vector<8x128xf32> to vector<8x32xf32>
    %372 = arith.negf %371 : vector<8x32xf32>
    %373 = math.exp %372 : vector<8x32xf32>
    %cst_84 = arith.constant 1.000000e+00 : f32
    %374 = vector.broadcast %cst_84 : f32 to vector<8x32xf32>
    %375 = arith.addf %374, %373 : vector<8x32xf32>
    %376 = arith.divf %374, %375 : vector<8x32xf32>
    %377 = arith.mulf %368, %317 : vector<8x32xf32>
    %378 = arith.mulf %362, %370 : vector<8x32xf32>
    %379 = arith.addf %377, %378 : vector<8x32xf32>
    %380 = math.tanh %379 : vector<8x32xf32>
    %381 = arith.mulf %376, %380 : vector<8x32xf32>
    %382 = vector.extract_strided_slice %356 {offsets = [0, 0], sizes = [8, 32], strides = [1, 1]} : vector<8x128xf32> to vector<8x32xf32>
    %383 = arith.negf %382 : vector<8x32xf32>
    %384 = math.exp %383 : vector<8x32xf32>
    %cst_85 = arith.constant 1.000000e+00 : f32
    %385 = vector.broadcast %cst_85 : f32 to vector<8x32xf32>
    %386 = arith.addf %385, %384 : vector<8x32xf32>
    %387 = arith.divf %385, %386 : vector<8x32xf32>
    %388 = vector.extract_strided_slice %356 {offsets = [0, 32], sizes = [8, 32], strides = [1, 1]} : vector<8x128xf32> to vector<8x32xf32>
    %389 = arith.negf %388 : vector<8x32xf32>
    %390 = math.exp %389 : vector<8x32xf32>
    %cst_86 = arith.constant 1.000000e+00 : f32
    %391 = vector.broadcast %cst_86 : f32 to vector<8x32xf32>
    %392 = arith.addf %391, %390 : vector<8x32xf32>
    %393 = arith.divf %391, %392 : vector<8x32xf32>
    %394 = vector.extract_strided_slice %356 {offsets = [0, 64], sizes = [8, 32], strides = [1, 1]} : vector<8x128xf32> to vector<8x32xf32>
    %395 = math.tanh %394 : vector<8x32xf32>
    %396 = vector.extract_strided_slice %356 {offsets = [0, 96], sizes = [8, 32], strides = [1, 1]} : vector<8x128xf32> to vector<8x32xf32>
    %397 = arith.negf %396 : vector<8x32xf32>
    %398 = math.exp %397 : vector<8x32xf32>
    %cst_87 = arith.constant 1.000000e+00 : f32
    %399 = vector.broadcast %cst_87 : f32 to vector<8x32xf32>
    %400 = arith.addf %399, %398 : vector<8x32xf32>
    %401 = arith.divf %399, %400 : vector<8x32xf32>
    %402 = arith.mulf %393, %342 : vector<8x32xf32>
    %403 = arith.mulf %387, %395 : vector<8x32xf32>
    %404 = arith.addf %402, %403 : vector<8x32xf32>
    %405 = math.tanh %404 : vector<8x32xf32>
    %406 = arith.mulf %401, %405 : vector<8x32xf32>
    %c40_88 = arith.constant 40 : index
    %c0_89 = arith.constant 0 : index
    %407 = vector.load %arg14[%c40_88, %c0_89] : memref<64x64xf32, #tpu.memory_space<vmem>>, vector<8x32xf32>
    tpu.vector_store %arg14[%c40_88, %c0_89], %381 {strides = array<i32>} : memref<64x64xf32, #tpu.memory_space<vmem>>, vector<8x32xf32>,
    %c16_90 = arith.constant 16 : index
    %c32_91 = arith.constant 32 : index
    %408 = vector.load %arg14[%c16_90, %c32_91] : memref<64x64xf32, #tpu.memory_space<vmem>>, vector<8x32xf32>
    tpu.vector_store %arg14[%c16_90, %c32_91], %406 {strides = array<i32>} : memref<64x64xf32, #tpu.memory_space<vmem>>, vector<8x32xf32>,
    %409 = vector.extract_strided_slice %28 {offsets = [48, 0], sizes = [8, 128], strides = [1, 1]} : vector<64x256xf32> to vector<8x128xf32>
    %cst_92 = arith.constant dense<0.000000e+00> : vector<8x128xf32>
    %410 = tpu.matmul %381, %29, %cst_92 {dimension_numbers = #tpu.dot_dimension_numbers<[1], [0], [0], [1], [0, 0, 1, 1], [], []>} : vector<8x32xf32>, vector<32x128xf32>, vector<8x128xf32> -> vector<8x128xf32>
    %411 = arith.addf %409, %410 : vector<8x128xf32>
    %412 = vector.broadcast %31 : vector<1x128xf32> to vector<8x128xf32>
    %413 = arith.addf %411, %412 : vector<8x128xf32>
    %414 = vector.extract_strided_slice %28 {offsets = [8, 128], sizes = [8, 128], strides = [1, 1]} : vector<64x256xf32> to vector<8x128xf32>
    %cst_93 = arith.constant dense<0.000000e+00> : vector<8x128xf32>
    %415 = tpu.matmul %406, %30, %cst_93 {dimension_numbers = #tpu.dot_dimension_numbers<[1], [0], [0], [1], [0, 0, 1, 1], [], []>} : vector<8x32xf32>, vector<32x128xf32>, vector<8x128xf32> -> vector<8x128xf32>
    %416 = arith.addf %414, %415 : vector<8x128xf32>
    %417 = vector.broadcast %32 : vector<1x128xf32> to vector<8x128xf32>
    %418 = arith.addf %416, %417 : vector<8x128xf32>
    %419 = vector.extract_strided_slice %413 {offsets = [0, 0], sizes = [8, 32], strides = [1, 1]} : vector<8x128xf32> to vector<8x32xf32>
    %420 = arith.negf %419 : vector<8x32xf32>
    %421 = math.exp %420 : vector<8x32xf32>
    %cst_94 = arith.constant 1.000000e+00 : f32
    %422 = vector.broadcast %cst_94 : f32 to vector<8x32xf32>
    %423 = arith.addf %422, %421 : vector<8x32xf32>
    %424 = arith.divf %422, %423 : vector<8x32xf32>
    %425 = vector.extract_strided_slice %413 {offsets = [0, 32], sizes = [8, 32], strides = [1, 1]} : vector<8x128xf32> to vector<8x32xf32>
    %426 = arith.negf %425 : vector<8x32xf32>
    %427 = math.exp %426 : vector<8x32xf32>
    %cst_95 = arith.constant 1.000000e+00 : f32
    %428 = vector.broadcast %cst_95 : f32 to vector<8x32xf32>
    %429 = arith.addf %428, %427 : vector<8x32xf32>
    %430 = arith.divf %428, %429 : vector<8x32xf32>
    %431 = vector.extract_strided_slice %413 {offsets = [0, 64], sizes = [8, 32], strides = [1, 1]} : vector<8x128xf32> to vector<8x32xf32>
    %432 = math.tanh %431 : vector<8x32xf32>
    %433 = vector.extract_strided_slice %413 {offsets = [0, 96], sizes = [8, 32], strides = [1, 1]} : vector<8x128xf32> to vector<8x32xf32>
    %434 = arith.negf %433 : vector<8x32xf32>
    %435 = math.exp %434 : vector<8x32xf32>
    %cst_96 = arith.constant 1.000000e+00 : f32
    %436 = vector.broadcast %cst_96 : f32 to vector<8x32xf32>
    %437 = arith.addf %436, %435 : vector<8x32xf32>
    %438 = arith.divf %436, %437 : vector<8x32xf32>
    %439 = arith.mulf %430, %379 : vector<8x32xf32>
    %440 = arith.mulf %424, %432 : vector<8x32xf32>
    %441 = arith.addf %439, %440 : vector<8x32xf32>
    %442 = math.tanh %441 : vector<8x32xf32>
    %443 = arith.mulf %438, %442 : vector<8x32xf32>
    %444 = vector.extract_strided_slice %418 {offsets = [0, 0], sizes = [8, 32], strides = [1, 1]} : vector<8x128xf32> to vector<8x32xf32>
    %445 = arith.negf %444 : vector<8x32xf32>
    %446 = math.exp %445 : vector<8x32xf32>
    %cst_97 = arith.constant 1.000000e+00 : f32
    %447 = vector.broadcast %cst_97 : f32 to vector<8x32xf32>
    %448 = arith.addf %447, %446 : vector<8x32xf32>
    %449 = arith.divf %447, %448 : vector<8x32xf32>
    %450 = vector.extract_strided_slice %418 {offsets = [0, 32], sizes = [8, 32], strides = [1, 1]} : vector<8x128xf32> to vector<8x32xf32>
    %451 = arith.negf %450 : vector<8x32xf32>
    %452 = math.exp %451 : vector<8x32xf32>
    %cst_98 = arith.constant 1.000000e+00 : f32
    %453 = vector.broadcast %cst_98 : f32 to vector<8x32xf32>
    %454 = arith.addf %453, %452 : vector<8x32xf32>
    %455 = arith.divf %453, %454 : vector<8x32xf32>
    %456 = vector.extract_strided_slice %418 {offsets = [0, 64], sizes = [8, 32], strides = [1, 1]} : vector<8x128xf32> to vector<8x32xf32>
    %457 = math.tanh %456 : vector<8x32xf32>
    %458 = vector.extract_strided_slice %418 {offsets = [0, 96], sizes = [8, 32], strides = [1, 1]} : vector<8x128xf32> to vector<8x32xf32>
    %459 = arith.negf %458 : vector<8x32xf32>
    %460 = math.exp %459 : vector<8x32xf32>
    %cst_99 = arith.constant 1.000000e+00 : f32
    %461 = vector.broadcast %cst_99 : f32 to vector<8x32xf32>
    %462 = arith.addf %461, %460 : vector<8x32xf32>
    %463 = arith.divf %461, %462 : vector<8x32xf32>
    %464 = arith.mulf %455, %404 : vector<8x32xf32>
    %465 = arith.mulf %449, %457 : vector<8x32xf32>
    %466 = arith.addf %464, %465 : vector<8x32xf32>
    %467 = math.tanh %466 : vector<8x32xf32>
    %468 = arith.mulf %463, %467 : vector<8x32xf32>
    %c48_100 = arith.constant 48 : index
    %c0_101 = arith.constant 0 : index
    %469 = vector.load %arg14[%c48_100, %c0_101] : memref<64x64xf32, #tpu.memory_space<vmem>>, vector<8x32xf32>
    tpu.vector_store %arg14[%c48_100, %c0_101], %443 {strides = array<i32>} : memref<64x64xf32, #tpu.memory_space<vmem>>, vector<8x32xf32>,
    %c8_102 = arith.constant 8 : index
    %c32_103 = arith.constant 32 : index
    %470 = vector.load %arg14[%c8_102, %c32_103] : memref<64x64xf32, #tpu.memory_space<vmem>>, vector<8x32xf32>
    tpu.vector_store %arg14[%c8_102, %c32_103], %468 {strides = array<i32>} : memref<64x64xf32, #tpu.memory_space<vmem>>, vector<8x32xf32>,
    %471 = vector.extract_strided_slice %28 {offsets = [56, 0], sizes = [8, 128], strides = [1, 1]} : vector<64x256xf32> to vector<8x128xf32>
    %cst_104 = arith.constant dense<0.000000e+00> : vector<8x128xf32>
    %472 = tpu.matmul %443, %29, %cst_104 {dimension_numbers = #tpu.dot_dimension_numbers<[1], [0], [0], [1], [0, 0, 1, 1], [], []>} : vector<8x32xf32>, vector<32x128xf32>, vector<8x128xf32> -> vector<8x128xf32>
    %473 = arith.addf %471, %472 : vector<8x128xf32>
    %474 = vector.broadcast %31 : vector<1x128xf32> to vector<8x128xf32>
    %475 = arith.addf %473, %474 : vector<8x128xf32>
    %476 = vector.extract_strided_slice %28 {offsets = [0, 128], sizes = [8, 128], strides = [1, 1]} : vector<64x256xf32> to vector<8x128xf32>
    %cst_105 = arith.constant dense<0.000000e+00> : vector<8x128xf32>
    %477 = tpu.matmul %468, %30, %cst_105 {dimension_numbers = #tpu.dot_dimension_numbers<[1], [0], [0], [1], [0, 0, 1, 1], [], []>} : vector<8x32xf32>, vector<32x128xf32>, vector<8x128xf32> -> vector<8x128xf32>
    %478 = arith.addf %476, %477 : vector<8x128xf32>
    %479 = vector.broadcast %32 : vector<1x128xf32> to vector<8x128xf32>
    %480 = arith.addf %478, %479 : vector<8x128xf32>
    %481 = vector.extract_strided_slice %475 {offsets = [0, 0], sizes = [8, 32], strides = [1, 1]} : vector<8x128xf32> to vector<8x32xf32>
    %482 = arith.negf %481 : vector<8x32xf32>
    %483 = math.exp %482 : vector<8x32xf32>
    %cst_106 = arith.constant 1.000000e+00 : f32
    %484 = vector.broadcast %cst_106 : f32 to vector<8x32xf32>
    %485 = arith.addf %484, %483 : vector<8x32xf32>
    %486 = arith.divf %484, %485 : vector<8x32xf32>
    %487 = vector.extract_strided_slice %475 {offsets = [0, 32], sizes = [8, 32], strides = [1, 1]} : vector<8x128xf32> to vector<8x32xf32>
    %488 = arith.negf %487 : vector<8x32xf32>
    %489 = math.exp %488 : vector<8x32xf32>
    %cst_107 = arith.constant 1.000000e+00 : f32
    %490 = vector.broadcast %cst_107 : f32 to vector<8x32xf32>
    %491 = arith.addf %490, %489 : vector<8x32xf32>
    %492 = arith.divf %490, %491 : vector<8x32xf32>
    %493 = vector.extract_strided_slice %475 {offsets = [0, 64], sizes = [8, 32], strides = [1, 1]} : vector<8x128xf32> to vector<8x32xf32>
    %494 = math.tanh %493 : vector<8x32xf32>
    %495 = vector.extract_strided_slice %475 {offsets = [0, 96], sizes = [8, 32], strides = [1, 1]} : vector<8x128xf32> to vector<8x32xf32>
    %496 = arith.negf %495 : vector<8x32xf32>
    %497 = math.exp %496 : vector<8x32xf32>
    %cst_108 = arith.constant 1.000000e+00 : f32
    %498 = vector.broadcast %cst_108 : f32 to vector<8x32xf32>
    %499 = arith.addf %498, %497 : vector<8x32xf32>
    %500 = arith.divf %498, %499 : vector<8x32xf32>
    %501 = arith.mulf %492, %441 : vector<8x32xf32>
    %502 = arith.mulf %486, %494 : vector<8x32xf32>
    %503 = arith.addf %501, %502 : vector<8x32xf32>
    %504 = math.tanh %503 : vector<8x32xf32>
    %505 = arith.mulf %500, %504 : vector<8x32xf32>
    %506 = vector.extract_strided_slice %480 {offsets = [0, 0], sizes = [8, 32], strides = [1, 1]} : vector<8x128xf32> to vector<8x32xf32>
    %507 = arith.negf %506 : vector<8x32xf32>
    %508 = math.exp %507 : vector<8x32xf32>
    %cst_109 = arith.constant 1.000000e+00 : f32
    %509 = vector.broadcast %cst_109 : f32 to vector<8x32xf32>
    %510 = arith.addf %509, %508 : vector<8x32xf32>
    %511 = arith.divf %509, %510 : vector<8x32xf32>
    %512 = vector.extract_strided_slice %480 {offsets = [0, 32], sizes = [8, 32], strides = [1, 1]} : vector<8x128xf32> to vector<8x32xf32>
    %513 = arith.negf %512 : vector<8x32xf32>
    %514 = math.exp %513 : vector<8x32xf32>
    %cst_110 = arith.constant 1.000000e+00 : f32
    %515 = vector.broadcast %cst_110 : f32 to vector<8x32xf32>
    %516 = arith.addf %515, %514 : vector<8x32xf32>
    %517 = arith.divf %515, %516 : vector<8x32xf32>
    %518 = vector.extract_strided_slice %480 {offsets = [0, 64], sizes = [8, 32], strides = [1, 1]} : vector<8x128xf32> to vector<8x32xf32>
    %519 = math.tanh %518 : vector<8x32xf32>
    %520 = vector.extract_strided_slice %480 {offsets = [0, 96], sizes = [8, 32], strides = [1, 1]} : vector<8x128xf32> to vector<8x32xf32>
    %521 = arith.negf %520 : vector<8x32xf32>
    %522 = math.exp %521 : vector<8x32xf32>
    %cst_111 = arith.constant 1.000000e+00 : f32
    %523 = vector.broadcast %cst_111 : f32 to vector<8x32xf32>
    %524 = arith.addf %523, %522 : vector<8x32xf32>
    %525 = arith.divf %523, %524 : vector<8x32xf32>
    %526 = arith.mulf %517, %466 : vector<8x32xf32>
    %527 = arith.mulf %511, %519 : vector<8x32xf32>
    %528 = arith.addf %526, %527 : vector<8x32xf32>
    %529 = math.tanh %528 : vector<8x32xf32>
    %530 = arith.mulf %525, %529 : vector<8x32xf32>
    %c56_112 = arith.constant 56 : index
    %c0_113 = arith.constant 0 : index
    %531 = vector.load %arg14[%c56_112, %c0_113] : memref<64x64xf32, #tpu.memory_space<vmem>>, vector<8x32xf32>
    tpu.vector_store %arg14[%c56_112, %c0_113], %505 {strides = array<i32>} : memref<64x64xf32, #tpu.memory_space<vmem>>, vector<8x32xf32>,
    %c0_114 = arith.constant 0 : index
    %c32_115 = arith.constant 32 : index
    %532 = vector.load %arg14[%c0_114, %c32_115] : memref<64x64xf32, #tpu.memory_space<vmem>>, vector<8x32xf32>
    tpu.vector_store %arg14[%c0_114, %c32_115], %530 {strides = array<i32>} : memref<64x64xf32, #tpu.memory_space<vmem>>, vector<8x32xf32>,
    %c0_116 = arith.constant 0 : index
    %c0_117 = arith.constant 0 : index
    %c0_118 = arith.constant 0 : index
    %533 = vector.load %arg12[%c0_116, %c0_117, %c0_118] : memref<2x8x32xf32, #tpu.memory_space<vmem>>, vector<1x8x32xf32>
    %534 = vector.shape_cast %533 : vector<1x8x32xf32> to vector<8x32xf32>
    %535 = vector.shape_cast %505 : vector<8x32xf32> to vector<1x8x32xf32>
    tpu.vector_store %arg12[%c0_116, %c0_117, %c0_118], %535 {strides = array<i32>} : memref<2x8x32xf32, #tpu.memory_space<vmem>>, vector<1x8x32xf32>,
    %c1 = arith.constant 1 : index
    %c0_119 = arith.constant 0 : index
    %c0_120 = arith.constant 0 : index
    %536 = vector.load %arg12[%c1, %c0_119, %c0_120] : memref<2x8x32xf32, #tpu.memory_space<vmem>>, vector<1x8x32xf32>
    %537 = vector.shape_cast %536 : vector<1x8x32xf32> to vector<8x32xf32>
    %538 = vector.shape_cast %530 : vector<8x32xf32> to vector<1x8x32xf32>
    tpu.vector_store %arg12[%c1, %c0_119, %c0_120], %538 {strides = array<i32>} : memref<2x8x32xf32, #tpu.memory_space<vmem>>, vector<1x8x32xf32>,
    %c0_121 = arith.constant 0 : index
    %c0_122 = arith.constant 0 : index
    %c0_123 = arith.constant 0 : index
    %539 = vector.load %arg13[%c0_121, %c0_122, %c0_123] : memref<2x8x32xf32, #tpu.memory_space<vmem>>, vector<1x8x32xf32>
    %540 = vector.shape_cast %539 : vector<1x8x32xf32> to vector<8x32xf32>
    %541 = vector.shape_cast %503 : vector<8x32xf32> to vector<1x8x32xf32>
    tpu.vector_store %arg13[%c0_121, %c0_122, %c0_123], %541 {strides = array<i32>} : memref<2x8x32xf32, #tpu.memory_space<vmem>>, vector<1x8x32xf32>,
    %c1_124 = arith.constant 1 : index
    %c0_125 = arith.constant 0 : index
    %c0_126 = arith.constant 0 : index
    %542 = vector.load %arg13[%c1_124, %c0_125, %c0_126] : memref<2x8x32xf32, #tpu.memory_space<vmem>>, vector<1x8x32xf32>
    %543 = vector.shape_cast %542 : vector<1x8x32xf32> to vector<8x32xf32>
    %544 = vector.shape_cast %528 : vector<8x32xf32> to vector<1x8x32xf32>
    tpu.vector_store %arg13[%c1_124, %c0_125, %c0_126], %544 {strides = array<i32>} : memref<2x8x32xf32, #tpu.memory_space<vmem>>, vector<1x8x32xf32>,
    %c0_127 = arith.constant 0 : index
    %c0_128 = arith.constant 0 : index
    %545 = vector.load %arg14[%c0_127, %c0_128] : memref<64x64xf32, #tpu.memory_space<vmem>>, vector<64x64xf32>
    %cst_129 = arith.constant dense<0.000000e+00> : vector<64xf32>
    %546 = vector.multi_reduction <add>, %545, %cst_129 [0] : vector<64x64xf32> to vector<64xf32>
    %547 = vector.shape_cast %546 : vector<64xf32> to vector<1x64xf32>
    %cst_130 = arith.constant 6.400000e+01 : f32
    %548 = vector.broadcast %cst_130 : f32 to vector<1x64xf32>
    %549 = arith.divf %547, %548 : vector<1x64xf32>
    %550 = arith.mulf %545, %545 : vector<64x64xf32>
    %cst_131 = arith.constant dense<0.000000e+00> : vector<64xf32>
    %551 = vector.multi_reduction <add>, %550, %cst_131 [0] : vector<64x64xf32> to vector<64xf32>
    %552 = vector.shape_cast %551 : vector<64xf32> to vector<1x64xf32>
    %cst_132 = arith.constant 6.400000e+01 : f32
    %553 = vector.broadcast %cst_132 : f32 to vector<1x64xf32>
    %554 = arith.divf %552, %553 : vector<1x64xf32>
    %555 = arith.mulf %549, %549 : vector<1x64xf32>
    %556 = arith.subf %554, %555 : vector<1x64xf32>
    %557 = vector.broadcast %549 : vector<1x64xf32> to vector<64x64xf32>
    %558 = arith.subf %545, %557 : vector<64x64xf32>
    %cst_133 = arith.constant 9.99999974E-6 : f32
    %559 = vector.broadcast %cst_133 : f32 to vector<1x64xf32>
    %560 = arith.addf %556, %559 : vector<1x64xf32>
    %561 = math.rsqrt %560 : vector<1x64xf32>
    %562 = vector.broadcast %561 : vector<1x64xf32> to vector<64x64xf32>
    %563 = arith.mulf %558, %562 : vector<64x64xf32>
    %c0_134 = arith.constant 0 : index
    %c0_135 = arith.constant 0 : index
    %564 = vector.load %arg6[%c0_134, %c0_135] : memref<1x64xf32, #tpu.memory_space<vmem>>, vector<1x64xf32>
    %565 = vector.broadcast %564 : vector<1x64xf32> to vector<64x64xf32>
    %566 = arith.mulf %563, %565 : vector<64x64xf32>
    %c0_136 = arith.constant 0 : index
    %c0_137 = arith.constant 0 : index
    %567 = vector.load %arg7[%c0_136, %c0_137] : memref<1x64xf32, #tpu.memory_space<vmem>>, vector<1x64xf32>
    %568 = vector.broadcast %567 : vector<1x64xf32> to vector<64x64xf32>
    %569 = arith.addf %566, %568 : vector<64x64xf32>
    %570 = arith.addf %569, %26 : vector<64x64xf32>
    %571 = math.tanh %570 : vector<64x64xf32>
    %c0_138 = arith.constant 0 : index
    %c0_139 = arith.constant 0 : index
    %572 = vector.load %arg11[%c0_138, %c0_139] : memref<64x64xf32, #tpu.memory_space<vmem>>, vector<64x64xf32>
    tpu.vector_store %arg11[%c0_138, %c0_139], %571 {strides = array<i32>} : memref<64x64xf32, #tpu.memory_space<vmem>>, vector<64x64xf32>,
    return
  }
}

</mosaic_0001>

<llo_original>
// kernel: tpu_custom_call.1
$region0: #{tpu_custom_call.1}
  #allocation0 [shape = 'u32[]', space=smem, size = 0x4, offset = 0x4, fixed_abs, tag = 'smem constant byte address 0x4 - core index']
  #allocation1 [shape = 'u32[144,128]{1,0:T(1,128)}', space=vmem, size = 0x12000, scoped, tag = 'internal scratch']
  #allocation2 [shape = 'f32[64,64]{1,0:T(8,128)}', space=vmem, size = 0x8000, scoped, tag = 'scratch operand']
  %s0 = inlined_call_operand.vmem [shape: f32[64,32], index: 0, kind: input, shape index: {}]
  %s1 = inlined_call_operand.vmem [shape: f32[32,256], index: 1, kind: input, shape index: {}]
  %s2 = inlined_call_operand.vmem [shape: f32[32,128], index: 2, kind: input, shape index: {}]
  %s3 = inlined_call_operand.hbm [shape: f32[32,128], index: 3, kind: input, shape index: {}]
  %s4 = inlined_call_operand.vmem [shape: f32[1,128], index: 4, kind: input, shape index: {}]
  %s5 = inlined_call_operand.vmem [shape: f32[1,128], index: 5, kind: input, shape index: {}]
  %s6 = inlined_call_operand.vmem [shape: f32[1,64], index: 6, kind: input, shape index: {}]
  %s7 = inlined_call_operand.vmem [shape: f32[1,64], index: 7, kind: input, shape index: {}]
  %s8 = inlined_call_operand.hbm [shape: f32[32,64], index: 8, kind: input, shape index: {}]
  %s9 = inlined_call_operand.vmem [shape: f32[1,64], index: 9, kind: input, shape index: {}]
  %s10 = inlined_call_operand.vmem [shape: f32[1,64], index: 10, kind: input, shape index: {}]
  %s11 = inlined_call_operand.hbm [shape: f32[64,64], index: 11, kind: output, shape index: {0}]
  %s12 = inlined_call_operand.hbm [shape: f32[2,8,32], index: 12, kind: output, shape index: {1}]
  %s13 = inlined_call_operand.hbm [shape: f32[2,8,32], index: 13, kind: output, shape index: {2}]
  %14 = xla_tuple %s11, %s12, %s13
  %s15 = sld [smem:[#allocation0]]
  $region78: #{tpu_custom_call.1} parent=0
    _
  %s17 = ssub.s32 1, %s15
  %s18 = scalar_select 0, %s17, %s15
  $region1: #{tpu_custom_call.1} parent=0
    #allocation3 [shape = 'u8[16384]{0}', space=vmem, size = 0x4000, scoped, tag = 'input window, operand 3, single buffered']
    #allocation4 [shape = 's32[1]{0}', space=sflag, size = 0x4, scoped, tag = 'scoped memory for tpu_custom_call.1']
    #allocation5 [shape = 's32[1]{0}', space=sflag, size = 0x4, scoped, tag = 'scoped memory for tpu_custom_call.1']
    #allocation6 [shape = 'u8[16384]{0}', space=vmem, size = 0x4000, scoped, tag = 'input window, operand 8, single buffered']
    #allocation7 [shape = 's32[1]{0}', space=sflag, size = 0x4, scoped, tag = 'scoped memory for tpu_custom_call.1']
    #allocation8 [shape = 'u8[32768]{0}', space=vmem, size = 0x8000, scoped, tag = 'output window, operand 0, single buffered']
    #allocation9 [shape = 'u8[8192]{0}', space=vmem, size = 0x2000, scoped, tag = 'output window, operand 1, single buffered']
    #allocation10 [shape = 's32[1]{0}', space=sflag, size = 0x4, scoped, tag = 'scoped memory for tpu_custom_call.1']
    #allocation11 [shape = 'u8[8192]{0}', space=vmem, size = 0x2000, scoped, tag = 'output window, operand 2, single buffered']
    %19 = vsyncpa [#allocation4], 0
    %20 = vsyncpa [#allocation7], 0
    %21 = vsyncpa [#allocation5], 0
    %22 = vsyncpa [#allocation10], 0
    // Predicated region
    $region2: #{tpu_custom_call.1} parent=1 // pred_check
      _
    $region3: #{tpu_custom_call.1} parent=1 // pred_check_branch
      %24 = sbr.rel (0) target = $region5
    $region4: #{tpu_custom_call.1} parent=1 // pred_region
      _
    $region5: #{tpu_custom_call.1} parent=1 // pred_fallthru
      _
    // Predicated region
    $region6: #{tpu_custom_call.1} parent=1 // pred_check
      _
    $region7: #{tpu_custom_call.1} parent=1 // pred_check_branch
      %26 = sbr.rel (0) target = $region9
    $region8: #{tpu_custom_call.1} parent=1 // pred_region
      _
    $region9: #{tpu_custom_call.1} parent=1 // pred_fallthru
      _
    // Predicated region
    $region10: #{tpu_custom_call.1} parent=1 // pred_check
      _
    $region11: #{tpu_custom_call.1} parent=1 // pred_check_branch
      %28 = sbr.rel (0) target = $region13
    $region12: #{tpu_custom_call.1} parent=1 // pred_region
      _
    $region13: #{tpu_custom_call.1} parent=1 // pred_fallthru
      _
    // Predicated region
    $region14: #{tpu_custom_call.1} parent=1 // pred_check
      _
    $region15: #{tpu_custom_call.1} parent=1 // pred_check_branch
      %30 = sbr.rel (0) target = $region17
    $region16: #{tpu_custom_call.1} parent=1 // pred_region
      %s32 = ssub.s32 512, 512
      %33 = vsyncadd [#allocation4], %s32
      %s34 = sshll.u32 [#allocation3], 4
      %s35 = int_to_ptr.vmem [resolvable:$true] %s34
      %40 = dma.hbm_to_vmem [thread:$0]  %s3, 512, %s35, [#allocation4], 128, 128, 8
    $region17: #{tpu_custom_call.1} parent=1 // pred_fallthru
      _
    // Predicated region
    $region18: #{tpu_custom_call.1} parent=1 // pred_check
      _
    $region19: #{tpu_custom_call.1} parent=1 // pred_check_branch
      %42 = sbr.rel (0) target = $region21
    $region20: #{tpu_custom_call.1} parent=1 // pred_region
      _
    $region21: #{tpu_custom_call.1} parent=1 // pred_fallthru
      _
    // Predicated region
    $region22: #{tpu_custom_call.1} parent=1 // pred_check
      _
    $region23: #{tpu_custom_call.1} parent=1 // pred_check_branch
      %44 = sbr.rel (0) target = $region25
    $region24: #{tpu_custom_call.1} parent=1 // pred_region
      _
    $region25: #{tpu_custom_call.1} parent=1 // pred_fallthru
      _
    // Predicated region
    $region26: #{tpu_custom_call.1} parent=1 // pred_check
      _
    $region27: #{tpu_custom_call.1} parent=1 // pred_check_branch
      %46 = sbr.rel (0) target = $region29
    $region28: #{tpu_custom_call.1} parent=1 // pred_region
      _
    $region29: #{tpu_custom_call.1} parent=1 // pred_fallthru
      _
    // Predicated region
    $region30: #{tpu_custom_call.1} parent=1 // pred_check
      _
    $region31: #{tpu_custom_call.1} parent=1 // pred_check_branch
      %48 = sbr.rel (0) target = $region33
    $region32: #{tpu_custom_call.1} parent=1 // pred_region
      _
    $region33: #{tpu_custom_call.1} parent=1 // pred_fallthru
      _
    // Predicated region
    $region34: #{tpu_custom_call.1} parent=1 // pred_check
      _
    $region35: #{tpu_custom_call.1} parent=1 // pred_check_branch
      %50 = sbr.rel (0) target = $region37
    $region36: #{tpu_custom_call.1} parent=1 // pred_region
      %s52 = ssub.s32 512, 512
      %53 = vsyncadd [#allocation7], %s52
      %s54 = sshll.u32 [#allocation6], 4
      %s55 = int_to_ptr.vmem [resolvable:$true] %s54
      %60 = dma.hbm_to_vmem [thread:$0]  %s8, 512, %s55, [#allocation7], 128, 128, 8
    $region37: #{tpu_custom_call.1} parent=1 // pred_fallthru
      _
    // Predicated region
    $region38: #{tpu_custom_call.1} parent=1 // pred_check
      _
    $region39: #{tpu_custom_call.1} parent=1 // pred_check_branch
      %62 = sbr.rel (0) target = $region41
    $region40: #{tpu_custom_call.1} parent=1 // pred_region
      _
    $region41: #{tpu_custom_call.1} parent=1 // pred_fallthru
      _
    // Predicated region
    $region42: #{tpu_custom_call.1} parent=1 // pred_check
      _
    $region43: #{tpu_custom_call.1} parent=1 // pred_check_branch
      %64 = sbr.rel (0) target = $region45
    $region44: #{tpu_custom_call.1} parent=1 // pred_region
      _
    $region45: #{tpu_custom_call.1} parent=1 // pred_fallthru
      _
    // Predicated region
    $region46: #{tpu_custom_call.1} parent=1 // pred_check
      _
    $region47: #{tpu_custom_call.1} parent=1 // pred_check_branch
      %66 = sbr.rel (0) target = $region49
    $region48: #{tpu_custom_call.1} parent=1 // pred_region
      %67 = dma.done [#allocation4], 512
    $region49: #{tpu_custom_call.1} parent=1 // pred_fallthru
      _
    // Predicated region
    $region50: #{tpu_custom_call.1} parent=1 // pred_check
      _
    $region51: #{tpu_custom_call.1} parent=1 // pred_check_branch
      %69 = sbr.rel (0) target = $region53
    $region52: #{tpu_custom_call.1} parent=1 // pred_region
      %70 = dma.done [#allocation7], 512
    $region53: #{tpu_custom_call.1} parent=1 // pred_fallthru
      _
    %v71 = vld [vmem:[%s0] sm:$0xff]
    %v72 = vld [vmem:[%s0 + $0x8] sm:$0xff]
    %v73 = vld [vmem:[%s0 + $0x10] sm:$0xff]
    %v74 = vld [vmem:[%s0 + $0x18] sm:$0xff]
    %v75 = vld [vmem:[%s0 + $0x20] sm:$0xff]
    %v76 = vld [vmem:[%s0 + $0x28] sm:$0xff]
    %v77 = vld [vmem:[%s0 + $0x30] sm:$0xff]
    %v78 = vld [vmem:[%s0 + $0x38] sm:$0xff]
    %v79 = vld [vmem:[#allocation6] sm:$0xff]
    %v80 = vld [vmem:[#allocation6 + $0x8] sm:$0xff]
    %v81 = vld [vmem:[#allocation6 + $0x10] sm:$0xff]
    %v82 = vld [vmem:[#allocation6 + $0x18] sm:$0xff]
    %vm83 = vcmask 261120
    %v85 = vsel %vm83, %v71, 0
    %v88 = vsel %vm83, %v72, 0
    %v91 = vsel %vm83, %v73, 0
    %v94 = vsel %vm83, %v74, 0
    %v97 = vsel %vm83, %v75, 0
    %v100 = vsel %vm83, %v76, 0
    %v103 = vsel %vm83, %v77, 0
    %v106 = vsel %vm83, %v78, 0
    %108 = vmatprep.subr.mxu0 0.0
    %109 = vmatpush1.msra.mxu0 0.0
    %110 = vmatprep.subr.mxu0 0.0
    %111 = vmatpush1.msra.mxu0 0.0
    %112 = vmatprep.subr.mxu0 0.0
    %113 = vmatpush1.msra.mxu0 0.0
    %114 = vmatprep.subr.mxu0 0.0
    %115 = vmatpush1.msra.mxu0 0.0
    %116 = vmatprep.subr.mxu0 0.0
    %117 = vmatpush1.msra.mxu0 0.0
    %118 = vmatprep.subr.mxu0 0.0
    %119 = vmatpush1.msra.mxu0 0.0
    %120 = vmatprep.subr.mxu0 0.0
    %121 = vmatpush1.msra.mxu0 0.0
    %122 = vmatprep.subr.mxu0 0.0
    %123 = vmatpush1.msra.mxu0 0.0
    %124 = vmatprep.subr.mxu0 0.0
    %125 = vmatpush1.msra.mxu0 0.0
    %126 = vmatprep.subr.mxu0 0.0
    %127 = vmatpush1.msra.mxu0 0.0
    %128 = vmatprep.subr.mxu0 0.0
    %129 = vmatpush1.msra.mxu0 0.0
    %130 = vmatprep.subr.mxu0 0.0
    %131 = vmatpush1.msra.mxu0 0.0
    %132 = vmatprep.subr.mxu0 0.0
    %133 = vmatpush1.msra.mxu0 %v82
    %134 = vmatprep.subr.mxu0 0.0
    %135 = vmatpush1.msra.mxu0 %v81
    %136 = vmatprep.subr.mxu0 0.0
    %137 = vmatpush1.msra.mxu0 %v80
    %138 = vmatprep.subr.mxu0 0.0
    %139 = vmatpush1.msra.mxu0 %v79
    %140 = vmatprep.subr.mxu0 0.0
    %141 = vmatpush2.msra.mxu0 0.0
    %142 = vmatprep.subr.mxu0 0.0
    %143 = vmatpush2.msra.mxu0 0.0
    %144 = vmatprep.subr.mxu0 0.0
    %145 = vmatpush2.msra.mxu0 0.0
    %146 = vmatprep.subr.mxu0 0.0
    %147 = vmatpush2.msra.mxu0 0.0
    %148 = vmatprep.subr.mxu0 0.0
    %149 = vmatpush2.msra.mxu0 0.0
    %150 = vmatprep.subr.mxu0 0.0
    %151 = vmatpush2.msra.mxu0 0.0
    %152 = vmatprep.subr.mxu0 0.0
    %153 = vmatpush2.msra.mxu0 0.0
    %154 = vmatprep.subr.mxu0 0.0
    %155 = vmatpush2.msra.mxu0 0.0
    %156 = vmatprep.subr.mxu0 0.0
    %157 = vmatpush2.msra.mxu0 0.0
    %158 = vmatprep.subr.mxu0 0.0
    %159 = vmatpush2.msra.mxu0 0.0
    %160 = vmatprep.subr.mxu0 0.0
    %161 = vmatpush2.msra.mxu0 0.0
    %162 = vmatprep.subr.mxu0 0.0
    %163 = vmatpush2.msra.mxu0 0.0
    %164 = vmatprep.subr.mxu0 0.0
    %165 = vmatpush2.msra.mxu0 0.0
    %166 = vmatprep.subr.mxu0 0.0
    %167 = vmatpush2.msra.mxu0 0.0
    %168 = vmatprep.subr.mxu0 0.0
    %169 = vmatpush2.msra.mxu0 0.0
    %170 = vmatprep.subr.mxu0 0.0
    %171 = vmatpush2.msra.mxu0 0.0
    %172 = vmatprep.mubr.f32.mxu0 0.0
    %173 = vmatmul.mubr.f32.gmra.mxu0 %v85
    %v174 = vpop.f32.mrf.mxu0
    %v175 = vadd.f32 0.0, %v174
    %v176 = vpop.f32.mrf.mxu0
    %177 = vmatprep.mubr.f32.mxu0 0.0
    %178 = vmatmul.mubr.f32.gmra.mxu0 %v88
    %v179 = vpop.f32.mrf.mxu0
    %v180 = vadd.f32 0.0, %v179
    %v181 = vpop.f32.mrf.mxu0
    %182 = vmatprep.mubr.f32.mxu0 0.0
    %183 = vmatmul.mubr.f32.gmra.mxu0 %v91
    %v184 = vpop.f32.mrf.mxu0
    %v185 = vadd.f32 0.0, %v184
    %v186 = vpop.f32.mrf.mxu0
    %187 = vmatprep.mubr.f32.mxu0 0.0
    %188 = vmatmul.mubr.f32.gmra.mxu0 %v94
    %v189 = vpop.f32.mrf.mxu0
    %v190 = vadd.f32 0.0, %v189
    %v191 = vpop.f32.mrf.mxu0
    %192 = vmatprep.mubr.f32.mxu0 0.0
    %193 = vmatmul.mubr.f32.gmra.mxu0 %v97
    %v194 = vpop.f32.mrf.mxu0
    %v195 = vadd.f32 0.0, %v194
    %v196 = vpop.f32.mrf.mxu0
    %197 = vmatprep.mubr.f32.mxu0 0.0
    %198 = vmatmul.mubr.f32.gmra.mxu0 %v100
    %v199 = vpop.f32.mrf.mxu0
    %v200 = vadd.f32 0.0, %v199
    %v201 = vpop.f32.mrf.mxu0
    %202 = vmatprep.mubr.f32.mxu0 0.0
    %203 = vmatmul.mubr.f32.gmra.mxu0 %v103
    %v204 = vpop.f32.mrf.mxu0
    %v205 = vadd.f32 0.0, %v204
    %v206 = vpop.f32.mrf.mxu0
    %207 = vmatprep.mubr.f32.mxu0 0.0
    %208 = vmatmul.mubr.f32.gmra.mxu0 %v106
    %v209 = vpop.f32.mrf.mxu0
    %v210 = vadd.f32 0.0, %v209
    %v211 = vpop.f32.mrf.mxu0
    %212 = vdwg.mxu0
    %vm213 = vcmask 523264
    %v214 = vsel %vm213, %v175, 0.0
    %v215 = vsel %vm213, %v180, 0.0
    %v216 = vadd.f32 %v214, %v215
    %v217 = vsel %vm213, %v185, 0.0
    %v218 = vadd.f32 %v216, %v217
    %v219 = vsel %vm213, %v190, 0.0
    %v220 = vadd.f32 %v218, %v219
    %v221 = vsel %vm213, %v195, 0.0
    %v222 = vadd.f32 %v220, %v221
    %v223 = vsel %vm213, %v200, 0.0
    %v224 = vadd.f32 %v222, %v223
    %v225 = vsel %vm213, %v205, 0.0
    %v226 = vadd.f32 %v224, %v225
    %v227 = vsel %vm213, %v210, 0.0
    %v228 = vadd.f32 %v226, %v227
    %v229 = vrot.slane %v228, 4
    %v230 = vadd.f32 %v228, %v229
    %v231 = vrot.slane %v230, 2
    %v232 = vadd.f32 %v230, %v231
    %v233 = vrot.slane %v232, 1
    %v234 = vadd.f32 %v232, %v233
    %v235 = vrcp.pop 64.0
    %v236 = vmul.f32 %v234, %v235
    %v237 = vmul.f32 %v175, %v175
    %v238 = vmul.f32 %v180, %v180
    %v239 = vmul.f32 %v185, %v185
    %v240 = vmul.f32 %v190, %v190
    %v241 = vmul.f32 %v195, %v195
    %v242 = vmul.f32 %v200, %v200
    %v243 = vmul.f32 %v205, %v205
    %v244 = vmul.f32 %v210, %v210
    %v245 = vsel %vm213, %v237, 0.0
    %v246 = vsel %vm213, %v238, 0.0
    %v247 = vadd.f32 %v245, %v246
    %v248 = vsel %vm213, %v239, 0.0
    %v249 = vadd.f32 %v247, %v248
    %v250 = vsel %vm213, %v240, 0.0
    %v251 = vadd.f32 %v249, %v250
    %v252 = vsel %vm213, %v241, 0.0
    %v253 = vadd.f32 %v251, %v252
    %v254 = vsel %vm213, %v242, 0.0
    %v255 = vadd.f32 %v253, %v254
    %v256 = vsel %vm213, %v243, 0.0
    %v257 = vadd.f32 %v255, %v256
    %v258 = vsel %vm213, %v244, 0.0
    %v259 = vadd.f32 %v257, %v258
    %v260 = vrot.slane %v259, 4
    %v261 = vadd.f32 %v259, %v260
    %v262 = vrot.slane %v261, 2
    %v263 = vadd.f32 %v261, %v262
    %v264 = vrot.slane %v263, 1
    %v265 = vadd.f32 %v263, %v264
    %v266 = vmul.f32 %v265, %v235
    %v267 = vmul.f32 %v236, %v236
    %v268 = vsub.f32 %v266, %v267
    %v269 = vsub.f32 %v175, %v236
    %v270 = vsub.f32 %v180, %v236
    %v271 = vsub.f32 %v185, %v236
    %v272 = vsub.f32 %v190, %v236
    %v273 = vsub.f32 %v195, %v236
    %v274 = vsub.f32 %v200, %v236
    %v275 = vsub.f32 %v205, %v236
    %v276 = vsub.f32 %v210, %v236
    %v277 = vadd.f32 %v268, 1e-05
    %v278 = vrsqrt.pop %v277
    %v279 = vmul.f32 %v269, %v278
    %v280 = vmul.f32 %v270, %v278
    %v281 = vmul.f32 %v271, %v278
    %v282 = vmul.f32 %v272, %v278
    %v283 = vmul.f32 %v273, %v278
    %v284 = vmul.f32 %v274, %v278
    %v285 = vmul.f32 %v275, %v278
    %v286 = vmul.f32 %v276, %v278
    %v287 = vld [vmem:[%s9] sm:$0x1]
    %v289 = vlaneseq
    %v290 = vshrl.u32 %v289, 7
    %v291 = vsub.s32 0, %v290
    %v292 = vrot.slane %v287, %v291
    %v294 = vmul.f32 %v279, %v292
    %v295 = vmul.f32 %v280, %v292
    %v296 = vmul.f32 %v281, %v292
    %v297 = vmul.f32 %v282, %v292
    %v298 = vmul.f32 %v283, %v292
    %v299 = vmul.f32 %v284, %v292
    %v300 = vmul.f32 %v285, %v292
    %v301 = vmul.f32 %v286, %v292
    %v302 = vld [vmem:[%s10] sm:$0x1]
    %v304 = vlaneseq
    %v305 = vshrl.u32 %v304, 7
    %v306 = vsub.s32 0, %v305
    %v307 = vrot.slane %v302, %v306
    %v309 = vadd.f32 %v294, %v307
    %v310 = vadd.f32 %v295, %v307
    %v311 = vadd.f32 %v296, %v307
    %v312 = vadd.f32 %v297, %v307
    %v313 = vadd.f32 %v298, %v307
    %v314 = vadd.f32 %v299, %v307
    %v315 = vadd.f32 %v300, %v307
    %v316 = vadd.f32 %v301, %v307
    %v317 = vld [vmem:[%s1] sm:$0xff]
    %v318 = vld [vmem:[%s1 + $0x8] sm:$0xff]
    %v319 = vld [vmem:[%s1 + $0x10] sm:$0xff]
    %v320 = vld [vmem:[%s1 + $0x18] sm:$0xff]
    %v321 = vld [vmem:[%s1 + $0x20] sm:$0xff]
    %v322 = vld [vmem:[%s1 + $0x28] sm:$0xff]
    %v323 = vld [vmem:[%s1 + $0x30] sm:$0xff]
    %v324 = vld [vmem:[%s1 + $0x38] sm:$0xff]
    %325 = vmatprep.subr.mxu0 0.0
    %326 = vmatpush1.msra.mxu0 0.0
    %327 = vmatprep.subr.mxu0 0.0
    %328 = vmatpush1.msra.mxu0 0.0
    %329 = vmatprep.subr.mxu0 0.0
    %330 = vmatpush1.msra.mxu0 0.0
    %331 = vmatprep.subr.mxu0 0.0
    %332 = vmatpush1.msra.mxu0 0.0
    %333 = vmatprep.subr.mxu0 0.0
    %334 = vmatpush1.msra.mxu0 0.0
    %335 = vmatprep.subr.mxu0 0.0
    %336 = vmatpush1.msra.mxu0 0.0
    %337 = vmatprep.subr.mxu0 0.0
    %338 = vmatpush1.msra.mxu0 0.0
    %339 = vmatprep.subr.mxu0 0.0
    %340 = vmatpush1.msra.mxu0 0.0
    %341 = vmatprep.subr.mxu0 0.0
    %342 = vmatpush1.msra.mxu0 0.0
    %343 = vmatprep.subr.mxu0 0.0
    %344 = vmatpush1.msra.mxu0 0.0
    %345 = vmatprep.subr.mxu0 0.0
    %346 = vmatpush1.msra.mxu0 0.0
    %347 = vmatprep.subr.mxu0 0.0
    %348 = vmatpush1.msra.mxu0 0.0
    %349 = vmatprep.subr.mxu0 %v324
    %350 = vmatpush1.msra.mxu0 %v323
    %351 = vmatprep.subr.mxu0 %v322
    %352 = vmatpush1.msra.mxu0 %v321
    %353 = vmatprep.subr.mxu0 %v320
    %354 = vmatpush1.msra.mxu0 %v319
    %355 = vmatprep.subr.mxu0 %v318
    %356 = vmatpush1.msra.mxu0 %v317
    %357 = vmatprep.subr.mxu0 0.0
    %358 = vmatpush2.msra.mxu0 0.0
    %359 = vmatprep.subr.mxu0 0.0
    %360 = vmatpush2.msra.mxu0 0.0
    %361 = vmatprep.subr.mxu0 0.0
    %362 = vmatpush2.msra.mxu0 0.0
    %363 = vmatprep.subr.mxu0 0.0
    %364 = vmatpush2.msra.mxu0 0.0
    %365 = vmatprep.subr.mxu0 0.0
    %366 = vmatpush2.msra.mxu0 0.0
    %367 = vmatprep.subr.mxu0 0.0
    %368 = vmatpush2.msra.mxu0 0.0
    %369 = vmatprep.subr.mxu0 0.0
    %370 = vmatpush2.msra.mxu0 0.0
    %371 = vmatprep.subr.mxu0 0.0
    %372 = vmatpush2.msra.mxu0 0.0
    %373 = vmatprep.subr.mxu0 0.0
    %374 = vmatpush2.msra.mxu0 0.0
    %375 = vmatprep.subr.mxu0 0.0
    %376 = vmatpush2.msra.mxu0 0.0
    %377 = vmatprep.subr.mxu0 0.0
    %378 = vmatpush2.msra.mxu0 0.0
    %379 = vmatprep.subr.mxu0 0.0
    %380 = vmatpush2.msra.mxu0 0.0
    %381 = vmatprep.subr.mxu0 0.0
    %382 = vmatpush2.msra.mxu0 0.0
    %383 = vmatprep.subr.mxu0 0.0
    %384 = vmatpush2.msra.mxu0 0.0
    %385 = vmatprep.subr.mxu0 0.0
    %386 = vmatpush2.msra.mxu0 0.0
    %387 = vmatprep.subr.mxu0 0.0
    %388 = vmatpush2.msra.mxu0 0.0
    %389 = vmatprep.mubr.f32.mxu0 0.0
    %390 = vmatmul.mubr.f32.gmra.mxu0 %v85
    %v391 = vpop.f32.mrf.mxu0
    %v392 = vadd.f32 0.0, %v391
    %v393 = vpop.f32.mrf.mxu0
    %v394 = vadd.f32 0.0, %v393
    %395 = vmatprep.mubr.f32.mxu0 0.0
    %396 = vmatmul.mubr.f32.gmra.mxu0 %v88
    %v397 = vpop.f32.mrf.mxu0
    %v398 = vadd.f32 0.0, %v397
    %v399 = vpop.f32.mrf.mxu0
    %v400 = vadd.f32 0.0, %v399
    %401 = vmatprep.mubr.f32.mxu0 0.0
    %402 = vmatmul.mubr.f32.gmra.mxu0 %v91
    %v403 = vpop.f32.mrf.mxu0
    %v404 = vadd.f32 0.0, %v403
    %v405 = vpop.f32.mrf.mxu0
    %v406 = vadd.f32 0.0, %v405
    %407 = vmatprep.mubr.f32.mxu0 0.0
    %408 = vmatmul.mubr.f32.gmra.mxu0 %v94
    %v409 = vpop.f32.mrf.mxu0
    %v410 = vadd.f32 0.0, %v409
    %v411 = vpop.f32.mrf.mxu0
    %v412 = vadd.f32 0.0, %v411
    %413 = vmatprep.mubr.f32.mxu0 0.0
    %414 = vmatmul.mubr.f32.gmra.mxu0 %v97
    %v415 = vpop.f32.mrf.mxu0
    %v416 = vadd.f32 0.0, %v415
    %v417 = vpop.f32.mrf.mxu0
    %v418 = vadd.f32 0.0, %v417
    %419 = vmatprep.mubr.f32.mxu0 0.0
    %420 = vmatmul.mubr.f32.gmra.mxu0 %v100
    %v421 = vpop.f32.mrf.mxu0
    %v422 = vadd.f32 0.0, %v421
    %v423 = vpop.f32.mrf.mxu0
    %v424 = vadd.f32 0.0, %v423
    %425 = vmatprep.mubr.f32.mxu0 0.0
    %426 = vmatmul.mubr.f32.gmra.mxu0 %v103
    %v427 = vpop.f32.mrf.mxu0
    %v428 = vadd.f32 0.0, %v427
    %v429 = vpop.f32.mrf.mxu0
    %v430 = vadd.f32 0.0, %v429
    %431 = vmatprep.mubr.f32.mxu0 0.0
    %432 = vmatmul.mubr.f32.gmra.mxu0 %v106
    %v433 = vpop.f32.mrf.mxu0
    %v434 = vadd.f32 0.0, %v433
    %v435 = vpop.f32.mrf.mxu0
    %v436 = vadd.f32 0.0, %v435
    %437 = vdwg.mxu0
    %v438 = vld [vmem:[%s2] sm:$0xff]
    %v439 = vld [vmem:[%s2 + $0x8] sm:$0xff]
    %v440 = vld [vmem:[%s2 + $0x10] sm:$0xff]
    %v441 = vld [vmem:[%s2 + $0x18] sm:$0xff]
    %v442 = vld [vmem:[#allocation3] sm:$0xff]
    %v443 = vld [vmem:[#allocation3 + $0x8] sm:$0xff]
    %v444 = vld [vmem:[#allocation3 + $0x10] sm:$0xff]
    %v445 = vld [vmem:[#allocation3 + $0x18] sm:$0xff]
    %v446 = vld [vmem:[%s4] sm:$0x1]
    %v447 = vld [vmem:[%s5] sm:$0x1]
    %v449 = vsel %vm83, 0.0, 0
    %451 = vmatprep.subr.mxu0 0.0
    %452 = vmatpush1.msra.mxu0 0.0
    %453 = vmatprep.subr.mxu0 0.0
    %454 = vmatpush1.msra.mxu0 0.0
    %455 = vmatprep.subr.mxu0 0.0
    %456 = vmatpush1.msra.mxu0 0.0
    %457 = vmatprep.subr.mxu0 0.0
    %458 = vmatpush1.msra.mxu0 0.0
    %459 = vmatprep.subr.mxu0 0.0
    %460 = vmatpush1.msra.mxu0 0.0
    %461 = vmatprep.subr.mxu0 0.0
    %462 = vmatpush1.msra.mxu0 0.0
    %463 = vmatprep.subr.mxu0 0.0
    %464 = vmatpush1.msra.mxu0 0.0
    %465 = vmatprep.subr.mxu0 0.0
    %466 = vmatpush1.msra.mxu0 0.0
    %467 = vmatprep.subr.mxu0 0.0
    %468 = vmatpush1.msra.mxu0 0.0
    %469 = vmatprep.subr.mxu0 0.0
    %470 = vmatpush1.msra.mxu0 0.0
    %471 = vmatprep.subr.mxu0 0.0
    %472 = vmatpush1.msra.mxu0 0.0
    %473 = vmatprep.subr.mxu0 0.0
    %474 = vmatpush1.msra.mxu0 0.0
    %475 = vmatprep.subr.mxu0 0.0
    %476 = vmatpush1.msra.mxu0 %v441
    %477 = vmatprep.subr.mxu0 0.0
    %478 = vmatpush1.msra.mxu0 %v440
    %479 = vmatprep.subr.mxu0 0.0
    %480 = vmatpush1.msra.mxu0 %v439
    %481 = vmatprep.subr.mxu0 0.0
    %482 = vmatpush1.msra.mxu0 %v438
    %483 = vmatprep.subr.mxu0 0.0
    %484 = vmatpush2.msra.mxu0 0.0
    %485 = vmatprep.subr.mxu0 0.0
    %486 = vmatpush2.msra.mxu0 0.0
    %487 = vmatprep.subr.mxu0 0.0
    %488 = vmatpush2.msra.mxu0 0.0
    %489 = vmatprep.subr.mxu0 0.0
    %490 = vmatpush2.msra.mxu0 0.0
    %491 = vmatprep.subr.mxu0 0.0
    %492 = vmatpush2.msra.mxu0 0.0
    %493 = vmatprep.subr.mxu0 0.0
    %494 = vmatpush2.msra.mxu0 0.0
    %495 = vmatprep.subr.mxu0 0.0
    %496 = vmatpush2.msra.mxu0 0.0
    %497 = vmatprep.subr.mxu0 0.0
    %498 = vmatpush2.msra.mxu0 0.0
    %499 = vmatprep.subr.mxu0 0.0
    %500 = vmatpush2.msra.mxu0 0.0
    %501 = vmatprep.subr.mxu0 0.0
    %502 = vmatpush2.msra.mxu0 0.0
    %503 = vmatprep.subr.mxu0 0.0
    %504 = vmatpush2.msra.mxu0 0.0
    %505 = vmatprep.subr.mxu0 0.0
    %506 = vmatpush2.msra.mxu0 0.0
    %507 = vmatprep.subr.mxu0 0.0
    %508 = vmatpush2.msra.mxu0 0.0
    %509 = vmatprep.subr.mxu0 0.0
    %510 = vmatpush2.msra.mxu0 0.0
    %511 = vmatprep.subr.mxu0 0.0
    %512 = vmatpush2.msra.mxu0 0.0
    %513 = vmatprep.subr.mxu0 0.0
    %514 = vmatpush2.msra.mxu0 0.0
    %515 = vmatprep.mubr.f32.mxu0 0.0
    %516 = vmatmul.mubr.f32.gmra.mxu0 %v449
    %v517 = vpop.f32.mrf.mxu0
    %v518 = vadd.f32 0.0, %v517
    %v519 = vpop.f32.mrf.mxu0
    %520 = vdwg.mxu0
    %v521 = vadd.f32 %v392, %v518
    %v523 = vlaneseq
    %v524 = vshrl.u32 %v523, 7
    %v525 = vsub.s32 0, %v524
    %v526 = vrot.slane %v446, %v525
    %v528 = vadd.f32 %v521, %v526
    %529 = vmatprep.subr.mxu0 0.0
    %530 = vmatpush1.msra.mxu0 0.0
    %531 = vmatprep.subr.mxu0 0.0
    %532 = vmatpush1.msra.mxu0 0.0
    %533 = vmatprep.subr.mxu0 0.0
    %534 = vmatpush1.msra.mxu0 0.0
    %535 = vmatprep.subr.mxu0 0.0
    %536 = vmatpush1.msra.mxu0 0.0
    %537 = vmatprep.subr.mxu0 0.0
    %538 = vmatpush1.msra.mxu0 0.0
    %539 = vmatprep.subr.mxu0 0.0
    %540 = vmatpush1.msra.mxu0 0.0
    %541 = vmatprep.subr.mxu0 0.0
    %542 = vmatpush1.msra.mxu0 0.0
    %543 = vmatprep.subr.mxu0 0.0
    %544 = vmatpush1.msra.mxu0 0.0
    %545 = vmatprep.subr.mxu0 0.0
    %546 = vmatpush1.msra.mxu0 0.0
    %547 = vmatprep.subr.mxu0 0.0
    %548 = vmatpush1.msra.mxu0 0.0
    %549 = vmatprep.subr.mxu0 0.0
    %550 = vmatpush1.msra.mxu0 0.0
    %551 = vmatprep.subr.mxu0 0.0
    %552 = vmatpush1.msra.mxu0 0.0
    %553 = vmatprep.subr.mxu0 0.0
    %554 = vmatpush1.msra.mxu0 %v445
    %555 = vmatprep.subr.mxu0 0.0
    %556 = vmatpush1.msra.mxu0 %v444
    %557 = vmatprep.subr.mxu0 0.0
    %558 = vmatpush1.msra.mxu0 %v443
    %559 = vmatprep.subr.mxu0 0.0
    %560 = vmatpush1.msra.mxu0 %v442
    %561 = vmatprep.subr.mxu0 0.0
    %562 = vmatpush2.msra.mxu0 0.0
    %563 = vmatprep.subr.mxu0 0.0
    %564 = vmatpush2.msra.mxu0 0.0
    %565 = vmatprep.subr.mxu0 0.0
    %566 = vmatpush2.msra.mxu0 0.0
    %567 = vmatprep.subr.mxu0 0.0
    %568 = vmatpush2.msra.mxu0 0.0
    %569 = vmatprep.subr.mxu0 0.0
    %570 = vmatpush2.msra.mxu0 0.0
    %571 = vmatprep.subr.mxu0 0.0
    %572 = vmatpush2.msra.mxu0 0.0
    %573 = vmatprep.subr.mxu0 0.0
    %574 = vmatpush2.msra.mxu0 0.0
    %575 = vmatprep.subr.mxu0 0.0
    %576 = vmatpush2.msra.mxu0 0.0
    %577 = vmatprep.subr.mxu0 0.0
    %578 = vmatpush2.msra.mxu0 0.0
    %579 = vmatprep.subr.mxu0 0.0
    %580 = vmatpush2.msra.mxu0 0.0
    %581 = vmatprep.subr.mxu0 0.0
    %582 = vmatpush2.msra.mxu0 0.0
    %583 = vmatprep.subr.mxu0 0.0
    %584 = vmatpush2.msra.mxu0 0.0
    %585 = vmatprep.subr.mxu0 0.0
    %586 = vmatpush2.msra.mxu0 0.0
    %587 = vmatprep.subr.mxu0 0.0
    %588 = vmatpush2.msra.mxu0 0.0
    %589 = vmatprep.subr.mxu0 0.0
    %590 = vmatpush2.msra.mxu0 0.0
    %591 = vmatprep.subr.mxu0 0.0
    %592 = vmatpush2.msra.mxu0 0.0
    %593 = vmatprep.mubr.f32.mxu0 0.0
    %594 = vmatmul.mubr.f32.gmra.mxu0 %v449
    %v595 = vpop.f32.mrf.mxu0
    %v596 = vadd.f32 0.0, %v595
    %v597 = vpop.f32.mrf.mxu0
    %598 = vdwg.mxu0
    %v599 = vadd.f32 %v436, %v596
    %v601 = vlaneseq
    %v602 = vshrl.u32 %v601, 7
    %v603 = vsub.s32 0, %v602
    %v604 = vrot.slane %v447, %v603
    %v606 = vadd.f32 %v599, %v604
    %v607 = vxor.u32 %v528, 2147483648
    %v608 = vmul.f32 %v607, 1.442695
    %v609 = vpow.pop %v608
    %v610 = vadd.f32 %v609, 1.0
    %v611 = vrcp.pop %v610
    %v612 = vmul.f32 1.0, %v611
    %v613 = vtanh.pop %v528
    %v614 = vmul.f32 %v612, 0.0
    %616 = vrot.lane.b32.xlu0 %v613, 64
    %v617 = vpop.permute.xlu0 %616
    %v619 = vmul.f32 %v612, %v617
    %621 = vrot.lane.b32.xlu0 %v619, 32
    %v622 = vpop.permute.xlu0 %621
    %v624 = vadd.f32 %v614, %v622
    %v625 = vtanh.pop %v624
    %627 = vrot.lane.b32.xlu0 %v625, 64
    %v628 = vpop.permute.xlu0 %627
    %v630 = vmul.f32 %v612, %v628
    %v631 = vxor.u32 %v606, 2147483648
    %v632 = vmul.f32 %v631, 1.442695
    %v633 = vpow.pop %v632
    %v634 = vadd.f32 %v633, 1.0
    %v635 = vrcp.pop %v634
    %v636 = vmul.f32 1.0, %v635
    %v637 = vtanh.pop %v606
    %v638 = vmul.f32 %v636, 0.0
    %640 = vrot.lane.b32.xlu0 %v637, 64
    %v641 = vpop.permute.xlu0 %640
    %v643 = vmul.f32 %v636, %v641
    %645 = vrot.lane.b32.xlu0 %v643, 32
    %v646 = vpop.permute.xlu0 %645
    %v648 = vadd.f32 %v638, %v646
    %v649 = vtanh.pop %v648
    %651 = vrot.lane.b32.xlu0 %v649, 64
    %v652 = vpop.permute.xlu0 %651
    %v654 = vmul.f32 %v636, %v652
    %656 = vrot.lane.b32.xlu0 %v630, 32
    %v657 = vpop.permute.xlu0 %656
    %659 = vst.msk [vmem:[#allocation2] sm:$0xff] %vm83, %v657
    %661 = vrot.lane.b32.xlu0 %v654, 64
    %v662 = vpop.permute.xlu0 %661
    %vm664 = vcmask 523520
    %665 = vst.msk [vmem:[#allocation2 + $0x38] sm:$0xff] %vm664, %v662
    %v666 = vsel %vm83, %v657, 0
    %668 = vmatprep.subr.mxu0 0.0
    %669 = vmatpush1.msra.mxu0 0.0
    %670 = vmatprep.subr.mxu0 0.0
    %671 = vmatpush1.msra.mxu0 0.0
    %672 = vmatprep.subr.mxu0 0.0
    %673 = vmatpush1.msra.mxu0 0.0
    %674 = vmatprep.subr.mxu0 0.0
    %675 = vmatpush1.msra.mxu0 0.0
    %676 = vmatprep.subr.mxu0 0.0
    %677 = vmatpush1.msra.mxu0 0.0
    %678 = vmatprep.subr.mxu0 0.0
    %679 = vmatpush1.msra.mxu0 0.0
    %680 = vmatprep.subr.mxu0 0.0
    %681 = vmatpush1.msra.mxu0 0.0
    %682 = vmatprep.subr.mxu0 0.0
    %683 = vmatpush1.msra.mxu0 0.0
    %684 = vmatprep.subr.mxu0 0.0
    %685 = vmatpush1.msra.mxu0 0.0
    %686 = vmatprep.subr.mxu0 0.0
    %687 = vmatpush1.msra.mxu0 0.0
    %688 = vmatprep.subr.mxu0 0.0
    %689 = vmatpush1.msra.mxu0 0.0
    %690 = vmatprep.subr.mxu0 0.0
    %691 = vmatpush1.msra.mxu0 0.0
    %692 = vmatprep.subr.mxu0 0.0
    %693 = vmatpush1.msra.mxu0 %v441
    %694 = vmatprep.subr.mxu0 0.0
    %695 = vmatpush1.msra.mxu0 %v440
    %696 = vmatprep.subr.mxu0 0.0
    %697 = vmatpush1.msra.mxu0 %v439
    %698 = vmatprep.subr.mxu0 0.0
    %699 = vmatpush1.msra.mxu0 %v438
    %700 = vmatprep.subr.mxu0 0.0
    %701 = vmatpush2.msra.mxu0 0.0
    %702 = vmatprep.subr.mxu0 0.0
    %703 = vmatpush2.msra.mxu0 0.0
    %704 = vmatprep.subr.mxu0 0.0
    %705 = vmatpush2.msra.mxu0 0.0
    %706 = vmatprep.subr.mxu0 0.0
    %707 = vmatpush2.msra.mxu0 0.0
    %708 = vmatprep.subr.mxu0 0.0
    %709 = vmatpush2.msra.mxu0 0.0
    %710 = vmatprep.subr.mxu0 0.0
    %711 = vmatpush2.msra.mxu0 0.0
    %712 = vmatprep.subr.mxu0 0.0
    %713 = vmatpush2.msra.mxu0 0.0
    %714 = vmatprep.subr.mxu0 0.0
    %715 = vmatpush2.msra.mxu0 0.0
    %716 = vmatprep.subr.mxu0 0.0
    %717 = vmatpush2.msra.mxu0 0.0
    %718 = vmatprep.subr.mxu0 0.0
    %719 = vmatpush2.msra.mxu0 0.0
    %720 = vmatprep.subr.mxu0 0.0
    %721 = vmatpush2.msra.mxu0 0.0
    %722 = vmatprep.subr.mxu0 0.0
    %723 = vmatpush2.msra.mxu0 0.0
    %724 = vmatprep.subr.mxu0 0.0
    %725 = vmatpush2.msra.mxu0 0.0
    %726 = vmatprep.subr.mxu0 0.0
    %727 = vmatpush2.msra.mxu0 0.0
    %728 = vmatprep.subr.mxu0 0.0
    %729 = vmatpush2.msra.mxu0 0.0
    %730 = vmatprep.subr.mxu0 0.0
    %731 = vmatpush2.msra.mxu0 0.0
    %732 = vmatprep.mubr.f32.mxu0 0.0
    %733 = vmatmul.mubr.f32.gmra.mxu0 %v666
    %v734 = vpop.f32.mrf.mxu0
    %v735 = vadd.f32 0.0, %v734
    %v736 = vpop.f32.mrf.mxu0
    %737 = vdwg.mxu0
    %v738 = vadd.f32 %v398, %v735
    %v739 = vadd.f32 %v738, %v526
    %740 = vrot.lane.b32.xlu0 %v654, 32
    %v741 = vpop.permute.xlu0 %740
    %v742 = vsel %vm83, %v741, 0
    %744 = vmatprep.subr.mxu0 0.0
    %745 = vmatpush1.msra.mxu0 0.0
    %746 = vmatprep.subr.mxu0 0.0
    %747 = vmatpush1.msra.mxu0 0.0
    %748 = vmatprep.subr.mxu0 0.0
    %749 = vmatpush1.msra.mxu0 0.0
    %750 = vmatprep.subr.mxu0 0.0
    %751 = vmatpush1.msra.mxu0 0.0
    %752 = vmatprep.subr.mxu0 0.0
    %753 = vmatpush1.msra.mxu0 0.0
    %754 = vmatprep.subr.mxu0 0.0
    %755 = vmatpush1.msra.mxu0 0.0
    %756 = vmatprep.subr.mxu0 0.0
    %757 = vmatpush1.msra.mxu0 0.0
    %758 = vmatprep.subr.mxu0 0.0
    %759 = vmatpush1.msra.mxu0 0.0
    %760 = vmatprep.subr.mxu0 0.0
    %761 = vmatpush1.msra.mxu0 0.0
    %762 = vmatprep.subr.mxu0 0.0
    %763 = vmatpush1.msra.mxu0 0.0
    %764 = vmatprep.subr.mxu0 0.0
    %765 = vmatpush1.msra.mxu0 0.0
    %766 = vmatprep.subr.mxu0 0.0
    %767 = vmatpush1.msra.mxu0 0.0
    %768 = vmatprep.subr.mxu0 0.0
    %769 = vmatpush1.msra.mxu0 %v445
    %770 = vmatprep.subr.mxu0 0.0
    %771 = vmatpush1.msra.mxu0 %v444
    %772 = vmatprep.subr.mxu0 0.0
    %773 = vmatpush1.msra.mxu0 %v443
    %774 = vmatprep.subr.mxu0 0.0
    %775 = vmatpush1.msra.mxu0 %v442
    %776 = vmatprep.subr.mxu0 0.0
    %777 = vmatpush2.msra.mxu0 0.0
    %778 = vmatprep.subr.mxu0 0.0
    %779 = vmatpush2.msra.mxu0 0.0
    %780 = vmatprep.subr.mxu0 0.0
    %781 = vmatpush2.msra.mxu0 0.0
    %782 = vmatprep.subr.mxu0 0.0
    %783 = vmatpush2.msra.mxu0 0.0
    %784 = vmatprep.subr.mxu0 0.0
    %785 = vmatpush2.msra.mxu0 0.0
    %786 = vmatprep.subr.mxu0 0.0
    %787 = vmatpush2.msra.mxu0 0.0
    %788 = vmatprep.subr.mxu0 0.0
    %789 = vmatpush2.msra.mxu0 0.0
    %790 = vmatprep.subr.mxu0 0.0
    %791 = vmatpush2.msra.mxu0 0.0
    %792 = vmatprep.subr.mxu0 0.0
    %793 = vmatpush2.msra.mxu0 0.0
    %794 = vmatprep.subr.mxu0 0.0
    %795 = vmatpush2.msra.mxu0 0.0
    %796 = vmatprep.subr.mxu0 0.0
    %797 = vmatpush2.msra.mxu0 0.0
    %798 = vmatprep.subr.mxu0 0.0
    %799 = vmatpush2.msra.mxu0 0.0
    %800 = vmatprep.subr.mxu0 0.0
    %801 = vmatpush2.msra.mxu0 0.0
    %802 = vmatprep.subr.mxu0 0.0
    %803 = vmatpush2.msra.mxu0 0.0
    %804 = vmatprep.subr.mxu0 0.0
    %805 = vmatpush2.msra.mxu0 0.0
    %806 = vmatprep.subr.mxu0 0.0
    %807 = vmatpush2.msra.mxu0 0.0
    %808 = vmatprep.mubr.f32.mxu0 0.0
    %809 = vmatmul.mubr.f32.gmra.mxu0 %v742
    %v810 = vpop.f32.mrf.mxu0
    %v811 = vadd.f32 0.0, %v810
    %v812 = vpop.f32.mrf.mxu0
    %813 = vdwg.mxu0
    %v814 = vadd.f32 %v430, %v811
    %v815 = vadd.f32 %v814, %v604
    %v816 = vxor.u32 %v739, 2147483648
    %v817 = vmul.f32 %v816, 1.442695
    %v818 = vpow.pop %v817
    %v819 = vadd.f32 %v818, 1.0
    %v820 = vrcp.pop %v819
    %v821 = vmul.f32 1.0, %v820
    %v822 = vtanh.pop %v739
    %v823 = vmul.f32 %v821, %v624
    %825 = vrot.lane.b32.xlu0 %v822, 64
    %v826 = vpop.permute.xlu0 %825
    %v828 = vmul.f32 %v821, %v826
    %830 = vrot.lane.b32.xlu0 %v828, 32
    %v831 = vpop.permute.xlu0 %830
    %v833 = vadd.f32 %v823, %v831
    %v834 = vtanh.pop %v833
    %836 = vrot.lane.b32.xlu0 %v834, 64
    %v837 = vpop.permute.xlu0 %836
    %v839 = vmul.f32 %v821, %v837
    %v840 = vxor.u32 %v815, 2147483648
    %v841 = vmul.f32 %v840, 1.442695
    %v842 = vpow.pop %v841
    %v843 = vadd.f32 %v842, 1.0
    %v844 = vrcp.pop %v843
    %v845 = vmul.f32 1.0, %v844
    %v846 = vtanh.pop %v815
    %v847 = vmul.f32 %v845, %v648
    %849 = vrot.lane.b32.xlu0 %v846, 64
    %v850 = vpop.permute.xlu0 %849
    %v852 = vmul.f32 %v845, %v850
    %854 = vrot.lane.b32.xlu0 %v852, 32
    %v855 = vpop.permute.xlu0 %854
    %v857 = vadd.f32 %v847, %v855
    %v858 = vtanh.pop %v857
    %860 = vrot.lane.b32.xlu0 %v858, 64
    %v861 = vpop.permute.xlu0 %860
    %v863 = vmul.f32 %v845, %v861
    %865 = vrot.lane.b32.xlu0 %v839, 32
    %v866 = vpop.permute.xlu0 %865
    %868 = vst.msk [vmem:[#allocation2 + $0x8] sm:$0xff] %vm83, %v866
    %870 = vrot.lane.b32.xlu0 %v863, 64
    %v871 = vpop.permute.xlu0 %870
    %873 = vst.msk [vmem:[#allocation2 + $0x30] sm:$0xff] %vm664, %v871
    %v874 = vsel %vm83, %v866, 0
    %876 = vmatprep.subr.mxu0 0.0
    %877 = vmatpush1.msra.mxu0 0.0
    %878 = vmatprep.subr.mxu0 0.0
    %879 = vmatpush1.msra.mxu0 0.0
    %880 = vmatprep.subr.mxu0 0.0
    %881 = vmatpush1.msra.mxu0 0.0
    %882 = vmatprep.subr.mxu0 0.0
    %883 = vmatpush1.msra.mxu0 0.0
    %884 = vmatprep.subr.mxu0 0.0
    %885 = vmatpush1.msra.mxu0 0.0
    %886 = vmatprep.subr.mxu0 0.0
    %887 = vmatpush1.msra.mxu0 0.0
    %888 = vmatprep.subr.mxu0 0.0
    %889 = vmatpush1.msra.mxu0 0.0
    %890 = vmatprep.subr.mxu0 0.0
    %891 = vmatpush1.msra.mxu0 0.0
    %892 = vmatprep.subr.mxu0 0.0
    %893 = vmatpush1.msra.mxu0 0.0
    %894 = vmatprep.subr.mxu0 0.0
    %895 = vmatpush1.msra.mxu0 0.0
    %896 = vmatprep.subr.mxu0 0.0
    %897 = vmatpush1.msra.mxu0 0.0
    %898 = vmatprep.subr.mxu0 0.0
    %899 = vmatpush1.msra.mxu0 0.0
    %900 = vmatprep.subr.mxu0 0.0
    %901 = vmatpush1.msra.mxu0 %v441
    %902 = vmatprep.subr.mxu0 0.0
    %903 = vmatpush1.msra.mxu0 %v440
    %904 = vmatprep.subr.mxu0 0.0
    %905 = vmatpush1.msra.mxu0 %v439
    %906 = vmatprep.subr.mxu0 0.0
    %907 = vmatpush1.msra.mxu0 %v438
    %908 = vmatprep.subr.mxu0 0.0
    %909 = vmatpush2.msra.mxu0 0.0
    %910 = vmatprep.subr.mxu0 0.0
    %911 = vmatpush2.msra.mxu0 0.0
    %912 = vmatprep.subr.mxu0 0.0
    %913 = vmatpush2.msra.mxu0 0.0
    %914 = vmatprep.subr.mxu0 0.0
    %915 = vmatpush2.msra.mxu0 0.0
    %916 = vmatprep.subr.mxu0 0.0
    %917 = vmatpush2.msra.mxu0 0.0
    %918 = vmatprep.subr.mxu0 0.0
    %919 = vmatpush2.msra.mxu0 0.0
    %920 = vmatprep.subr.mxu0 0.0
    %921 = vmatpush2.msra.mxu0 0.0
    %922 = vmatprep.subr.mxu0 0.0
    %923 = vmatpush2.msra.mxu0 0.0
    %924 = vmatprep.subr.mxu0 0.0
    %925 = vmatpush2.msra.mxu0 0.0
    %926 = vmatprep.subr.mxu0 0.0
    %927 = vmatpush2.msra.mxu0 0.0
    %928 = vmatprep.subr.mxu0 0.0
    %929 = vmatpush2.msra.mxu0 0.0
    %930 = vmatprep.subr.mxu0 0.0
    %931 = vmatpush2.msra.mxu0 0.0
    %932 = vmatprep.subr.mxu0 0.0
    %933 = vmatpush2.msra.mxu0 0.0
    %934 = vmatprep.subr.mxu0 0.0
    %935 = vmatpush2.msra.mxu0 0.0
    %936 = vmatprep.subr.mxu0 0.0
    %937 = vmatpush2.msra.mxu0 0.0
    %938 = vmatprep.subr.mxu0 0.0
    %939 = vmatpush2.msra.mxu0 0.0
    %940 = vmatprep.mubr.f32.mxu0 0.0
    %941 = vmatmul.mubr.f32.gmra.mxu0 %v874
    %v942 = vpop.f32.mrf.mxu0
    %v943 = vadd.f32 0.0, %v942
    %v944 = vpop.f32.mrf.mxu0
    %945 = vdwg.mxu0
    %v946 = vadd.f32 %v404, %v943
    %v947 = vadd.f32 %v946, %v526
    %948 = vrot.lane.b32.xlu0 %v863, 32
    %v949 = vpop.permute.xlu0 %948
    %v950 = vsel %vm83, %v949, 0
    %952 = vmatprep.subr.mxu0 0.0
    %953 = vmatpush1.msra.mxu0 0.0
    %954 = vmatprep.subr.mxu0 0.0
    %955 = vmatpush1.msra.mxu0 0.0
    %956 = vmatprep.subr.mxu0 0.0
    %957 = vmatpush1.msra.mxu0 0.0
    %958 = vmatprep.subr.mxu0 0.0
    %959 = vmatpush1.msra.mxu0 0.0
    %960 = vmatprep.subr.mxu0 0.0
    %961 = vmatpush1.msra.mxu0 0.0
    %962 = vmatprep.subr.mxu0 0.0
    %963 = vmatpush1.msra.mxu0 0.0
    %964 = vmatprep.subr.mxu0 0.0
    %965 = vmatpush1.msra.mxu0 0.0
    %966 = vmatprep.subr.mxu0 0.0
    %967 = vmatpush1.msra.mxu0 0.0
    %968 = vmatprep.subr.mxu0 0.0
    %969 = vmatpush1.msra.mxu0 0.0
    %970 = vmatprep.subr.mxu0 0.0
    %971 = vmatpush1.msra.mxu0 0.0
    %972 = vmatprep.subr.mxu0 0.0
    %973 = vmatpush1.msra.mxu0 0.0
    %974 = vmatprep.subr.mxu0 0.0
    %975 = vmatpush1.msra.mxu0 0.0
    %976 = vmatprep.subr.mxu0 0.0
    %977 = vmatpush1.msra.mxu0 %v445
    %978 = vmatprep.subr.mxu0 0.0
    %979 = vmatpush1.msra.mxu0 %v444
    %980 = vmatprep.subr.mxu0 0.0
    %981 = vmatpush1.msra.mxu0 %v443
    %982 = vmatprep.subr.mxu0 0.0
    %983 = vmatpush1.msra.mxu0 %v442
    %984 = vmatprep.subr.mxu0 0.0
    %985 = vmatpush2.msra.mxu0 0.0
    %986 = vmatprep.subr.mxu0 0.0
    %987 = vmatpush2.msra.mxu0 0.0
    %988 = vmatprep.subr.mxu0 0.0
    %989 = vmatpush2.msra.mxu0 0.0
    %990 = vmatprep.subr.mxu0 0.0
    %991 = vmatpush2.msra.mxu0 0.0
    %992 = vmatprep.subr.mxu0 0.0
    %993 = vmatpush2.msra.mxu0 0.0
    %994 = vmatprep.subr.mxu0 0.0
    %995 = vmatpush2.msra.mxu0 0.0
    %996 = vmatprep.subr.mxu0 0.0
    %997 = vmatpush2.msra.mxu0 0.0
    %998 = vmatprep.subr.mxu0 0.0
    %999 = vmatpush2.msra.mxu0 0.0
    %1000 = vmatprep.subr.mxu0 0.0
    %1001 = vmatpush2.msra.mxu0 0.0
    %1002 = vmatprep.subr.mxu0 0.0
    %1003 = vmatpush2.msra.mxu0 0.0
    %1004 = vmatprep.subr.mxu0 0.0
    %1005 = vmatpush2.msra.mxu0 0.0
    %1006 = vmatprep.subr.mxu0 0.0
    %1007 = vmatpush2.msra.mxu0 0.0
    %1008 = vmatprep.subr.mxu0 0.0
    %1009 = vmatpush2.msra.mxu0 0.0
    %1010 = vmatprep.subr.mxu0 0.0
    %1011 = vmatpush2.msra.mxu0 0.0
    %1012 = vmatprep.subr.mxu0 0.0
    %1013 = vmatpush2.msra.mxu0 0.0
    %1014 = vmatprep.subr.mxu0 0.0
    %1015 = vmatpush2.msra.mxu0 0.0
    %1016 = vmatprep.mubr.f32.mxu0 0.0
    %1017 = vmatmul.mubr.f32.gmra.mxu0 %v950
    %v1018 = vpop.f32.mrf.mxu0
    %v1019 = vadd.f32 0.0, %v1018
    %v1020 = vpop.f32.mrf.mxu0
    %1021 = vdwg.mxu0
    %v1022 = vadd.f32 %v424, %v1019
    %v1023 = vadd.f32 %v1022, %v604
    %v1024 = vxor.u32 %v947, 2147483648
    %v1025 = vmul.f32 %v1024, 1.442695
    %v1026 = vpow.pop %v1025
    %v1027 = vadd.f32 %v1026, 1.0
    %v1028 = vrcp.pop %v1027
    %v1029 = vmul.f32 1.0, %v1028
    %v1030 = vtanh.pop %v947
    %v1031 = vmul.f32 %v1029, %v833
    %1033 = vrot.lane.b32.xlu0 %v1030, 64
    %v1034 = vpop.permute.xlu0 %1033
    %v1036 = vmul.f32 %v1029, %v1034
    %1038 = vrot.lane.b32.xlu0 %v1036, 32
    %v1039 = vpop.permute.xlu0 %1038
    %v1041 = vadd.f32 %v1031, %v1039
    %v1042 = vtanh.pop %v1041
    %1044 = vrot.lane.b32.xlu0 %v1042, 64
    %v1045 = vpop.permute.xlu0 %1044
    %v1047 = vmul.f32 %v1029, %v1045
    %v1048 = vxor.u32 %v1023, 2147483648
    %v1049 = vmul.f32 %v1048, 1.442695
    %v1050 = vpow.pop %v1049
    %v1051 = vadd.f32 %v1050, 1.0
    %v1052 = vrcp.pop %v1051
    %v1053 = vmul.f32 1.0, %v1052
    %v1054 = vtanh.pop %v1023
    %v1055 = vmul.f32 %v1053, %v857
    %1057 = vrot.lane.b32.xlu0 %v1054, 64
    %v1058 = vpop.permute.xlu0 %1057
    %v1060 = vmul.f32 %v1053, %v1058
    %1062 = vrot.lane.b32.xlu0 %v1060, 32
    %v1063 = vpop.permute.xlu0 %1062
    %v1065 = vadd.f32 %v1055, %v1063
    %v1066 = vtanh.pop %v1065
    %1068 = vrot.lane.b32.xlu0 %v1066, 64
    %v1069 = vpop.permute.xlu0 %1068
    %v1071 = vmul.f32 %v1053, %v1069
    %1073 = vrot.lane.b32.xlu0 %v1047, 32
    %v1074 = vpop.permute.xlu0 %1073
    %1076 = vst.msk [vmem:[#allocation2 + $0x10] sm:$0xff] %vm83, %v1074
    %1078 = vrot.lane.b32.xlu0 %v1071, 64
    %v1079 = vpop.permute.xlu0 %1078
    %1081 = vst.msk [vmem:[#allocation2 + $0x28] sm:$0xff] %vm664, %v1079
    %v1082 = vsel %vm83, %v1074, 0
    %1084 = vmatprep.subr.mxu0 0.0
    %1085 = vmatpush1.msra.mxu0 0.0
    %1086 = vmatprep.subr.mxu0 0.0
    %1087 = vmatpush1.msra.mxu0 0.0
    %1088 = vmatprep.subr.mxu0 0.0
    %1089 = vmatpush1.msra.mxu0 0.0
    %1090 = vmatprep.subr.mxu0 0.0
    %1091 = vmatpush1.msra.mxu0 0.0
    %1092 = vmatprep.subr.mxu0 0.0
    %1093 = vmatpush1.msra.mxu0 0.0
    %1094 = vmatprep.subr.mxu0 0.0
    %1095 = vmatpush1.msra.mxu0 0.0
    %1096 = vmatprep.subr.mxu0 0.0
    %1097 = vmatpush1.msra.mxu0 0.0
    %1098 = vmatprep.subr.mxu0 0.0
    %1099 = vmatpush1.msra.mxu0 0.0
    %1100 = vmatprep.subr.mxu0 0.0
    %1101 = vmatpush1.msra.mxu0 0.0
    %1102 = vmatprep.subr.mxu0 0.0
    %1103 = vmatpush1.msra.mxu0 0.0
    %1104 = vmatprep.subr.mxu0 0.0
    %1105 = vmatpush1.msra.mxu0 0.0
    %1106 = vmatprep.subr.mxu0 0.0
    %1107 = vmatpush1.msra.mxu0 0.0
    %1108 = vmatprep.subr.mxu0 0.0
    %1109 = vmatpush1.msra.mxu0 %v441
    %1110 = vmatprep.subr.mxu0 0.0
    %1111 = vmatpush1.msra.mxu0 %v440
    %1112 = vmatprep.subr.mxu0 0.0
    %1113 = vmatpush1.msra.mxu0 %v439
    %1114 = vmatprep.subr.mxu0 0.0
    %1115 = vmatpush1.msra.mxu0 %v438
    %1116 = vmatprep.subr.mxu0 0.0
    %1117 = vmatpush2.msra.mxu0 0.0
    %1118 = vmatprep.subr.mxu0 0.0
    %1119 = vmatpush2.msra.mxu0 0.0
    %1120 = vmatprep.subr.mxu0 0.0
    %1121 = vmatpush2.msra.mxu0 0.0
    %1122 = vmatprep.subr.mxu0 0.0
    %1123 = vmatpush2.msra.mxu0 0.0
    %1124 = vmatprep.subr.mxu0 0.0
    %1125 = vmatpush2.msra.mxu0 0.0
    %1126 = vmatprep.subr.mxu0 0.0
    %1127 = vmatpush2.msra.mxu0 0.0
    %1128 = vmatprep.subr.mxu0 0.0
    %1129 = vmatpush2.msra.mxu0 0.0
    %1130 = vmatprep.subr.mxu0 0.0
    %1131 = vmatpush2.msra.mxu0 0.0
    %1132 = vmatprep.subr.mxu0 0.0
    %1133 = vmatpush2.msra.mxu0 0.0
    %1134 = vmatprep.subr.mxu0 0.0
    %1135 = vmatpush2.msra.mxu0 0.0
    %1136 = vmatprep.subr.mxu0 0.0
    %1137 = vmatpush2.msra.mxu0 0.0
    %1138 = vmatprep.subr.mxu0 0.0
    %1139 = vmatpush2.msra.mxu0 0.0
    %1140 = vmatprep.subr.mxu0 0.0
    %1141 = vmatpush2.msra.mxu0 0.0
    %1142 = vmatprep.subr.mxu0 0.0
    %1143 = vmatpush2.msra.mxu0 0.0
    %1144 = vmatprep.subr.mxu0 0.0
    %1145 = vmatpush2.msra.mxu0 0.0
    %1146 = vmatprep.subr.mxu0 0.0
    %1147 = vmatpush2.msra.mxu0 0.0
    %1148 = vmatprep.mubr.f32.mxu0 0.0
    %1149 = vmatmul.mubr.f32.gmra.mxu0 %v1082
    %v1150 = vpop.f32.mrf.mxu0
    %v1151 = vadd.f32 0.0, %v1150
    %v1152 = vpop.f32.mrf.mxu0
    %1153 = vdwg.mxu0
    %v1154 = vadd.f32 %v410, %v1151
    %v1155 = vadd.f32 %v1154, %v526
    %1156 = vrot.lane.b32.xlu0 %v1071, 32
    %v1157 = vpop.permute.xlu0 %1156
    %v1158 = vsel %vm83, %v1157, 0
    %1160 = vmatprep.subr.mxu0 0.0
    %1161 = vmatpush1.msra.mxu0 0.0
    %1162 = vmatprep.subr.mxu0 0.0
    %1163 = vmatpush1.msra.mxu0 0.0
    %1164 = vmatprep.subr.mxu0 0.0
    %1165 = vmatpush1.msra.mxu0 0.0
    %1166 = vmatprep.subr.mxu0 0.0
    %1167 = vmatpush1.msra.mxu0 0.0
    %1168 = vmatprep.subr.mxu0 0.0
    %1169 = vmatpush1.msra.mxu0 0.0
    %1170 = vmatprep.subr.mxu0 0.0
    %1171 = vmatpush1.msra.mxu0 0.0
    %1172 = vmatprep.subr.mxu0 0.0
    %1173 = vmatpush1.msra.mxu0 0.0
    %1174 = vmatprep.subr.mxu0 0.0
    %1175 = vmatpush1.msra.mxu0 0.0
    %1176 = vmatprep.subr.mxu0 0.0
    %1177 = vmatpush1.msra.mxu0 0.0
    %1178 = vmatprep.subr.mxu0 0.0
    %1179 = vmatpush1.msra.mxu0 0.0
    %1180 = vmatprep.subr.mxu0 0.0
    %1181 = vmatpush1.msra.mxu0 0.0
    %1182 = vmatprep.subr.mxu0 0.0
    %1183 = vmatpush1.msra.mxu0 0.0
    %1184 = vmatprep.subr.mxu0 0.0
    %1185 = vmatpush1.msra.mxu0 %v445
    %1186 = vmatprep.subr.mxu0 0.0
    %1187 = vmatpush1.msra.mxu0 %v444
    %1188 = vmatprep.subr.mxu0 0.0
    %1189 = vmatpush1.msra.mxu0 %v443
    %1190 = vmatprep.subr.mxu0 0.0
    %1191 = vmatpush1.msra.mxu0 %v442
    %1192 = vmatprep.subr.mxu0 0.0
    %1193 = vmatpush2.msra.mxu0 0.0
    %1194 = vmatprep.subr.mxu0 0.0
    %1195 = vmatpush2.msra.mxu0 0.0
    %1196 = vmatprep.subr.mxu0 0.0
    %1197 = vmatpush2.msra.mxu0 0.0
    %1198 = vmatprep.subr.mxu0 0.0
    %1199 = vmatpush2.msra.mxu0 0.0
    %1200 = vmatprep.subr.mxu0 0.0
    %1201 = vmatpush2.msra.mxu0 0.0
    %1202 = vmatprep.subr.mxu0 0.0
    %1203 = vmatpush2.msra.mxu0 0.0
    %1204 = vmatprep.subr.mxu0 0.0
    %1205 = vmatpush2.msra.mxu0 0.0
    %1206 = vmatprep.subr.mxu0 0.0
    %1207 = vmatpush2.msra.mxu0 0.0
    %1208 = vmatprep.subr.mxu0 0.0
    %1209 = vmatpush2.msra.mxu0 0.0
    %1210 = vmatprep.subr.mxu0 0.0
    %1211 = vmatpush2.msra.mxu0 0.0
    %1212 = vmatprep.subr.mxu0 0.0
    %1213 = vmatpush2.msra.mxu0 0.0
    %1214 = vmatprep.subr.mxu0 0.0
    %1215 = vmatpush2.msra.mxu0 0.0
    %1216 = vmatprep.subr.mxu0 0.0
    %1217 = vmatpush2.msra.mxu0 0.0
    %1218 = vmatprep.subr.mxu0 0.0
    %1219 = vmatpush2.msra.mxu0 0.0
    %1220 = vmatprep.subr.mxu0 0.0
    %1221 = vmatpush2.msra.mxu0 0.0
    %1222 = vmatprep.subr.mxu0 0.0
    %1223 = vmatpush2.msra.mxu0 0.0
    %1224 = vmatprep.mubr.f32.mxu0 0.0
    %1225 = vmatmul.mubr.f32.gmra.mxu0 %v1158
    %v1226 = vpop.f32.mrf.mxu0
    %v1227 = vadd.f32 0.0, %v1226
    %v1228 = vpop.f32.mrf.mxu0
    %1229 = vdwg.mxu0
    %v1230 = vadd.f32 %v418, %v1227
    %v1231 = vadd.f32 %v1230, %v604
    %v1232 = vxor.u32 %v1155, 2147483648
    %v1233 = vmul.f32 %v1232, 1.442695
    %v1234 = vpow.pop %v1233
    %v1235 = vadd.f32 %v1234, 1.0
    %v1236 = vrcp.pop %v1235
    %v1237 = vmul.f32 1.0, %v1236
    %v1238 = vtanh.pop %v1155
    %v1239 = vmul.f32 %v1237, %v1041
    %1241 = vrot.lane.b32.xlu0 %v1238, 64
    %v1242 = vpop.permute.xlu0 %1241
    %v1244 = vmul.f32 %v1237, %v1242
    %1246 = vrot.lane.b32.xlu0 %v1244, 32
    %v1247 = vpop.permute.xlu0 %1246
    %v1249 = vadd.f32 %v1239, %v1247
    %v1250 = vtanh.pop %v1249
    %1252 = vrot.lane.b32.xlu0 %v1250, 64
    %v1253 = vpop.permute.xlu0 %1252
    %v1255 = vmul.f32 %v1237, %v1253
    %v1256 = vxor.u32 %v1231, 2147483648
    %v1257 = vmul.f32 %v1256, 1.442695
    %v1258 = vpow.pop %v1257
    %v1259 = vadd.f32 %v1258, 1.0
    %v1260 = vrcp.pop %v1259
    %v1261 = vmul.f32 1.0, %v1260
    %v1262 = vtanh.pop %v1231
    %v1263 = vmul.f32 %v1261, %v1065
    %1265 = vrot.lane.b32.xlu0 %v1262, 64
    %v1266 = vpop.permute.xlu0 %1265
    %v1268 = vmul.f32 %v1261, %v1266
    %1270 = vrot.lane.b32.xlu0 %v1268, 32
    %v1271 = vpop.permute.xlu0 %1270
    %v1273 = vadd.f32 %v1263, %v1271
    %v1274 = vtanh.pop %v1273
    %1276 = vrot.lane.b32.xlu0 %v1274, 64
    %v1277 = vpop.permute.xlu0 %1276
    %v1279 = vmul.f32 %v1261, %v1277
    %1281 = vrot.lane.b32.xlu0 %v1255, 32
    %v1282 = vpop.permute.xlu0 %1281
    %1284 = vst.msk [vmem:[#allocation2 + $0x18] sm:$0xff] %vm83, %v1282
    %1286 = vrot.lane.b32.xlu0 %v1279, 64
    %v1287 = vpop.permute.xlu0 %1286
    %1289 = vst.msk [vmem:[#allocation2 + $0x20] sm:$0xff] %vm664, %v1287
    %v1290 = vsel %vm83, %v1282, 0
    %1292 = vmatprep.subr.mxu0 0.0
    %1293 = vmatpush1.msra.mxu0 0.0
    %1294 = vmatprep.subr.mxu0 0.0
    %1295 = vmatpush1.msra.mxu0 0.0
    %1296 = vmatprep.subr.mxu0 0.0
    %1297 = vmatpush1.msra.mxu0 0.0
    %1298 = vmatprep.subr.mxu0 0.0
    %1299 = vmatpush1.msra.mxu0 0.0
    %1300 = vmatprep.subr.mxu0 0.0
    %1301 = vmatpush1.msra.mxu0 0.0
    %1302 = vmatprep.subr.mxu0 0.0
    %1303 = vmatpush1.msra.mxu0 0.0
    %1304 = vmatprep.subr.mxu0 0.0
    %1305 = vmatpush1.msra.mxu0 0.0
    %1306 = vmatprep.subr.mxu0 0.0
    %1307 = vmatpush1.msra.mxu0 0.0
    %1308 = vmatprep.subr.mxu0 0.0
    %1309 = vmatpush1.msra.mxu0 0.0
    %1310 = vmatprep.subr.mxu0 0.0
    %1311 = vmatpush1.msra.mxu0 0.0
    %1312 = vmatprep.subr.mxu0 0.0
    %1313 = vmatpush1.msra.mxu0 0.0
    %1314 = vmatprep.subr.mxu0 0.0
    %1315 = vmatpush1.msra.mxu0 0.0
    %1316 = vmatprep.subr.mxu0 0.0
    %1317 = vmatpush1.msra.mxu0 %v441
    %1318 = vmatprep.subr.mxu0 0.0
    %1319 = vmatpush1.msra.mxu0 %v440
    %1320 = vmatprep.subr.mxu0 0.0
    %1321 = vmatpush1.msra.mxu0 %v439
    %1322 = vmatprep.subr.mxu0 0.0
    %1323 = vmatpush1.msra.mxu0 %v438
    %1324 = vmatprep.subr.mxu0 0.0
    %1325 = vmatpush2.msra.mxu0 0.0
    %1326 = vmatprep.subr.mxu0 0.0
    %1327 = vmatpush2.msra.mxu0 0.0
    %1328 = vmatprep.subr.mxu0 0.0
    %1329 = vmatpush2.msra.mxu0 0.0
    %1330 = vmatprep.subr.mxu0 0.0
    %1331 = vmatpush2.msra.mxu0 0.0
    %1332 = vmatprep.subr.mxu0 0.0
    %1333 = vmatpush2.msra.mxu0 0.0
    %1334 = vmatprep.subr.mxu0 0.0
    %1335 = vmatpush2.msra.mxu0 0.0
    %1336 = vmatprep.subr.mxu0 0.0
    %1337 = vmatpush2.msra.mxu0 0.0
    %1338 = vmatprep.subr.mxu0 0.0
    %1339 = vmatpush2.msra.mxu0 0.0
    %1340 = vmatprep.subr.mxu0 0.0
    %1341 = vmatpush2.msra.mxu0 0.0
    %1342 = vmatprep.subr.mxu0 0.0
    %1343 = vmatpush2.msra.mxu0 0.0
    %1344 = vmatprep.subr.mxu0 0.0
    %1345 = vmatpush2.msra.mxu0 0.0
    %1346 = vmatprep.subr.mxu0 0.0
    %1347 = vmatpush2.msra.mxu0 0.0
    %1348 = vmatprep.subr.mxu0 0.0
    %1349 = vmatpush2.msra.mxu0 0.0
    %1350 = vmatprep.subr.mxu0 0.0
    %1351 = vmatpush2.msra.mxu0 0.0
    %1352 = vmatprep.subr.mxu0 0.0
    %1353 = vmatpush2.msra.mxu0 0.0
    %1354 = vmatprep.subr.mxu0 0.0
    %1355 = vmatpush2.msra.mxu0 0.0
    %1356 = vmatprep.mubr.f32.mxu0 0.0
    %1357 = vmatmul.mubr.f32.gmra.mxu0 %v1290
    %v1358 = vpop.f32.mrf.mxu0
    %v1359 = vadd.f32 0.0, %v1358
    %v1360 = vpop.f32.mrf.mxu0
    %1361 = vdwg.mxu0
    %v1362 = vadd.f32 %v416, %v1359
    %v1363 = vadd.f32 %v1362, %v526
    %1364 = vrot.lane.b32.xlu0 %v1279, 32
    %v1365 = vpop.permute.xlu0 %1364
    %v1366 = vsel %vm83, %v1365, 0
    %1368 = vmatprep.subr.mxu0 0.0
    %1369 = vmatpush1.msra.mxu0 0.0
    %1370 = vmatprep.subr.mxu0 0.0
    %1371 = vmatpush1.msra.mxu0 0.0
    %1372 = vmatprep.subr.mxu0 0.0
    %1373 = vmatpush1.msra.mxu0 0.0
    %1374 = vmatprep.subr.mxu0 0.0
    %1375 = vmatpush1.msra.mxu0 0.0
    %1376 = vmatprep.subr.mxu0 0.0
    %1377 = vmatpush1.msra.mxu0 0.0
    %1378 = vmatprep.subr.mxu0 0.0
    %1379 = vmatpush1.msra.mxu0 0.0
    %1380 = vmatprep.subr.mxu0 0.0
    %1381 = vmatpush1.msra.mxu0 0.0
    %1382 = vmatprep.subr.mxu0 0.0
    %1383 = vmatpush1.msra.mxu0 0.0
    %1384 = vmatprep.subr.mxu0 0.0
    %1385 = vmatpush1.msra.mxu0 0.0
    %1386 = vmatprep.subr.mxu0 0.0
    %1387 = vmatpush1.msra.mxu0 0.0
    %1388 = vmatprep.subr.mxu0 0.0
    %1389 = vmatpush1.msra.mxu0 0.0
    %1390 = vmatprep.subr.mxu0 0.0
    %1391 = vmatpush1.msra.mxu0 0.0
    %1392 = vmatprep.subr.mxu0 0.0
    %1393 = vmatpush1.msra.mxu0 %v445
    %1394 = vmatprep.subr.mxu0 0.0
    %1395 = vmatpush1.msra.mxu0 %v444
    %1396 = vmatprep.subr.mxu0 0.0
    %1397 = vmatpush1.msra.mxu0 %v443
    %1398 = vmatprep.subr.mxu0 0.0
    %1399 = vmatpush1.msra.mxu0 %v442
    %1400 = vmatprep.subr.mxu0 0.0
    %1401 = vmatpush2.msra.mxu0 0.0
    %1402 = vmatprep.subr.mxu0 0.0
    %1403 = vmatpush2.msra.mxu0 0.0
    %1404 = vmatprep.subr.mxu0 0.0
    %1405 = vmatpush2.msra.mxu0 0.0
    %1406 = vmatprep.subr.mxu0 0.0
    %1407 = vmatpush2.msra.mxu0 0.0
    %1408 = vmatprep.subr.mxu0 0.0
    %1409 = vmatpush2.msra.mxu0 0.0
    %1410 = vmatprep.subr.mxu0 0.0
    %1411 = vmatpush2.msra.mxu0 0.0
    %1412 = vmatprep.subr.mxu0 0.0
    %1413 = vmatpush2.msra.mxu0 0.0
    %1414 = vmatprep.subr.mxu0 0.0
    %1415 = vmatpush2.msra.mxu0 0.0
    %1416 = vmatprep.subr.mxu0 0.0
    %1417 = vmatpush2.msra.mxu0 0.0
    %1418 = vmatprep.subr.mxu0 0.0
    %1419 = vmatpush2.msra.mxu0 0.0
    %1420 = vmatprep.subr.mxu0 0.0
    %1421 = vmatpush2.msra.mxu0 0.0
    %1422 = vmatprep.subr.mxu0 0.0
    %1423 = vmatpush2.msra.mxu0 0.0
    %1424 = vmatprep.subr.mxu0 0.0
    %1425 = vmatpush2.msra.mxu0 0.0
    %1426 = vmatprep.subr.mxu0 0.0
    %1427 = vmatpush2.msra.mxu0 0.0
    %1428 = vmatprep.subr.mxu0 0.0
    %1429 = vmatpush2.msra.mxu0 0.0
    %1430 = vmatprep.subr.mxu0 0.0
    %1431 = vmatpush2.msra.mxu0 0.0
    %1432 = vmatprep.mubr.f32.mxu0 0.0
    %1433 = vmatmul.mubr.f32.gmra.mxu0 %v1366
    %v1434 = vpop.f32.mrf.mxu0
    %v1435 = vadd.f32 0.0, %v1434
    %v1436 = vpop.f32.mrf.mxu0
    %1437 = vdwg.mxu0
    %v1438 = vadd.f32 %v412, %v1435
    %v1439 = vadd.f32 %v1438, %v604
    %v1440 = vxor.u32 %v1363, 2147483648
    %v1441 = vmul.f32 %v1440, 1.442695
    %v1442 = vpow.pop %v1441
    %v1443 = vadd.f32 %v1442, 1.0
    %v1444 = vrcp.pop %v1443
    %v1445 = vmul.f32 1.0, %v1444
    %v1446 = vtanh.pop %v1363
    %v1447 = vmul.f32 %v1445, %v1249
    %1449 = vrot.lane.b32.xlu0 %v1446, 64
    %v1450 = vpop.permute.xlu0 %1449
    %v1452 = vmul.f32 %v1445, %v1450
    %1454 = vrot.lane.b32.xlu0 %v1452, 32
    %v1455 = vpop.permute.xlu0 %1454
    %v1457 = vadd.f32 %v1447, %v1455
    %v1458 = vtanh.pop %v1457
    %1460 = vrot.lane.b32.xlu0 %v1458, 64
    %v1461 = vpop.permute.xlu0 %1460
    %v1463 = vmul.f32 %v1445, %v1461
    %v1464 = vxor.u32 %v1439, 2147483648
    %v1465 = vmul.f32 %v1464, 1.442695
    %v1466 = vpow.pop %v1465
    %v1467 = vadd.f32 %v1466, 1.0
    %v1468 = vrcp.pop %v1467
    %v1469 = vmul.f32 1.0, %v1468
    %v1470 = vtanh.pop %v1439
    %v1471 = vmul.f32 %v1469, %v1273
    %1473 = vrot.lane.b32.xlu0 %v1470, 64
    %v1474 = vpop.permute.xlu0 %1473
    %v1476 = vmul.f32 %v1469, %v1474
    %1478 = vrot.lane.b32.xlu0 %v1476, 32
    %v1479 = vpop.permute.xlu0 %1478
    %v1481 = vadd.f32 %v1471, %v1479
    %v1482 = vtanh.pop %v1481
    %1484 = vrot.lane.b32.xlu0 %v1482, 64
    %v1485 = vpop.permute.xlu0 %1484
    %v1487 = vmul.f32 %v1469, %v1485
    %1489 = vrot.lane.b32.xlu0 %v1463, 32
    %v1490 = vpop.permute.xlu0 %1489
    %1492 = vst.msk [vmem:[#allocation2 + $0x20] sm:$0xff] %vm83, %v1490
    %1494 = vrot.lane.b32.xlu0 %v1487, 64
    %v1495 = vpop.permute.xlu0 %1494
    %1497 = vst.msk [vmem:[#allocation2 + $0x18] sm:$0xff] %vm664, %v1495
    %v1498 = vsel %vm83, %v1490, 0
    %1500 = vmatprep.subr.mxu0 0.0
    %1501 = vmatpush1.msra.mxu0 0.0
    %1502 = vmatprep.subr.mxu0 0.0
    %1503 = vmatpush1.msra.mxu0 0.0
    %1504 = vmatprep.subr.mxu0 0.0
    %1505 = vmatpush1.msra.mxu0 0.0
    %1506 = vmatprep.subr.mxu0 0.0
    %1507 = vmatpush1.msra.mxu0 0.0
    %1508 = vmatprep.subr.mxu0 0.0
    %1509 = vmatpush1.msra.mxu0 0.0
    %1510 = vmatprep.subr.mxu0 0.0
    %1511 = vmatpush1.msra.mxu0 0.0
    %1512 = vmatprep.subr.mxu0 0.0
    %1513 = vmatpush1.msra.mxu0 0.0
    %1514 = vmatprep.subr.mxu0 0.0
    %1515 = vmatpush1.msra.mxu0 0.0
    %1516 = vmatprep.subr.mxu0 0.0
    %1517 = vmatpush1.msra.mxu0 0.0
    %1518 = vmatprep.subr.mxu0 0.0
    %1519 = vmatpush1.msra.mxu0 0.0
    %1520 = vmatprep.subr.mxu0 0.0
    %1521 = vmatpush1.msra.mxu0 0.0
    %1522 = vmatprep.subr.mxu0 0.0
    %1523 = vmatpush1.msra.mxu0 0.0
    %1524 = vmatprep.subr.mxu0 0.0
    %1525 = vmatpush1.msra.mxu0 %v441
    %1526 = vmatprep.subr.mxu0 0.0
    %1527 = vmatpush1.msra.mxu0 %v440
    %1528 = vmatprep.subr.mxu0 0.0
    %1529 = vmatpush1.msra.mxu0 %v439
    %1530 = vmatprep.subr.mxu0 0.0
    %1531 = vmatpush1.msra.mxu0 %v438
    %1532 = vmatprep.subr.mxu0 0.0
    %1533 = vmatpush2.msra.mxu0 0.0
    %1534 = vmatprep.subr.mxu0 0.0
    %1535 = vmatpush2.msra.mxu0 0.0
    %1536 = vmatprep.subr.mxu0 0.0
    %1537 = vmatpush2.msra.mxu0 0.0
    %1538 = vmatprep.subr.mxu0 0.0
    %1539 = vmatpush2.msra.mxu0 0.0
    %1540 = vmatprep.subr.mxu0 0.0
    %1541 = vmatpush2.msra.mxu0 0.0
    %1542 = vmatprep.subr.mxu0 0.0
    %1543 = vmatpush2.msra.mxu0 0.0
    %1544 = vmatprep.subr.mxu0 0.0
    %1545 = vmatpush2.msra.mxu0 0.0
    %1546 = vmatprep.subr.mxu0 0.0
    %1547 = vmatpush2.msra.mxu0 0.0
    %1548 = vmatprep.subr.mxu0 0.0
    %1549 = vmatpush2.msra.mxu0 0.0
    %1550 = vmatprep.subr.mxu0 0.0
    %1551 = vmatpush2.msra.mxu0 0.0
    %1552 = vmatprep.subr.mxu0 0.0
    %1553 = vmatpush2.msra.mxu0 0.0
    %1554 = vmatprep.subr.mxu0 0.0
    %1555 = vmatpush2.msra.mxu0 0.0
    %1556 = vmatprep.subr.mxu0 0.0
    %1557 = vmatpush2.msra.mxu0 0.0
    %1558 = vmatprep.subr.mxu0 0.0
    %1559 = vmatpush2.msra.mxu0 0.0
    %1560 = vmatprep.subr.mxu0 0.0
    %1561 = vmatpush2.msra.mxu0 0.0
    %1562 = vmatprep.subr.mxu0 0.0
    %1563 = vmatpush2.msra.mxu0 0.0
    %1564 = vmatprep.mubr.f32.mxu0 0.0
    %1565 = vmatmul.mubr.f32.gmra.mxu0 %v1498
    %v1566 = vpop.f32.mrf.mxu0
    %v1567 = vadd.f32 0.0, %v1566
    %v1568 = vpop.f32.mrf.mxu0
    %1569 = vdwg.mxu0
    %v1570 = vadd.f32 %v422, %v1567
    %v1571 = vadd.f32 %v1570, %v526
    %1572 = vrot.lane.b32.xlu0 %v1487, 32
    %v1573 = vpop.permute.xlu0 %1572
    %v1574 = vsel %vm83, %v1573, 0
    %1576 = vmatprep.subr.mxu0 0.0
    %1577 = vmatpush1.msra.mxu0 0.0
    %1578 = vmatprep.subr.mxu0 0.0
    %1579 = vmatpush1.msra.mxu0 0.0
    %1580 = vmatprep.subr.mxu0 0.0
    %1581 = vmatpush1.msra.mxu0 0.0
    %1582 = vmatprep.subr.mxu0 0.0
    %1583 = vmatpush1.msra.mxu0 0.0
    %1584 = vmatprep.subr.mxu0 0.0
    %1585 = vmatpush1.msra.mxu0 0.0
    %1586 = vmatprep.subr.mxu0 0.0
    %1587 = vmatpush1.msra.mxu0 0.0
    %1588 = vmatprep.subr.mxu0 0.0
    %1589 = vmatpush1.msra.mxu0 0.0
    %1590 = vmatprep.subr.mxu0 0.0
    %1591 = vmatpush1.msra.mxu0 0.0
    %1592 = vmatprep.subr.mxu0 0.0
    %1593 = vmatpush1.msra.mxu0 0.0
    %1594 = vmatprep.subr.mxu0 0.0
    %1595 = vmatpush1.msra.mxu0 0.0
    %1596 = vmatprep.subr.mxu0 0.0
    %1597 = vmatpush1.msra.mxu0 0.0
    %1598 = vmatprep.subr.mxu0 0.0
    %1599 = vmatpush1.msra.mxu0 0.0
    %1600 = vmatprep.subr.mxu0 0.0
    %1601 = vmatpush1.msra.mxu0 %v445
    %1602 = vmatprep.subr.mxu0 0.0
    %1603 = vmatpush1.msra.mxu0 %v444
    %1604 = vmatprep.subr.mxu0 0.0
    %1605 = vmatpush1.msra.mxu0 %v443
    %1606 = vmatprep.subr.mxu0 0.0
    %1607 = vmatpush1.msra.mxu0 %v442
    %1608 = vmatprep.subr.mxu0 0.0
    %1609 = vmatpush2.msra.mxu0 0.0
    %1610 = vmatprep.subr.mxu0 0.0
    %1611 = vmatpush2.msra.mxu0 0.0
    %1612 = vmatprep.subr.mxu0 0.0
    %1613 = vmatpush2.msra.mxu0 0.0
    %1614 = vmatprep.subr.mxu0 0.0
    %1615 = vmatpush2.msra.mxu0 0.0
    %1616 = vmatprep.subr.mxu0 0.0
    %1617 = vmatpush2.msra.mxu0 0.0
    %1618 = vmatprep.subr.mxu0 0.0
    %1619 = vmatpush2.msra.mxu0 0.0
    %1620 = vmatprep.subr.mxu0 0.0
    %1621 = vmatpush2.msra.mxu0 0.0
    %1622 = vmatprep.subr.mxu0 0.0
    %1623 = vmatpush2.msra.mxu0 0.0
    %1624 = vmatprep.subr.mxu0 0.0
    %1625 = vmatpush2.msra.mxu0 0.0
    %1626 = vmatprep.subr.mxu0 0.0
    %1627 = vmatpush2.msra.mxu0 0.0
    %1628 = vmatprep.subr.mxu0 0.0
    %1629 = vmatpush2.msra.mxu0 0.0
    %1630 = vmatprep.subr.mxu0 0.0
    %1631 = vmatpush2.msra.mxu0 0.0
    %1632 = vmatprep.subr.mxu0 0.0
    %1633 = vmatpush2.msra.mxu0 0.0
    %1634 = vmatprep.subr.mxu0 0.0
    %1635 = vmatpush2.msra.mxu0 0.0
    %1636 = vmatprep.subr.mxu0 0.0
    %1637 = vmatpush2.msra.mxu0 0.0
    %1638 = vmatprep.subr.mxu0 0.0
    %1639 = vmatpush2.msra.mxu0 0.0
    %1640 = vmatprep.mubr.f32.mxu0 0.0
    %1641 = vmatmul.mubr.f32.gmra.mxu0 %v1574
    %v1642 = vpop.f32.mrf.mxu0
    %v1643 = vadd.f32 0.0, %v1642
    %v1644 = vpop.f32.mrf.mxu0
    %1645 = vdwg.mxu0
    %v1646 = vadd.f32 %v406, %v1643
    %v1647 = vadd.f32 %v1646, %v604
    %v1648 = vxor.u32 %v1571, 2147483648
    %v1649 = vmul.f32 %v1648, 1.442695
    %v1650 = vpow.pop %v1649
    %v1651 = vadd.f32 %v1650, 1.0
    %v1652 = vrcp.pop %v1651
    %v1653 = vmul.f32 1.0, %v1652
    %v1654 = vtanh.pop %v1571
    %v1655 = vmul.f32 %v1653, %v1457
    %1657 = vrot.lane.b32.xlu0 %v1654, 64
    %v1658 = vpop.permute.xlu0 %1657
    %v1660 = vmul.f32 %v1653, %v1658
    %1662 = vrot.lane.b32.xlu0 %v1660, 32
    %v1663 = vpop.permute.xlu0 %1662
    %v1665 = vadd.f32 %v1655, %v1663
    %v1666 = vtanh.pop %v1665
    %1668 = vrot.lane.b32.xlu0 %v1666, 64
    %v1669 = vpop.permute.xlu0 %1668
    %v1671 = vmul.f32 %v1653, %v1669
    %v1672 = vxor.u32 %v1647, 2147483648
    %v1673 = vmul.f32 %v1672, 1.442695
    %v1674 = vpow.pop %v1673
    %v1675 = vadd.f32 %v1674, 1.0
    %v1676 = vrcp.pop %v1675
    %v1677 = vmul.f32 1.0, %v1676
    %v1678 = vtanh.pop %v1647
    %v1679 = vmul.f32 %v1677, %v1481
    %1681 = vrot.lane.b32.xlu0 %v1678, 64
    %v1682 = vpop.permute.xlu0 %1681
    %v1684 = vmul.f32 %v1677, %v1682
    %1686 = vrot.lane.b32.xlu0 %v1684, 32
    %v1687 = vpop.permute.xlu0 %1686
    %v1689 = vadd.f32 %v1679, %v1687
    %v1690 = vtanh.pop %v1689
    %1692 = vrot.lane.b32.xlu0 %v1690, 64
    %v1693 = vpop.permute.xlu0 %1692
    %v1695 = vmul.f32 %v1677, %v1693
    %1697 = vrot.lane.b32.xlu0 %v1671, 32
    %v1698 = vpop.permute.xlu0 %1697
    %1700 = vst.msk [vmem:[#allocation2 + $0x28] sm:$0xff] %vm83, %v1698
    %1702 = vrot.lane.b32.xlu0 %v1695, 64
    %v1703 = vpop.permute.xlu0 %1702
    %1705 = vst.msk [vmem:[#allocation2 + $0x10] sm:$0xff] %vm664, %v1703
    %v1706 = vsel %vm83, %v1698, 0
    %1708 = vmatprep.subr.mxu0 0.0
    %1709 = vmatpush1.msra.mxu0 0.0
    %1710 = vmatprep.subr.mxu0 0.0
    %1711 = vmatpush1.msra.mxu0 0.0
    %1712 = vmatprep.subr.mxu0 0.0
    %1713 = vmatpush1.msra.mxu0 0.0
    %1714 = vmatprep.subr.mxu0 0.0
    %1715 = vmatpush1.msra.mxu0 0.0
    %1716 = vmatprep.subr.mxu0 0.0
    %1717 = vmatpush1.msra.mxu0 0.0
    %1718 = vmatprep.subr.mxu0 0.0
    %1719 = vmatpush1.msra.mxu0 0.0
    %1720 = vmatprep.subr.mxu0 0.0
    %1721 = vmatpush1.msra.mxu0 0.0
    %1722 = vmatprep.subr.mxu0 0.0
    %1723 = vmatpush1.msra.mxu0 0.0
    %1724 = vmatprep.subr.mxu0 0.0
    %1725 = vmatpush1.msra.mxu0 0.0
    %1726 = vmatprep.subr.mxu0 0.0
    %1727 = vmatpush1.msra.mxu0 0.0
    %1728 = vmatprep.subr.mxu0 0.0
    %1729 = vmatpush1.msra.mxu0 0.0
    %1730 = vmatprep.subr.mxu0 0.0
    %1731 = vmatpush1.msra.mxu0 0.0
    %1732 = vmatprep.subr.mxu0 0.0
    %1733 = vmatpush1.msra.mxu0 %v441
    %1734 = vmatprep.subr.mxu0 0.0
    %1735 = vmatpush1.msra.mxu0 %v440
    %1736 = vmatprep.subr.mxu0 0.0
    %1737 = vmatpush1.msra.mxu0 %v439
    %1738 = vmatprep.subr.mxu0 0.0
    %1739 = vmatpush1.msra.mxu0 %v438
    %1740 = vmatprep.subr.mxu0 0.0
    %1741 = vmatpush2.msra.mxu0 0.0
    %1742 = vmatprep.subr.mxu0 0.0
    %1743 = vmatpush2.msra.mxu0 0.0
    %1744 = vmatprep.subr.mxu0 0.0
    %1745 = vmatpush2.msra.mxu0 0.0
    %1746 = vmatprep.subr.mxu0 0.0
    %1747 = vmatpush2.msra.mxu0 0.0
    %1748 = vmatprep.subr.mxu0 0.0
    %1749 = vmatpush2.msra.mxu0 0.0
    %1750 = vmatprep.subr.mxu0 0.0
    %1751 = vmatpush2.msra.mxu0 0.0
    %1752 = vmatprep.subr.mxu0 0.0
    %1753 = vmatpush2.msra.mxu0 0.0
    %1754 = vmatprep.subr.mxu0 0.0
    %1755 = vmatpush2.msra.mxu0 0.0
    %1756 = vmatprep.subr.mxu0 0.0
    %1757 = vmatpush2.msra.mxu0 0.0
    %1758 = vmatprep.subr.mxu0 0.0
    %1759 = vmatpush2.msra.mxu0 0.0
    %1760 = vmatprep.subr.mxu0 0.0
    %1761 = vmatpush2.msra.mxu0 0.0
    %1762 = vmatprep.subr.mxu0 0.0
    %1763 = vmatpush2.msra.mxu0 0.0
    %1764 = vmatprep.subr.mxu0 0.0
    %1765 = vmatpush2.msra.mxu0 0.0
    %1766 = vmatprep.subr.mxu0 0.0
    %1767 = vmatpush2.msra.mxu0 0.0
    %1768 = vmatprep.subr.mxu0 0.0
    %1769 = vmatpush2.msra.mxu0 0.0
    %1770 = vmatprep.subr.mxu0 0.0
    %1771 = vmatpush2.msra.mxu0 0.0
    %1772 = vmatprep.mubr.f32.mxu0 0.0
    %1773 = vmatmul.mubr.f32.gmra.mxu0 %v1706
    %v1774 = vpop.f32.mrf.mxu0
    %v1775 = vadd.f32 0.0, %v1774
    %v1776 = vpop.f32.mrf.mxu0
    %1777 = vdwg.mxu0
    %v1778 = vadd.f32 %v428, %v1775
    %v1779 = vadd.f32 %v1778, %v526
    %1780 = vrot.lane.b32.xlu0 %v1695, 32
    %v1781 = vpop.permute.xlu0 %1780
    %v1782 = vsel %vm83, %v1781, 0
    %1784 = vmatprep.subr.mxu0 0.0
    %1785 = vmatpush1.msra.mxu0 0.0
    %1786 = vmatprep.subr.mxu0 0.0
    %1787 = vmatpush1.msra.mxu0 0.0
    %1788 = vmatprep.subr.mxu0 0.0
    %1789 = vmatpush1.msra.mxu0 0.0
    %1790 = vmatprep.subr.mxu0 0.0
    %1791 = vmatpush1.msra.mxu0 0.0
    %1792 = vmatprep.subr.mxu0 0.0
    %1793 = vmatpush1.msra.mxu0 0.0
    %1794 = vmatprep.subr.mxu0 0.0
    %1795 = vmatpush1.msra.mxu0 0.0
    %1796 = vmatprep.subr.mxu0 0.0
    %1797 = vmatpush1.msra.mxu0 0.0
    %1798 = vmatprep.subr.mxu0 0.0
    %1799 = vmatpush1.msra.mxu0 0.0
    %1800 = vmatprep.subr.mxu0 0.0
    %1801 = vmatpush1.msra.mxu0 0.0
    %1802 = vmatprep.subr.mxu0 0.0
    %1803 = vmatpush1.msra.mxu0 0.0
    %1804 = vmatprep.subr.mxu0 0.0
    %1805 = vmatpush1.msra.mxu0 0.0
    %1806 = vmatprep.subr.mxu0 0.0
    %1807 = vmatpush1.msra.mxu0 0.0
    %1808 = vmatprep.subr.mxu0 0.0
    %1809 = vmatpush1.msra.mxu0 %v445
    %1810 = vmatprep.subr.mxu0 0.0
    %1811 = vmatpush1.msra.mxu0 %v444
    %1812 = vmatprep.subr.mxu0 0.0
    %1813 = vmatpush1.msra.mxu0 %v443
    %1814 = vmatprep.subr.mxu0 0.0
    %1815 = vmatpush1.msra.mxu0 %v442
    %1816 = vmatprep.subr.mxu0 0.0
    %1817 = vmatpush2.msra.mxu0 0.0
    %1818 = vmatprep.subr.mxu0 0.0
    %1819 = vmatpush2.msra.mxu0 0.0
    %1820 = vmatprep.subr.mxu0 0.0
    %1821 = vmatpush2.msra.mxu0 0.0
    %1822 = vmatprep.subr.mxu0 0.0
    %1823 = vmatpush2.msra.mxu0 0.0
    %1824 = vmatprep.subr.mxu0 0.0
    %1825 = vmatpush2.msra.mxu0 0.0
    %1826 = vmatprep.subr.mxu0 0.0
    %1827 = vmatpush2.msra.mxu0 0.0
    %1828 = vmatprep.subr.mxu0 0.0
    %1829 = vmatpush2.msra.mxu0 0.0
    %1830 = vmatprep.subr.mxu0 0.0
    %1831 = vmatpush2.msra.mxu0 0.0
    %1832 = vmatprep.subr.mxu0 0.0
    %1833 = vmatpush2.msra.mxu0 0.0
    %1834 = vmatprep.subr.mxu0 0.0
    %1835 = vmatpush2.msra.mxu0 0.0
    %1836 = vmatprep.subr.mxu0 0.0
    %1837 = vmatpush2.msra.mxu0 0.0
    %1838 = vmatprep.subr.mxu0 0.0
    %1839 = vmatpush2.msra.mxu0 0.0
    %1840 = vmatprep.subr.mxu0 0.0
    %1841 = vmatpush2.msra.mxu0 0.0
    %1842 = vmatprep.subr.mxu0 0.0
    %1843 = vmatpush2.msra.mxu0 0.0
    %1844 = vmatprep.subr.mxu0 0.0
    %1845 = vmatpush2.msra.mxu0 0.0
    %1846 = vmatprep.subr.mxu0 0.0
    %1847 = vmatpush2.msra.mxu0 0.0
    %1848 = vmatprep.mubr.f32.mxu0 0.0
    %1849 = vmatmul.mubr.f32.gmra.mxu0 %v1782
    %v1850 = vpop.f32.mrf.mxu0
    %v1851 = vadd.f32 0.0, %v1850
    %v1852 = vpop.f32.mrf.mxu0
    %1853 = vdwg.mxu0
    %v1854 = vadd.f32 %v400, %v1851
    %v1855 = vadd.f32 %v1854, %v604
    %v1856 = vxor.u32 %v1779, 2147483648
    %v1857 = vmul.f32 %v1856, 1.442695
    %v1858 = vpow.pop %v1857
    %v1859 = vadd.f32 %v1858, 1.0
    %v1860 = vrcp.pop %v1859
    %v1861 = vmul.f32 1.0, %v1860
    %v1862 = vtanh.pop %v1779
    %v1863 = vmul.f32 %v1861, %v1665
    %1865 = vrot.lane.b32.xlu0 %v1862, 64
    %v1866 = vpop.permute.xlu0 %1865
    %v1868 = vmul.f32 %v1861, %v1866
    %1870 = vrot.lane.b32.xlu0 %v1868, 32
    %v1871 = vpop.permute.xlu0 %1870
    %v1873 = vadd.f32 %v1863, %v1871
    %v1874 = vtanh.pop %v1873
    %1876 = vrot.lane.b32.xlu0 %v1874, 64
    %v1877 = vpop.permute.xlu0 %1876
    %v1879 = vmul.f32 %v1861, %v1877
    %v1880 = vxor.u32 %v1855, 2147483648
    %v1881 = vmul.f32 %v1880, 1.442695
    %v1882 = vpow.pop %v1881
    %v1883 = vadd.f32 %v1882, 1.0
    %v1884 = vrcp.pop %v1883
    %v1885 = vmul.f32 1.0, %v1884
    %v1886 = vtanh.pop %v1855
    %v1887 = vmul.f32 %v1885, %v1689
    %1889 = vrot.lane.b32.xlu0 %v1886, 64
    %v1890 = vpop.permute.xlu0 %1889
    %v1892 = vmul.f32 %v1885, %v1890
    %1894 = vrot.lane.b32.xlu0 %v1892, 32
    %v1895 = vpop.permute.xlu0 %1894
    %v1897 = vadd.f32 %v1887, %v1895
    %v1898 = vtanh.pop %v1897
    %1900 = vrot.lane.b32.xlu0 %v1898, 64
    %v1901 = vpop.permute.xlu0 %1900
    %v1903 = vmul.f32 %v1885, %v1901
    %1905 = vrot.lane.b32.xlu0 %v1879, 32
    %v1906 = vpop.permute.xlu0 %1905
    %1908 = vst.msk [vmem:[#allocation2 + $0x30] sm:$0xff] %vm83, %v1906
    %1910 = vrot.lane.b32.xlu0 %v1903, 64
    %v1911 = vpop.permute.xlu0 %1910
    %1913 = vst.msk [vmem:[#allocation2 + $0x8] sm:$0xff] %vm664, %v1911
    %v1914 = vsel %vm83, %v1906, 0
    %1916 = vmatprep.subr.mxu0 0.0
    %1917 = vmatpush1.msra.mxu0 0.0
    %1918 = vmatprep.subr.mxu0 0.0
    %1919 = vmatpush1.msra.mxu0 0.0
    %1920 = vmatprep.subr.mxu0 0.0
    %1921 = vmatpush1.msra.mxu0 0.0
    %1922 = vmatprep.subr.mxu0 0.0
    %1923 = vmatpush1.msra.mxu0 0.0
    %1924 = vmatprep.subr.mxu0 0.0
    %1925 = vmatpush1.msra.mxu0 0.0
    %1926 = vmatprep.subr.mxu0 0.0
    %1927 = vmatpush1.msra.mxu0 0.0
    %1928 = vmatprep.subr.mxu0 0.0
    %1929 = vmatpush1.msra.mxu0 0.0
    %1930 = vmatprep.subr.mxu0 0.0
    %1931 = vmatpush1.msra.mxu0 0.0
    %1932 = vmatprep.subr.mxu0 0.0
    %1933 = vmatpush1.msra.mxu0 0.0
    %1934 = vmatprep.subr.mxu0 0.0
    %1935 = vmatpush1.msra.mxu0 0.0
    %1936 = vmatprep.subr.mxu0 0.0
    %1937 = vmatpush1.msra.mxu0 0.0
    %1938 = vmatprep.subr.mxu0 0.0
    %1939 = vmatpush1.msra.mxu0 0.0
    %1940 = vmatprep.subr.mxu0 0.0
    %1941 = vmatpush1.msra.mxu0 %v441
    %1942 = vmatprep.subr.mxu0 0.0
    %1943 = vmatpush1.msra.mxu0 %v440
    %1944 = vmatprep.subr.mxu0 0.0
    %1945 = vmatpush1.msra.mxu0 %v439
    %1946 = vmatprep.subr.mxu0 0.0
    %1947 = vmatpush1.msra.mxu0 %v438
    %1948 = vmatprep.subr.mxu0 0.0
    %1949 = vmatpush2.msra.mxu0 0.0
    %1950 = vmatprep.subr.mxu0 0.0
    %1951 = vmatpush2.msra.mxu0 0.0
    %1952 = vmatprep.subr.mxu0 0.0
    %1953 = vmatpush2.msra.mxu0 0.0
    %1954 = vmatprep.subr.mxu0 0.0
    %1955 = vmatpush2.msra.mxu0 0.0
    %1956 = vmatprep.subr.mxu0 0.0
    %1957 = vmatpush2.msra.mxu0 0.0
    %1958 = vmatprep.subr.mxu0 0.0
    %1959 = vmatpush2.msra.mxu0 0.0
    %1960 = vmatprep.subr.mxu0 0.0
    %1961 = vmatpush2.msra.mxu0 0.0
    %1962 = vmatprep.subr.mxu0 0.0
    %1963 = vmatpush2.msra.mxu0 0.0
    %1964 = vmatprep.subr.mxu0 0.0
    %1965 = vmatpush2.msra.mxu0 0.0
    %1966 = vmatprep.subr.mxu0 0.0
    %1967 = vmatpush2.msra.mxu0 0.0
    %1968 = vmatprep.subr.mxu0 0.0
    %1969 = vmatpush2.msra.mxu0 0.0
    %1970 = vmatprep.subr.mxu0 0.0
    %1971 = vmatpush2.msra.mxu0 0.0
    %1972 = vmatprep.subr.mxu0 0.0
    %1973 = vmatpush2.msra.mxu0 0.0
    %1974 = vmatprep.subr.mxu0 0.0
    %1975 = vmatpush2.msra.mxu0 0.0
    %1976 = vmatprep.subr.mxu0 0.0
    %1977 = vmatpush2.msra.mxu0 0.0
    %1978 = vmatprep.subr.mxu0 0.0
    %1979 = vmatpush2.msra.mxu0 0.0
    %1980 = vmatprep.mubr.f32.mxu0 0.0
    %1981 = vmatmul.mubr.f32.gmra.mxu0 %v1914
    %v1982 = vpop.f32.mrf.mxu0
    %v1983 = vadd.f32 0.0, %v1982
    %v1984 = vpop.f32.mrf.mxu0
    %1985 = vdwg.mxu0
    %v1986 = vadd.f32 %v434, %v1983
    %v1987 = vadd.f32 %v1986, %v526
    %1988 = vrot.lane.b32.xlu0 %v1903, 32
    %v1989 = vpop.permute.xlu0 %1988
    %v1990 = vsel %vm83, %v1989, 0
    %1992 = vmatprep.subr.mxu0 0.0
    %1993 = vmatpush1.msra.mxu0 0.0
    %1994 = vmatprep.subr.mxu0 0.0
    %1995 = vmatpush1.msra.mxu0 0.0
    %1996 = vmatprep.subr.mxu0 0.0
    %1997 = vmatpush1.msra.mxu0 0.0
    %1998 = vmatprep.subr.mxu0 0.0
    %1999 = vmatpush1.msra.mxu0 0.0
    %2000 = vmatprep.subr.mxu0 0.0
    %2001 = vmatpush1.msra.mxu0 0.0
    %2002 = vmatprep.subr.mxu0 0.0
    %2003 = vmatpush1.msra.mxu0 0.0
    %2004 = vmatprep.subr.mxu0 0.0
    %2005 = vmatpush1.msra.mxu0 0.0
    %2006 = vmatprep.subr.mxu0 0.0
    %2007 = vmatpush1.msra.mxu0 0.0
    %2008 = vmatprep.subr.mxu0 0.0
    %2009 = vmatpush1.msra.mxu0 0.0
    %2010 = vmatprep.subr.mxu0 0.0
    %2011 = vmatpush1.msra.mxu0 0.0
    %2012 = vmatprep.subr.mxu0 0.0
    %2013 = vmatpush1.msra.mxu0 0.0
    %2014 = vmatprep.subr.mxu0 0.0
    %2015 = vmatpush1.msra.mxu0 0.0
    %2016 = vmatprep.subr.mxu0 0.0
    %2017 = vmatpush1.msra.mxu0 %v445
    %2018 = vmatprep.subr.mxu0 0.0
    %2019 = vmatpush1.msra.mxu0 %v444
    %2020 = vmatprep.subr.mxu0 0.0
    %2021 = vmatpush1.msra.mxu0 %v443
    %2022 = vmatprep.subr.mxu0 0.0
    %2023 = vmatpush1.msra.mxu0 %v442
    %2024 = vmatprep.subr.mxu0 0.0
    %2025 = vmatpush2.msra.mxu0 0.0
    %2026 = vmatprep.subr.mxu0 0.0
    %2027 = vmatpush2.msra.mxu0 0.0
    %2028 = vmatprep.subr.mxu0 0.0
    %2029 = vmatpush2.msra.mxu0 0.0
    %2030 = vmatprep.subr.mxu0 0.0
    %2031 = vmatpush2.msra.mxu0 0.0
    %2032 = vmatprep.subr.mxu0 0.0
    %2033 = vmatpush2.msra.mxu0 0.0
    %2034 = vmatprep.subr.mxu0 0.0
    %2035 = vmatpush2.msra.mxu0 0.0
    %2036 = vmatprep.subr.mxu0 0.0
    %2037 = vmatpush2.msra.mxu0 0.0
    %2038 = vmatprep.subr.mxu0 0.0
    %2039 = vmatpush2.msra.mxu0 0.0
    %2040 = vmatprep.subr.mxu0 0.0
    %2041 = vmatpush2.msra.mxu0 0.0
    %2042 = vmatprep.subr.mxu0 0.0
    %2043 = vmatpush2.msra.mxu0 0.0
    %2044 = vmatprep.subr.mxu0 0.0
    %2045 = vmatpush2.msra.mxu0 0.0
    %2046 = vmatprep.subr.mxu0 0.0
    %2047 = vmatpush2.msra.mxu0 0.0
    %2048 = vmatprep.subr.mxu0 0.0
    %2049 = vmatpush2.msra.mxu0 0.0
    %2050 = vmatprep.subr.mxu0 0.0
    %2051 = vmatpush2.msra.mxu0 0.0
    %2052 = vmatprep.subr.mxu0 0.0
    %2053 = vmatpush2.msra.mxu0 0.0
    %2054 = vmatprep.subr.mxu0 0.0
    %2055 = vmatpush2.msra.mxu0 0.0
    %2056 = vmatprep.mubr.f32.mxu0 0.0
    %2057 = vmatmul.mubr.f32.gmra.mxu0 %v1990
    %v2058 = vpop.f32.mrf.mxu0
    %v2059 = vadd.f32 0.0, %v2058
    %v2060 = vpop.f32.mrf.mxu0
    %2061 = vdwg.mxu0
    %v2062 = vadd.f32 %v394, %v2059
    %v2063 = vadd.f32 %v2062, %v604
    %v2064 = vxor.u32 %v1987, 2147483648
    %v2065 = vmul.f32 %v2064, 1.442695
    %v2066 = vpow.pop %v2065
    %v2067 = vadd.f32 %v2066, 1.0
    %v2068 = vrcp.pop %v2067
    %v2069 = vmul.f32 1.0, %v2068
    %v2070 = vtanh.pop %v1987
    %v2071 = vmul.f32 %v2069, %v1873
    %2073 = vrot.lane.b32.xlu0 %v2070, 64
    %v2074 = vpop.permute.xlu0 %2073
    %v2076 = vmul.f32 %v2069, %v2074
    %2078 = vrot.lane.b32.xlu0 %v2076, 32
    %v2079 = vpop.permute.xlu0 %2078
    %v2081 = vadd.f32 %v2071, %v2079
    %v2082 = vtanh.pop %v2081
    %2084 = vrot.lane.b32.xlu0 %v2082, 64
    %v2085 = vpop.permute.xlu0 %2084
    %v2087 = vmul.f32 %v2069, %v2085
    %v2088 = vxor.u32 %v2063, 2147483648
    %v2089 = vmul.f32 %v2088, 1.442695
    %v2090 = vpow.pop %v2089
    %v2091 = vadd.f32 %v2090, 1.0
    %v2092 = vrcp.pop %v2091
    %v2093 = vmul.f32 1.0, %v2092
    %v2094 = vtanh.pop %v2063
    %v2095 = vmul.f32 %v2093, %v1897
    %2097 = vrot.lane.b32.xlu0 %v2094, 64
    %v2098 = vpop.permute.xlu0 %2097
    %v2100 = vmul.f32 %v2093, %v2098
    %2102 = vrot.lane.b32.xlu0 %v2100, 32
    %v2103 = vpop.permute.xlu0 %2102
    %v2105 = vadd.f32 %v2095, %v2103
    %v2106 = vtanh.pop %v2105
    %2108 = vrot.lane.b32.xlu0 %v2106, 64
    %v2109 = vpop.permute.xlu0 %2108
    %v2111 = vmul.f32 %v2093, %v2109
    %2113 = vrot.lane.b32.xlu0 %v2087, 32
    %v2114 = vpop.permute.xlu0 %2113
    %2116 = vst.msk [vmem:[#allocation2 + $0x38] sm:$0xff] %vm83, %v2114
    %2118 = vrot.lane.b32.xlu0 %v2111, 64
    %v2119 = vpop.permute.xlu0 %2118
    %2121 = vst.msk [vmem:[#allocation2] sm:$0xff] %vm664, %v2119
    %2122 = vst.msk [vmem:[#allocation9] sm:$0xff] %vm83, %v2114
    %2123 = vrot.lane.b32.xlu0 %v2111, 32
    %v2124 = vpop.permute.xlu0 %2123
    %s2126 = scalar_lea.vmem [#allocation9], 8
    %2127 = vst.msk [vmem:[%s2126] sm:$0xff] %vm83, %v2124
    %2129 = vrot.lane.b32.xlu0 %v2081, 96
    %v2130 = vpop.permute.xlu0 %2129
    %2132 = vst.msk [vmem:[#allocation11] sm:$0xff] %vm83, %v2130
    %2134 = vrot.lane.b32.xlu0 %v2105, 96
    %v2135 = vpop.permute.xlu0 %2134
    %s2137 = scalar_lea.vmem [#allocation11], 8
    %2138 = vst.msk [vmem:[%s2137] sm:$0xff] %vm83, %v2135
    %v2139 = vld [vmem:[#allocation2] sm:$0xff]
    %v2140 = vld [vmem:[#allocation2 + $0x8] sm:$0xff]
    %v2141 = vld [vmem:[#allocation2 + $0x10] sm:$0xff]
    %v2142 = vld [vmem:[#allocation2 + $0x18] sm:$0xff]
    %v2143 = vld [vmem:[#allocation2 + $0x20] sm:$0xff]
    %v2144 = vld [vmem:[#allocation2 + $0x28] sm:$0xff]
    %v2145 = vld [vmem:[#allocation2 + $0x30] sm:$0xff]
    %v2146 = vld [vmem:[#allocation2 + $0x38] sm:$0xff]
    %v2147 = vsel %vm213, %v2139, 0.0
    %v2148 = vsel %vm213, %v2140, 0.0
    %v2149 = vadd.f32 %v2147, %v2148
    %v2150 = vsel %vm213, %v2141, 0.0
    %v2151 = vadd.f32 %v2149, %v2150
    %v2152 = vsel %vm213, %v2142, 0.0
    %v2153 = vadd.f32 %v2151, %v2152
    %v2154 = vsel %vm213, %v2143, 0.0
    %v2155 = vadd.f32 %v2153, %v2154
    %v2156 = vsel %vm213, %v2144, 0.0
    %v2157 = vadd.f32 %v2155, %v2156
    %v2158 = vsel %vm213, %v2145, 0.0
    %v2159 = vadd.f32 %v2157, %v2158
    %v2160 = vsel %vm213, %v2146, 0.0
    %v2161 = vadd.f32 %v2159, %v2160
    %v2162 = vrot.slane %v2161, 4
    %v2163 = vadd.f32 %v2161, %v2162
    %v2164 = vrot.slane %v2163, 2
    %v2165 = vadd.f32 %v2163, %v2164
    %v2166 = vrot.slane %v2165, 1
    %v2167 = vadd.f32 %v2165, %v2166
    %v2168 = vmul.f32 %v2167, %v235
    %v2169 = vmul.f32 %v2139, %v2139
    %v2170 = vmul.f32 %v2140, %v2140
    %v2171 = vmul.f32 %v2141, %v2141
    %v2172 = vmul.f32 %v2142, %v2142
    %v2173 = vmul.f32 %v2143, %v2143
    %v2174 = vmul.f32 %v2144, %v2144
    %v2175 = vmul.f32 %v2145, %v2145
    %v2176 = vmul.f32 %v2146, %v2146
    %v2177 = vsel %vm213, %v2169, 0.0
    %v2178 = vsel %vm213, %v2170, 0.0
    %v2179 = vadd.f32 %v2177, %v2178
    %v2180 = vsel %vm213, %v2171, 0.0
    %v2181 = vadd.f32 %v2179, %v2180
    %v2182 = vsel %vm213, %v2172, 0.0
    %v2183 = vadd.f32 %v2181, %v2182
    %v2184 = vsel %vm213, %v2173, 0.0
    %v2185 = vadd.f32 %v2183, %v2184
    %v2186 = vsel %vm213, %v2174, 0.0
    %v2187 = vadd.f32 %v2185, %v2186
    %v2188 = vsel %vm213, %v2175, 0.0
    %v2189 = vadd.f32 %v2187, %v2188
    %v2190 = vsel %vm213, %v2176, 0.0
    %v2191 = vadd.f32 %v2189, %v2190
    %v2192 = vrot.slane %v2191, 4
    %v2193 = vadd.f32 %v2191, %v2192
    %v2194 = vrot.slane %v2193, 2
    %v2195 = vadd.f32 %v2193, %v2194
    %v2196 = vrot.slane %v2195, 1
    %v2197 = vadd.f32 %v2195, %v2196
    %v2198 = vmul.f32 %v2197, %v235
    %v2199 = vmul.f32 %v2168, %v2168
    %v2200 = vsub.f32 %v2198, %v2199
    %v2201 = vsub.f32 %v2139, %v2168
    %v2202 = vsub.f32 %v2140, %v2168
    %v2203 = vsub.f32 %v2141, %v2168
    %v2204 = vsub.f32 %v2142, %v2168
    %v2205 = vsub.f32 %v2143, %v2168
    %v2206 = vsub.f32 %v2144, %v2168
    %v2207 = vsub.f32 %v2145, %v2168
    %v2208 = vsub.f32 %v2146, %v2168
    %v2209 = vadd.f32 %v2200, 1e-05
    %v2210 = vrsqrt.pop %v2209
    %v2211 = vmul.f32 %v2201, %v2210
    %v2212 = vmul.f32 %v2202, %v2210
    %v2213 = vmul.f32 %v2203, %v2210
    %v2214 = vmul.f32 %v2204, %v2210
    %v2215 = vmul.f32 %v2205, %v2210
    %v2216 = vmul.f32 %v2206, %v2210
    %v2217 = vmul.f32 %v2207, %v2210
    %v2218 = vmul.f32 %v2208, %v2210
    %v2219 = vld [vmem:[%s6] sm:$0x1]
    %v2221 = vlaneseq
    %v2222 = vshrl.u32 %v2221, 7
    %v2223 = vsub.s32 0, %v2222
    %v2224 = vrot.slane %v2219, %v2223
    %v2226 = vmul.f32 %v2211, %v2224
    %v2227 = vmul.f32 %v2212, %v2224
    %v2228 = vmul.f32 %v2213, %v2224
    %v2229 = vmul.f32 %v2214, %v2224
    %v2230 = vmul.f32 %v2215, %v2224
    %v2231 = vmul.f32 %v2216, %v2224
    %v2232 = vmul.f32 %v2217, %v2224
    %v2233 = vmul.f32 %v2218, %v2224
    %v2234 = vld [vmem:[%s7] sm:$0x1]
    %v2236 = vlaneseq
    %v2237 = vshrl.u32 %v2236, 7
    %v2238 = vsub.s32 0, %v2237
    %v2239 = vrot.slane %v2234, %v2238
    %v2241 = vadd.f32 %v2226, %v2239
    %v2242 = vadd.f32 %v2227, %v2239
    %v2243 = vadd.f32 %v2228, %v2239
    %v2244 = vadd.f32 %v2229, %v2239
    %v2245 = vadd.f32 %v2230, %v2239
    %v2246 = vadd.f32 %v2231, %v2239
    %v2247 = vadd.f32 %v2232, %v2239
    %v2248 = vadd.f32 %v2233, %v2239
    %v2249 = vadd.f32 %v2241, %v309
    %v2250 = vadd.f32 %v2242, %v310
    %v2251 = vadd.f32 %v2243, %v311
    %v2252 = vadd.f32 %v2244, %v312
    %v2253 = vadd.f32 %v2245, %v313
    %v2254 = vadd.f32 %v2246, %v314
    %v2255 = vadd.f32 %v2247, %v315
    %v2256 = vadd.f32 %v2248, %v316
    %v2257 = vtanh.pop %v2249
    %v2258 = vtanh.pop %v2250
    %v2259 = vtanh.pop %v2251
    %v2260 = vtanh.pop %v2252
    %v2261 = vtanh.pop %v2253
    %v2262 = vtanh.pop %v2254
    %v2263 = vtanh.pop %v2255
    %v2264 = vtanh.pop %v2256
    %2265 = vst.msk [vmem:[#allocation8] sm:$0xff] %vm213, %v2257
    %2266 = vst.msk [vmem:[#allocation8 + $0x8] sm:$0xff] %vm213, %v2258
    %2267 = vst.msk [vmem:[#allocation8 + $0x10] sm:$0xff] %vm213, %v2259
    %2268 = vst.msk [vmem:[#allocation8 + $0x18] sm:$0xff] %vm213, %v2260
    %2269 = vst.msk [vmem:[#allocation8 + $0x20] sm:$0xff] %vm213, %v2261
    %2270 = vst.msk [vmem:[#allocation8 + $0x28] sm:$0xff] %vm213, %v2262
    %2271 = vst.msk [vmem:[#allocation8 + $0x30] sm:$0xff] %vm213, %v2263
    %2272 = vst.msk [vmem:[#allocation8 + $0x38] sm:$0xff] %vm213, %v2264
    // Predicated region
    $region54: #{tpu_custom_call.1} parent=1 // pred_check
      _
    $region55: #{tpu_custom_call.1} parent=1 // pred_check_branch
      %2274 = sbr.rel (0) target = $region57
    $region56: #{tpu_custom_call.1} parent=1 // pred_region
      %s2276 = ssub.s32 1024, 1024
      %2277 = vsyncadd [#allocation5], %s2276
      %s2278 = sshll.u32 [#allocation8], 4
      %s2279 = int_to_ptr.vmem [resolvable:$true] %s2278
      %2284 = dma.vmem_to_hbm [thread:$0]  %s2279, 1024, %s11, [#allocation5], 128, 128, 8
    $region57: #{tpu_custom_call.1} parent=1 // pred_fallthru
      _
    // Predicated region
    $region58: #{tpu_custom_call.1} parent=1 // pred_check
      _
    $region59: #{tpu_custom_call.1} parent=1 // pred_check_branch
      %2286 = sbr.rel (0) target = $region61
    $region60: #{tpu_custom_call.1} parent=1 // pred_region
      %s2288 = ssub.s32 256, 256
      %2289 = vsyncadd [#allocation10], %s2288
      %s2290 = sshll.u32 [#allocation9], 4
      %s2291 = int_to_ptr.vmem [resolvable:$true] %s2290
      %2296 = dma.vmem_to_hbm [thread:$0]  %s2291, 256, %s12, [#allocation10], 128, 128, 8
    $region61: #{tpu_custom_call.1} parent=1 // pred_fallthru
      _
    // Predicated region
    $region62: #{tpu_custom_call.1} parent=1 // pred_check
      _
    $region63: #{tpu_custom_call.1} parent=1 // pred_check_branch
      %2298 = sbr.rel (0) target = $region65
    $region64: #{tpu_custom_call.1} parent=1 // pred_region
      %s2300 = ssub.s32 256, 256
      %2301 = vsyncadd [#allocation10], %s2300
      %s2302 = sshll.u32 [#allocation11], 4
      %s2303 = int_to_ptr.vmem [resolvable:$true] %s2302
      %2308 = dma.vmem_to_hbm [thread:$0]  %s2303, 256, %s13, [#allocation10], 128, 128, 8
    $region65: #{tpu_custom_call.1} parent=1 // pred_fallthru
      _
    // Predicated region
    $region66: #{tpu_custom_call.1} parent=1 // pred_check
      _
    $region67: #{tpu_custom_call.1} parent=1 // pred_check_branch
      %2310 = sbr.rel (0) target = $region69
    $region68: #{tpu_custom_call.1} parent=1 // pred_region
      %2311 = dma.done [#allocation5], 1024
    $region69: #{tpu_custom_call.1} parent=1 // pred_fallthru
      _
    // Predicated region
    $region70: #{tpu_custom_call.1} parent=1 // pred_check
      _
    $region71: #{tpu_custom_call.1} parent=1 // pred_check_branch
      %2313 = sbr.rel (0) target = $region73
    $region72: #{tpu_custom_call.1} parent=1 // pred_region
      %2314 = dma.done [#allocation10], 256
    $region73: #{tpu_custom_call.1} parent=1 // pred_fallthru
      _
    // Predicated region
    $region74: #{tpu_custom_call.1} parent=1 // pred_check
      _
    $region75: #{tpu_custom_call.1} parent=1 // pred_check_branch
      %2316 = sbr.rel (0) target = $region77
    $region76: #{tpu_custom_call.1} parent=1 // pred_region
      %2317 = dma.done [#allocation10], 256
    $region77: #{tpu_custom_call.1} parent=1 // pred_fallthru
      _
    %2318 = vsyncpa [#allocation4], 1
    %2319 = vsyncpa [#allocation7], 1
    %2320 = vsyncpa [#allocation5], 1
    %2321 = vsyncpa [#allocation10], 1

</llo_original>
